<compile_context>
chip_gen: v7x
topology: tpu7x:2x2x1
jax: 0.10.0
libtpu: 0.0.40
codegen_flags: <defaults>
</compile_context>

<pallas_src>
import jax
import jax.numpy as jnp
from jax import lax
from jax.experimental import pallas as pl
from jax.experimental.pallas import tpu as pltpu


# ----------------------------------------------------------------------------
# Fused kernel: one grid step == one tile of B images, full forward pass.
# ----------------------------------------------------------------------------
def _fused_net_kernel(x_ref, m1_ref, b1r_ref, m2_ref, b2r_ref,
                      g1_ref, bfc1_ref, wfc2_ref, bfc2_ref, o_ref):
    f32, bf16 = jnp.float32, jnp.bfloat16
    B = x_ref.shape[0]

    def dot(a, b):
        return jnp.dot(a, b, preferred_element_type=f32)

    def pair_max(t, k, axis):
        # max(t, t shifted by -k along `axis`).  Wrapped entries only ever land
        # on rows/lanes that are never read downstream, so rotation is safe.
        if axis == 0:
            s = jnp.concatenate([t[k:, :], t[:k, :]], axis=0)
        else:
            s = jnp.concatenate([t[:, k:], t[:, :k]], axis=1)
        return jnp.maximum(t, s)

    x = x_ref[...]                                              # (B, 28, 28) bf16

    # ---- conv1 (1->10, k5, valid): rows = B*24, lanes = (co, j) = 240 ----------
    acc1 = dot(x[:, 0:24, :].reshape(B * 24, 28), m1_ref[0])
    for di in range(1, 5):
        acc1 = acc1 + dot(x[:, di:di + 24, :].reshape(B * 24, 28), m1_ref[di])
    acc1 = acc1 + b1r_ref[...]                                  # (1, 240) f32

    # ---- 2x2 maxpool + relu (valid results at even rows / even lanes) ---------
    t = pair_max(acc1, 1, axis=1)                               # width pool
    t = jnp.maximum(t, 0.0)                                     # relu
    t = pair_max(t, 1, axis=0)                                  # height pool
    p1 = t.reshape(B, 24, 240)                                  # f32, uncompacted

    # ---- conv2 (10->20, k5, valid) against the uncompacted 240-lane layout ----
    # Output rows: B*16 per tile, valid conv2 output at local even rows 2*i2.
    # TODO(synk): Dropout2d is identity under eval-mode semantics.
    acc2 = dot(p1[:, 0:16, :].reshape(B * 16, 240).astype(bf16), m2_ref[0])
    for di in range(1, 5):
        lhs = p1[:, 2 * di:2 * di + 16, :].reshape(B * 16, 240).astype(bf16)
        acc2 = acc2 + dot(lhs, m2_ref[di])
    acc2 = acc2 + b2r_ref[...]                                  # (1, 160) f32

    # ---- 2x2 maxpool + relu (valid at local rows == 0 mod 4, even lanes) ------
    t = pair_max(acc2, 1, axis=1)                               # width pool
    t = jnp.maximum(t, 0.0)                                     # relu
    t = pair_max(t, 2, axis=0)                                  # height pool (rows r, r+2)
    p2 = t.reshape(B, 16, 160)                                  # f32, uncompacted

    # ---- fc1 (320->50) + relu: gather the 4 valid pooled-height rows per image
    #      and do ONE (B, 640) x (640, 50) contraction (odd lanes hit zero
    #      weights in g1, so the uncompacted layout is harmless).
    flat = jnp.concatenate([p2[:, 4 * h, :] for h in range(4)], axis=-1)  # (B, 640)
    f1 = jnp.maximum(dot(flat.astype(bf16), g1_ref[...]) + bfc1_ref[...], 0.0)
    # TODO(synk): F.dropout is identity under eval-mode semantics.

    # ---- fc2 (50->10) + log_softmax -------------------------------------------
    logits = dot(f1.astype(bf16), wfc2_ref[...]) + bfc2_ref[...]          # (B, 10)
    m = jnp.max(logits, axis=-1, keepdims=True)
    s = logits - m
    lse = jnp.log(jnp.sum(jnp.exp(s), axis=-1, keepdims=True))
    o_ref[...] = (s - lse).astype(o_ref.dtype)


# ----------------------------------------------------------------------------
# One-time host-side weight packing (Toeplitz conv matrices built against the
# UNcompacted pooled layouts, fc1 column permutation, fc2 transpose, biases).
# ----------------------------------------------------------------------------
def prepare_net_weights(params):
    w1, b1 = params["conv1_w"], params["conv1_b"]   # (10,1,5,5), (10,)
    w2, b2 = params["conv2_w"], params["conv2_b"]   # (20,10,5,5), (20,)
    fw1, fb1 = params["fc1_w"], params["fc1_b"]     # (50,320), (50,)
    fw2, fb2 = params["fc2_w"], params["fc2_b"]     # (10,50), (10,)

    K = 5
    C1, W1_IN, W1_OUT = 10, 28, 24                  # conv1
    C2, W2_OUT = 20, 8                              # conv2

    # conv1 Toeplitz: m1[di, j+dj, co*24 + j] = w1[co, 0, di, dj]
    di, co, j, dj = jnp.meshgrid(jnp.arange(K), jnp.arange(C1),
                                 jnp.arange(W1_OUT), jnp.arange(K), indexing="ij")
    m1 = jnp.zeros((K, W1_IN, C1 * W1_OUT), jnp.float32)
    m1 = m1.at[di, j + dj, co * W1_OUT + j].set(w1[co, 0, di, dj])

    # conv2 Toeplitz against the UNcompacted pool1 layout (240 lanes, valid
    # width-pooled values sit at even lane offsets within each channel block):
    #   m2[di, ci*24 + 2*(j2+dj), co*8 + j2] = w2[co, ci, di, dj]
    di, co, ci, j2, dj = jnp.meshgrid(jnp.arange(K), jnp.arange(C2), jnp.arange(C1),
                                      jnp.arange(W2_OUT), jnp.arange(K), indexing="ij")
    m2 = jnp.zeros((K, C1 * W1_OUT, C2 * W2_OUT), jnp.float32)
    m2 = m2.at[di, ci * W1_OUT + 2 * (j2 + dj), co * W2_OUT + j2].set(w2[co, ci, di, dj])

    # fc1 against the UNcompacted conv2-output lane layout, with the 4 pooled
    # height rows concatenated along K:
    #   g1[h*160 + co*8 + 2*w, f] = fc1_w[f, co*16 + h*4 + w]   (matches .view(-1,320))
    h, co, w, f = jnp.meshgrid(jnp.arange(4), jnp.arange(C2), jnp.arange(4),
                               jnp.arange(50), indexing="ij")
    g1 = jnp.zeros((4 * C2 * W2_OUT, 50), jnp.float32)
    g1 = g1.at[h * (C2 * W2_OUT) + co * W2_OUT + 2 * w, f].set(fw1[f, co * 16 + h * 4 + w])

    bf16 = jnp.bfloat16
    return {
        "m1": m1.astype(bf16),                                          # (5, 28, 240)
        "b1r": jnp.repeat(b1, W1_OUT)[None, :].astype(jnp.float32),     # (1, 240)
        "m2": m2.astype(bf16),                                          # (5, 240, 160)
        "b2r": jnp.repeat(b2, W2_OUT)[None, :].astype(jnp.float32),     # (1, 160)
        "g1": g1.astype(bf16),                                          # (640, 50)
        "bfc1": fb1[None, :].astype(jnp.float32),                       # (1, 50)
        "wfc2": fw2.T.astype(bf16),                                     # (50, 10)
        "bfc2": fb2[None, :].astype(jnp.float32),                       # (1, 10)
    }


def _round_up(a, b):
    return (a + b - 1) // b * b


def _whole(shape):
    zeros = (0,) * len(shape)
    return pl.BlockSpec(shape, lambda b, _z=zeros: _z)


def _net_forward(packed, x):
    # x: (N, 1, 28, 28) float32, NCHW (C_in = 1 squeezed away for the kernel).
    n = x.shape[0]
    b_tile = min(128, _round_up(max(n, 1), 8))       # batch tile per grid step
    n_pad = _round_up(n, b_tile)

    x2 = x.reshape(n, 28, 28).astype(jnp.bfloat16)
    if n_pad != n:
        x2 = jnp.pad(x2, ((0, n_pad - n), (0, 0), (0, 0)))

    out = pl.pallas_call(
        _fused_net_kernel,
        out_shape=jax.ShapeDtypeStruct((n_pad, 10), jnp.float32),
        grid=(n_pad // b_tile,),
        in_specs=[
            pl.BlockSpec((b_tile, 28, 28), lambda b: (b, 0, 0)),
            _whole((5, 28, 240)),     # m1
            _whole((1, 240)),         # b1r
            _whole((5, 240, 160)),    # m2
            _whole((1, 160)),         # b2r
            _whole((640, 50)),        # g1
            _whole((1, 50)),          # bfc1
            _whole((50, 10)),         # wfc2
            _whole((1, 10)),          # bfc2
        ],
        out_specs=pl.BlockSpec((b_tile, 10), lambda b: (b, 0)),
        compiler_params=pltpu.CompilerParams(
            dimension_semantics=("parallel",),
            vmem_limit_bytes=40 * 1024 * 1024),
    )(x2, packed["m1"], packed["b1r"], packed["m2"], packed["b2r"],
      packed["g1"], packed["bfc1"], packed["wfc2"], packed["bfc2"])
    return out[:n]


net_forward = jax.jit(_net_forward)


# ----------------------------------------------------------------------------
# Parameters (deterministic synthetic init, PyTorch-like uniform(+-1/sqrt(fan_in)))
# ----------------------------------------------------------------------------
def init_params(key):
    ks = jax.random.split(key, 8)

    def uni(k, shape, fan_in):
        bound = 1.0 / jnp.sqrt(fan_in)
        return jax.random.uniform(k, shape, jnp.float32, -bound, bound)

    return {
        "conv1_w": uni(ks[0], (10, 1, 5, 5), 1 * 5 * 5),
        "conv1_b": uni(ks[1], (10,), 1 * 5 * 5),
        "conv2_w": uni(ks[2], (20, 10, 5, 5), 10 * 5 * 5),
        "conv2_b": uni(ks[3], (20,), 10 * 5 * 5),
        "fc1_w":   uni(ks[4], (50, 320), 320),
        "fc1_b":   uni(ks[5], (50,), 320),
        "fc2_w":   uni(ks[6], (10, 50), 50),
        "fc2_b":   uni(ks[7], (10,), 50),
    }


# ----------------------------------------------------------------------------
# Pure-JAX reference (eval-mode semantics) for a numerical sanity check.
# ----------------------------------------------------------------------------
def reference_forward(params, x):
    dn = ("NCHW", "OIHW", "NCHW")
    hp = lax.Precision.HIGHEST
    y = lax.conv_general_dilated(x, params["conv1_w"], (1, 1), "VALID",
                                 dimension_numbers=dn, precision=hp)
    y = y + params["conv1_b"][None, :, None, None]
    y = lax.reduce_window(y, -jnp.inf, lax.max, (1, 1, 2, 2), (1, 1, 2, 2), "VALID")
    y = jnp.maximum(y, 0.0)
    y = lax.conv_general_dilated(y, params["conv2_w"], (1, 1), "VALID",
                                 dimension_numbers=dn, precision=hp)
    y = y + params["conv2_b"][None, :, None, None]
    y = lax.reduce_window(y, -jnp.inf, lax.max, (1, 1, 2, 2), (1, 1, 2, 2), "VALID")
    y = jnp.maximum(y, 0.0)
    y = y.reshape(-1, 320)
    y = jnp.maximum(jnp.dot(y, params["fc1_w"].T, precision=hp) + params["fc1_b"], 0.0)
    y = jnp.dot(y, params["fc2_w"].T, precision=hp) + params["fc2_b"]
    return jax.nn.log_softmax(y, axis=-1)


if __name__ == "__main__":
    key = jax.random.PRNGKey(0)
    k_param, k_x = jax.random.split(key)
    params = init_params(k_param)
    packed = prepare_net_weights(params)

    # Input must be 28x28 so that the flattened feature size is 320 = 20*4*4.
    x = jax.random.normal(k_x, (2, 1, 28, 28), dtype=jnp.float32)

    out = jax.block_until_ready(net_forward(packed, x))
    assert out.shape == (2, 10)

    ref = jax.block_until_ready(reference_forward(params, x))
    max_err = float(jnp.max(jnp.abs(out - ref)))
    assert max_err < 5e-2, f"mismatch vs reference: max abs err = {max_err}"

    print("KERNEL_OK")
</pallas_src>

<mosaic_0001>
module attributes {stable_mosaic.version = 11 : i64} {
  func.func @_fused_net_kernel(%arg0: i32, %arg1: memref<8x28x28xbf16, #tpu.memory_space<vmem>>, %arg2: memref<5x28x240xbf16, #tpu.memory_space<vmem>>, %arg3: memref<1x240xf32, #tpu.memory_space<vmem>>, %arg4: memref<5x240x160xbf16, #tpu.memory_space<vmem>>, %arg5: memref<1x160xf32, #tpu.memory_space<vmem>>, %arg6: memref<640x50xbf16, #tpu.memory_space<vmem>>, %arg7: memref<1x50xf32, #tpu.memory_space<vmem>>, %arg8: memref<50x10xbf16, #tpu.memory_space<vmem>>, %arg9: memref<1x10xf32, #tpu.memory_space<vmem>>, %arg10: memref<8x10xf32, #tpu.memory_space<vmem>>) attributes {dimension_semantics = [#tpu.dimension_semantics<parallel>], iteration_bounds = array<i64: 1>, scalar_prefetch = 0 : i64, scratch_operands = 0 : i64, tpu.core_type = #tpu.core_type<tc>, window_params = [{transform_indices = @transform_0, window_bounds = array<i64: 8, 28, 28>}, {pipeline_mode = #tpu.pipeline_mode<synchronous>, transform_indices = @transform_1, window_bounds = array<i64: 5, 28, 240>}, {pipeline_mode = #tpu.pipeline_mode<synchronous>, transform_indices = @transform_2, window_bounds = array<i64: 1, 240>}, {pipeline_mode = #tpu.pipeline_mode<synchronous>, transform_indices = @transform_3, window_bounds = array<i64: 5, 240, 160>}, {pipeline_mode = #tpu.pipeline_mode<synchronous>, transform_indices = @transform_4, window_bounds = array<i64: 1, 160>}, {pipeline_mode = #tpu.pipeline_mode<synchronous>, transform_indices = @transform_5, window_bounds = array<i64: 640, 50>}, {pipeline_mode = #tpu.pipeline_mode<synchronous>, transform_indices = @transform_6, window_bounds = array<i64: 1, 50>}, {pipeline_mode = #tpu.pipeline_mode<synchronous>, transform_indices = @transform_7, window_bounds = array<i64: 50, 10>}, {pipeline_mode = #tpu.pipeline_mode<synchronous>, transform_indices = @transform_8, window_bounds = array<i64: 1, 10>}, {transform_indices = @transform_9, window_bounds = array<i64: 8, 10>}]} {
    %c0 = arith.constant 0 : index
    %c0_0 = arith.constant 0 : index
    %c0_1 = arith.constant 0 : index
    %0 = vector.load %arg1[%c0, %c0_0, %c0_1] : memref<8x28x28xbf16, #tpu.memory_space<vmem>>, vector<8x28x28xbf16>
    %1 = vector.extract_strided_slice %0 {offsets = [0, 0, 0], sizes = [8, 24, 28], strides = [1, 1, 1]} : vector<8x28x28xbf16> to vector<8x24x28xbf16>
    %2 = vector.shape_cast %1 : vector<8x24x28xbf16> to vector<192x28xbf16>
    %c0_2 = arith.constant 0 : index
    %c0_3 = arith.constant 0 : index
    %c0_4 = arith.constant 0 : index
    %3 = vector.load %arg2[%c0_2, %c0_3, %c0_4] : memref<5x28x240xbf16, #tpu.memory_space<vmem>>, vector<1x28x240xbf16>
    %4 = vector.shape_cast %3 : vector<1x28x240xbf16> to vector<28x240xbf16>
    %cst = arith.constant dense<0.000000e+00> : vector<192x240xf32>
    %5 = tpu.matmul %2, %4, %cst {dimension_numbers = #tpu.dot_dimension_numbers<[1], [0], [0], [1], [0, 0, 1, 1], [], []>} : vector<192x28xbf16>, vector<28x240xbf16>, vector<192x240xf32> -> vector<192x240xf32>
    %6 = vector.extract_strided_slice %0 {offsets = [0, 1, 0], sizes = [8, 24, 28], strides = [1, 1, 1]} : vector<8x28x28xbf16> to vector<8x24x28xbf16>
    %7 = vector.shape_cast %6 : vector<8x24x28xbf16> to vector<192x28xbf16>
    %c1 = arith.constant 1 : index
    %c0_5 = arith.constant 0 : index
    %c0_6 = arith.constant 0 : index
    %8 = vector.load %arg2[%c1, %c0_5, %c0_6] : memref<5x28x240xbf16, #tpu.memory_space<vmem>>, vector<1x28x240xbf16>
    %9 = vector.shape_cast %8 : vector<1x28x240xbf16> to vector<28x240xbf16>
    %cst_7 = arith.constant dense<0.000000e+00> : vector<192x240xf32>
    %10 = tpu.matmul %7, %9, %cst_7 {dimension_numbers = #tpu.dot_dimension_numbers<[1], [0], [0], [1], [0, 0, 1, 1], [], []>} : vector<192x28xbf16>, vector<28x240xbf16>, vector<192x240xf32> -> vector<192x240xf32>
    %11 = arith.addf %5, %10 : vector<192x240xf32>
    %12 = vector.extract_strided_slice %0 {offsets = [0, 2, 0], sizes = [8, 24, 28], strides = [1, 1, 1]} : vector<8x28x28xbf16> to vector<8x24x28xbf16>
    %13 = vector.shape_cast %12 : vector<8x24x28xbf16> to vector<192x28xbf16>
    %c2 = arith.constant 2 : index
    %c0_8 = arith.constant 0 : index
    %c0_9 = arith.constant 0 : index
    %14 = vector.load %arg2[%c2, %c0_8, %c0_9] : memref<5x28x240xbf16, #tpu.memory_space<vmem>>, vector<1x28x240xbf16>
    %15 = vector.shape_cast %14 : vector<1x28x240xbf16> to vector<28x240xbf16>
    %cst_10 = arith.constant dense<0.000000e+00> : vector<192x240xf32>
    %16 = tpu.matmul %13, %15, %cst_10 {dimension_numbers = #tpu.dot_dimension_numbers<[1], [0], [0], [1], [0, 0, 1, 1], [], []>} : vector<192x28xbf16>, vector<28x240xbf16>, vector<192x240xf32> -> vector<192x240xf32>
    %17 = arith.addf %11, %16 : vector<192x240xf32>
    %18 = vector.extract_strided_slice %0 {offsets = [0, 3, 0], sizes = [8, 24, 28], strides = [1, 1, 1]} : vector<8x28x28xbf16> to vector<8x24x28xbf16>
    %19 = vector.shape_cast %18 : vector<8x24x28xbf16> to vector<192x28xbf16>
    %c3 = arith.constant 3 : index
    %c0_11 = arith.constant 0 : index
    %c0_12 = arith.constant 0 : index
    %20 = vector.load %arg2[%c3, %c0_11, %c0_12] : memref<5x28x240xbf16, #tpu.memory_space<vmem>>, vector<1x28x240xbf16>
    %21 = vector.shape_cast %20 : vector<1x28x240xbf16> to vector<28x240xbf16>
    %cst_13 = arith.constant dense<0.000000e+00> : vector<192x240xf32>
    %22 = tpu.matmul %19, %21, %cst_13 {dimension_numbers = #tpu.dot_dimension_numbers<[1], [0], [0], [1], [0, 0, 1, 1], [], []>} : vector<192x28xbf16>, vector<28x240xbf16>, vector<192x240xf32> -> vector<192x240xf32>
    %23 = arith.addf %17, %22 : vector<192x240xf32>
    %24 = vector.extract_strided_slice %0 {offsets = [0, 4, 0], sizes = [8, 24, 28], strides = [1, 1, 1]} : vector<8x28x28xbf16> to vector<8x24x28xbf16>
    %25 = vector.shape_cast %24 : vector<8x24x28xbf16> to vector<192x28xbf16>
    %c4 = arith.constant 4 : index
    %c0_14 = arith.constant 0 : index
    %c0_15 = arith.constant 0 : index
    %26 = vector.load %arg2[%c4, %c0_14, %c0_15] : memref<5x28x240xbf16, #tpu.memory_space<vmem>>, vector<1x28x240xbf16>
    %27 = vector.shape_cast %26 : vector<1x28x240xbf16> to vector<28x240xbf16>
    %cst_16 = arith.constant dense<0.000000e+00> : vector<192x240xf32>
    %28 = tpu.matmul %25, %27, %cst_16 {dimension_numbers = #tpu.dot_dimension_numbers<[1], [0], [0], [1], [0, 0, 1, 1], [], []>} : vector<192x28xbf16>, vector<28x240xbf16>, vector<192x240xf32> -> vector<192x240xf32>
    %29 = arith.addf %23, %28 : vector<192x240xf32>
    %c0_17 = arith.constant 0 : index
    %c0_18 = arith.constant 0 : index
    %30 = vector.load %arg3[%c0_17, %c0_18] : memref<1x240xf32, #tpu.memory_space<vmem>>, vector<1x240xf32>
    %31 = vector.broadcast %30 : vector<1x240xf32> to vector<192x240xf32>
    %32 = arith.addf %29, %31 : vector<192x240xf32>
    %33 = vector.extract_strided_slice %32 {offsets = [0, 1], sizes = [192, 239], strides = [1, 1]} : vector<192x240xf32> to vector<192x239xf32>
    %34 = vector.extract_strided_slice %32 {offsets = [0, 0], sizes = [192, 1], strides = [1, 1]} : vector<192x240xf32> to vector<192x1xf32>
    %35 = tpu.concatenate %33, %34 in 1 : vector<192x239xf32>, vector<192x1xf32> -> vector<192x240xf32>
    %36 = arith.maximumf %32, %35 : vector<192x240xf32>
    %cst_19 = arith.constant 0.000000e+00 : f32
    %37 = vector.broadcast %cst_19 : f32 to vector<192x240xf32>
    %38 = arith.maximumf %36, %37 : vector<192x240xf32>
    %39 = vector.extract_strided_slice %38 {offsets = [1, 0], sizes = [191, 240], strides = [1, 1]} : vector<192x240xf32> to vector<191x240xf32>
    %40 = vector.extract_strided_slice %38 {offsets = [0, 0], sizes = [1, 240], strides = [1, 1]} : vector<192x240xf32> to vector<1x240xf32>
    %41 = tpu.concatenate %39, %40 in 0 : vector<191x240xf32>, vector<1x240xf32> -> vector<192x240xf32>
    %42 = arith.maximumf %38, %41 : vector<192x240xf32>
    %43 = vector.shape_cast %42 : vector<192x240xf32> to vector<8x24x240xf32>
    %44 = vector.extract_strided_slice %43 {offsets = [0, 0, 0], sizes = [8, 16, 240], strides = [1, 1, 1]} : vector<8x24x240xf32> to vector<8x16x240xf32>
    %45 = vector.shape_cast %44 : vector<8x16x240xf32> to vector<128x240xf32>
    %46 = arith.truncf %45 : vector<128x240xf32> to vector<128x240xbf16>
    %c0_20 = arith.constant 0 : index
    %c0_21 = arith.constant 0 : index
    %c0_22 = arith.constant 0 : index
    %47 = vector.load %arg4[%c0_20, %c0_21, %c0_22] : memref<5x240x160xbf16, #tpu.memory_space<vmem>>, vector<1x240x160xbf16>
    %48 = vector.shape_cast %47 : vector<1x240x160xbf16> to vector<240x160xbf16>
    %cst_23 = arith.constant dense<0.000000e+00> : vector<128x160xf32>
    %49 = tpu.matmul %46, %48, %cst_23 {dimension_numbers = #tpu.dot_dimension_numbers<[1], [0], [0], [1], [0, 0, 1, 1], [], []>} : vector<128x240xbf16>, vector<240x160xbf16>, vector<128x160xf32> -> vector<128x160xf32>
    %50 = vector.extract_strided_slice %43 {offsets = [0, 2, 0], sizes = [8, 16, 240], strides = [1, 1, 1]} : vector<8x24x240xf32> to vector<8x16x240xf32>
    %51 = vector.shape_cast %50 : vector<8x16x240xf32> to vector<128x240xf32>
    %52 = arith.truncf %51 : vector<128x240xf32> to vector<128x240xbf16>
    %c1_24 = arith.constant 1 : index
    %c0_25 = arith.constant 0 : index
    %c0_26 = arith.constant 0 : index
    %53 = vector.load %arg4[%c1_24, %c0_25, %c0_26] : memref<5x240x160xbf16, #tpu.memory_space<vmem>>, vector<1x240x160xbf16>
    %54 = vector.shape_cast %53 : vector<1x240x160xbf16> to vector<240x160xbf16>
    %cst_27 = arith.constant dense<0.000000e+00> : vector<128x160xf32>
    %55 = tpu.matmul %52, %54, %cst_27 {dimension_numbers = #tpu.dot_dimension_numbers<[1], [0], [0], [1], [0, 0, 1, 1], [], []>} : vector<128x240xbf16>, vector<240x160xbf16>, vector<128x160xf32> -> vector<128x160xf32>
    %56 = arith.addf %49, %55 : vector<128x160xf32>
    %57 = vector.extract_strided_slice %43 {offsets = [0, 4, 0], sizes = [8, 16, 240], strides = [1, 1, 1]} : vector<8x24x240xf32> to vector<8x16x240xf32>
    %58 = vector.shape_cast %57 : vector<8x16x240xf32> to vector<128x240xf32>
    %59 = arith.truncf %58 : vector<128x240xf32> to vector<128x240xbf16>
    %c2_28 = arith.constant 2 : index
    %c0_29 = arith.constant 0 : index
    %c0_30 = arith.constant 0 : index
    %60 = vector.load %arg4[%c2_28, %c0_29, %c0_30] : memref<5x240x160xbf16, #tpu.memory_space<vmem>>, vector<1x240x160xbf16>
    %61 = vector.shape_cast %60 : vector<1x240x160xbf16> to vector<240x160xbf16>
    %cst_31 = arith.constant dense<0.000000e+00> : vector<128x160xf32>
    %62 = tpu.matmul %59, %61, %cst_31 {dimension_numbers = #tpu.dot_dimension_numbers<[1], [0], [0], [1], [0, 0, 1, 1], [], []>} : vector<128x240xbf16>, vector<240x160xbf16>, vector<128x160xf32> -> vector<128x160xf32>
    %63 = arith.addf %56, %62 : vector<128x160xf32>
    %64 = vector.extract_strided_slice %43 {offsets = [0, 6, 0], sizes = [8, 16, 240], strides = [1, 1, 1]} : vector<8x24x240xf32> to vector<8x16x240xf32>
    %65 = vector.shape_cast %64 : vector<8x16x240xf32> to vector<128x240xf32>
    %66 = arith.truncf %65 : vector<128x240xf32> to vector<128x240xbf16>
    %c3_32 = arith.constant 3 : index
    %c0_33 = arith.constant 0 : index
    %c0_34 = arith.constant 0 : index
    %67 = vector.load %arg4[%c3_32, %c0_33, %c0_34] : memref<5x240x160xbf16, #tpu.memory_space<vmem>>, vector<1x240x160xbf16>
    %68 = vector.shape_cast %67 : vector<1x240x160xbf16> to vector<240x160xbf16>
    %cst_35 = arith.constant dense<0.000000e+00> : vector<128x160xf32>
    %69 = tpu.matmul %66, %68, %cst_35 {dimension_numbers = #tpu.dot_dimension_numbers<[1], [0], [0], [1], [0, 0, 1, 1], [], []>} : vector<128x240xbf16>, vector<240x160xbf16>, vector<128x160xf32> -> vector<128x160xf32>
    %70 = arith.addf %63, %69 : vector<128x160xf32>
    %71 = vector.extract_strided_slice %43 {offsets = [0, 8, 0], sizes = [8, 16, 240], strides = [1, 1, 1]} : vector<8x24x240xf32> to vector<8x16x240xf32>
    %72 = vector.shape_cast %71 : vector<8x16x240xf32> to vector<128x240xf32>
    %73 = arith.truncf %72 : vector<128x240xf32> to vector<128x240xbf16>
    %c4_36 = arith.constant 4 : index
    %c0_37 = arith.constant 0 : index
    %c0_38 = arith.constant 0 : index
    %74 = vector.load %arg4[%c4_36, %c0_37, %c0_38] : memref<5x240x160xbf16, #tpu.memory_space<vmem>>, vector<1x240x160xbf16>
    %75 = vector.shape_cast %74 : vector<1x240x160xbf16> to vector<240x160xbf16>
    %cst_39 = arith.constant dense<0.000000e+00> : vector<128x160xf32>
    %76 = tpu.matmul %73, %75, %cst_39 {dimension_numbers = #tpu.dot_dimension_numbers<[1], [0], [0], [1], [0, 0, 1, 1], [], []>} : vector<128x240xbf16>, vector<240x160xbf16>, vector<128x160xf32> -> vector<128x160xf32>
    %77 = arith.addf %70, %76 : vector<128x160xf32>
    %c0_40 = arith.constant 0 : index
    %c0_41 = arith.constant 0 : index
    %78 = vector.load %arg5[%c0_40, %c0_41] : memref<1x160xf32, #tpu.memory_space<vmem>>, vector<1x160xf32>
    %79 = vector.broadcast %78 : vector<1x160xf32> to vector<128x160xf32>
    %80 = arith.addf %77, %79 : vector<128x160xf32>
    %81 = vector.extract_strided_slice %80 {offsets = [0, 1], sizes = [128, 159], strides = [1, 1]} : vector<128x160xf32> to vector<128x159xf32>
    %82 = vector.extract_strided_slice %80 {offsets = [0, 0], sizes = [128, 1], strides = [1, 1]} : vector<128x160xf32> to vector<128x1xf32>
    %83 = tpu.concatenate %81, %82 in 1 : vector<128x159xf32>, vector<128x1xf32> -> vector<128x160xf32>
    %84 = arith.maximumf %80, %83 : vector<128x160xf32>
    %cst_42 = arith.constant 0.000000e+00 : f32
    %85 = vector.broadcast %cst_42 : f32 to vector<128x160xf32>
    %86 = arith.maximumf %84, %85 : vector<128x160xf32>
    %87 = vector.extract_strided_slice %86 {offsets = [2, 0], sizes = [126, 160], strides = [1, 1]} : vector<128x160xf32> to vector<126x160xf32>
    %88 = vector.extract_strided_slice %86 {offsets = [0, 0], sizes = [2, 160], strides = [1, 1]} : vector<128x160xf32> to vector<2x160xf32>
    %89 = tpu.concatenate %87, %88 in 0 : vector<126x160xf32>, vector<2x160xf32> -> vector<128x160xf32>
    %90 = arith.maximumf %86, %89 : vector<128x160xf32>
    %91 = vector.shape_cast %90 : vector<128x160xf32> to vector<8x16x160xf32>
    %92 = vector.extract_strided_slice %91 {offsets = [0, 0, 0], sizes = [8, 1, 160], strides = [1, 1, 1]} : vector<8x16x160xf32> to vector<8x1x160xf32>
    %93 = vector.shape_cast %92 : vector<8x1x160xf32> to vector<8x160xf32>
    %94 = vector.extract_strided_slice %91 {offsets = [0, 4, 0], sizes = [8, 1, 160], strides = [1, 1, 1]} : vector<8x16x160xf32> to vector<8x1x160xf32>
    %95 = vector.shape_cast %94 : vector<8x1x160xf32> to vector<8x160xf32>
    %96 = vector.extract_strided_slice %91 {offsets = [0, 8, 0], sizes = [8, 1, 160], strides = [1, 1, 1]} : vector<8x16x160xf32> to vector<8x1x160xf32>
    %97 = vector.shape_cast %96 : vector<8x1x160xf32> to vector<8x160xf32>
    %98 = vector.extract_strided_slice %91 {offsets = [0, 12, 0], sizes = [8, 1, 160], strides = [1, 1, 1]} : vector<8x16x160xf32> to vector<8x1x160xf32>
    %99 = vector.shape_cast %98 : vector<8x1x160xf32> to vector<8x160xf32>
    %100 = tpu.concatenate %93, %95, %97, %99 in 1 : vector<8x160xf32>, vector<8x160xf32>, vector<8x160xf32>, vector<8x160xf32> -> vector<8x640xf32>
    %101 = arith.truncf %100 : vector<8x640xf32> to vector<8x640xbf16>
    %c0_43 = arith.constant 0 : index
    %c0_44 = arith.constant 0 : index
    %102 = vector.load %arg6[%c0_43, %c0_44] : memref<640x50xbf16, #tpu.memory_space<vmem>>, vector<640x50xbf16>
    %cst_45 = arith.constant dense<0.000000e+00> : vector<8x50xf32>
    %103 = tpu.matmul %101, %102, %cst_45 {dimension_numbers = #tpu.dot_dimension_numbers<[1], [0], [0], [1], [0, 0, 1, 1], [], []>} : vector<8x640xbf16>, vector<640x50xbf16>, vector<8x50xf32> -> vector<8x50xf32>
    %c0_46 = arith.constant 0 : index
    %c0_47 = arith.constant 0 : index
    %104 = vector.load %arg7[%c0_46, %c0_47] : memref<1x50xf32, #tpu.memory_space<vmem>>, vector<1x50xf32>
    %105 = vector.broadcast %104 : vector<1x50xf32> to vector<8x50xf32>
    %106 = arith.addf %103, %105 : vector<8x50xf32>
    %cst_48 = arith.constant 0.000000e+00 : f32
    %107 = vector.broadcast %cst_48 : f32 to vector<8x50xf32>
    %108 = arith.maximumf %106, %107 : vector<8x50xf32>
    %109 = arith.truncf %108 : vector<8x50xf32> to vector<8x50xbf16>
    %c0_49 = arith.constant 0 : index
    %c0_50 = arith.constant 0 : index
    %110 = vector.load %arg8[%c0_49, %c0_50] : memref<50x10xbf16, #tpu.memory_space<vmem>>, vector<50x10xbf16>
    %cst_51 = arith.constant dense<0.000000e+00> : vector<8x10xf32>
    %111 = tpu.matmul %109, %110, %cst_51 {dimension_numbers = #tpu.dot_dimension_numbers<[1], [0], [0], [1], [0, 0, 1, 1], [], []>} : vector<8x50xbf16>, vector<50x10xbf16>, vector<8x10xf32> -> vector<8x10xf32>
    %c0_52 = arith.constant 0 : index
    %c0_53 = arith.constant 0 : index
    %112 = vector.load %arg9[%c0_52, %c0_53] : memref<1x10xf32, #tpu.memory_space<vmem>>, vector<1x10xf32>
    %113 = vector.broadcast %112 : vector<1x10xf32> to vector<8x10xf32>
    %114 = arith.addf %111, %113 : vector<8x10xf32>
    %cst_54 = arith.constant dense<0xFF800000> : vector<8xf32>
    %115 = vector.multi_reduction <maximumf>, %114, %cst_54 [1] : vector<8x10xf32> to vector<8xf32>
    %116 = vector.shape_cast %115 : vector<8xf32> to vector<8x1xf32>
    %117 = vector.broadcast %116 : vector<8x1xf32> to vector<8x10xf32>
    %118 = arith.subf %114, %117 : vector<8x10xf32>
    %119 = math.exp %118 : vector<8x10xf32>
    %cst_55 = arith.constant dense<0.000000e+00> : vector<8xf32>
    %120 = vector.multi_reduction <add>, %119, %cst_55 [1] : vector<8x10xf32> to vector<8xf32>
    %121 = vector.shape_cast %120 : vector<8xf32> to vector<8x1xf32>
    %122 = math.log %121 : vector<8x1xf32>
    %123 = vector.broadcast %122 : vector<8x1xf32> to vector<8x10xf32>
    %124 = arith.subf %118, %123 : vector<8x10xf32>
    %c0_56 = arith.constant 0 : index
    %c0_57 = arith.constant 0 : index
    %125 = vector.load %arg10[%c0_56, %c0_57] : memref<8x10xf32, #tpu.memory_space<vmem>>, vector<8x10xf32>
    tpu.vector_store %arg10[%c0_56, %c0_57], %124 {strides = array<i32>} : memref<8x10xf32, #tpu.memory_space<vmem>>, vector<8x10xf32>,
    return
  }
  func.func @transform_0(%arg0: i32) -> (i32, i32, i32) {
    %c0_i32 = arith.constant 0 : i32
    %c0_i32_0 = arith.constant 0 : i32
    %c0_i32_1 = arith.constant 0 : i32
    return %arg0, %c0_i32, %c0_i32_0 : i32, i32, i32
  }
  func.func @transform_1(%arg0: i32) -> (i32, i32, i32) {
    %c0_i32 = arith.constant 0 : i32
    %c0_i32_0 = arith.constant 0 : i32
    %c0_i32_1 = arith.constant 0 : i32
    %c0_i32_2 = arith.constant 0 : i32
    return %c0_i32, %c0_i32_0, %c0_i32_1 : i32, i32, i32
  }
  func.func @transform_2(%arg0: i32) -> (i32, i32) {
    %c0_i32 = arith.constant 0 : i32
    %c0_i32_0 = arith.constant 0 : i32
    %c0_i32_1 = arith.constant 0 : i32
    return %c0_i32, %c0_i32_0 : i32, i32
  }
  func.func @transform_3(%arg0: i32) -> (i32, i32, i32) {
    %c0_i32 = arith.constant 0 : i32
    %c0_i32_0 = arith.constant 0 : i32
    %c0_i32_1 = arith.constant 0 : i32
    %c0_i32_2 = arith.constant 0 : i32
    return %c0_i32, %c0_i32_0, %c0_i32_1 : i32, i32, i32
  }
  func.func @transform_4(%arg0: i32) -> (i32, i32) {
    %c0_i32 = arith.constant 0 : i32
    %c0_i32_0 = arith.constant 0 : i32
    %c0_i32_1 = arith.constant 0 : i32
    return %c0_i32, %c0_i32_0 : i32, i32
  }
  func.func @transform_5(%arg0: i32) -> (i32, i32) {
    %c0_i32 = arith.constant 0 : i32
    %c0_i32_0 = arith.constant 0 : i32
    %c0_i32_1 = arith.constant 0 : i32
    return %c0_i32, %c0_i32_0 : i32, i32
  }
  func.func @transform_6(%arg0: i32) -> (i32, i32) {
    %c0_i32 = arith.constant 0 : i32
    %c0_i32_0 = arith.constant 0 : i32
    %c0_i32_1 = arith.constant 0 : i32
    return %c0_i32, %c0_i32_0 : i32, i32
  }
  func.func @transform_7(%arg0: i32) -> (i32, i32) {
    %c0_i32 = arith.constant 0 : i32
    %c0_i32_0 = arith.constant 0 : i32
    %c0_i32_1 = arith.constant 0 : i32
    return %c0_i32, %c0_i32_0 : i32, i32
  }
  func.func @transform_8(%arg0: i32) -> (i32, i32) {
    %c0_i32 = arith.constant 0 : i32
    %c0_i32_0 = arith.constant 0 : i32
    %c0_i32_1 = arith.constant 0 : i32
    return %c0_i32, %c0_i32_0 : i32, i32
  }
  func.func @transform_9(%arg0: i32) -> (i32, i32) {
    %c0_i32 = arith.constant 0 : i32
    %c0_i32_0 = arith.constant 0 : i32
    return %arg0, %c0_i32 : i32, i32
  }
}

</mosaic_0001>

<llo_original>
// kernel: _net_forward.1
$region0: #{_net_forward.1}
  #allocation0 [shape = 'u32[]', space=smem, size = 0x4, offset = 0x4, fixed_abs, tag = 'smem constant byte address 0x4 - core index']
  #allocation1 [shape = 'u32[144,128]{1,0:T(1,128)}', space=vmem, size = 0x12000, scoped, tag = 'internal scratch']
  %s0 = inlined_call_operand.vmem [shape: bf16[8,28,28], index: 0, kind: input, shape index: {}]
  %s1 = inlined_call_operand.vmem [shape: bf16[5,28,240], index: 1, kind: input, shape index: {}]
  %s2 = inlined_call_operand.vmem [shape: f32[1,240], index: 2, kind: input, shape index: {}]
  %s3 = inlined_call_operand.vmem [shape: bf16[5,240,160], index: 3, kind: input, shape index: {}]
  %s4 = inlined_call_operand.vmem [shape: f32[1,160], index: 4, kind: input, shape index: {}]
  %s5 = inlined_call_operand.vmem [shape: bf16[640,50], index: 5, kind: input, shape index: {}]
  %s6 = inlined_call_operand.vmem [shape: f32[1,50], index: 6, kind: input, shape index: {}]
  %s7 = inlined_call_operand.vmem [shape: bf16[50,10], index: 7, kind: input, shape index: {}]
  %s8 = inlined_call_operand.vmem [shape: f32[1,10], index: 8, kind: input, shape index: {}]
  %s9 = inlined_call_operand.vmem [shape: f32[8,10], index: 9, kind: output, shape index: {}]
  %s10 = sld [smem:[#allocation0]]
  $region46: #{_net_forward.1} parent=0
    _
  %s12 = ssub.s32 1, %s10
  %s13 = scalar_select 0, %s12, %s10
  // Predicated region
  $region2: #{_net_forward.1} parent=0 // pred_check
    _
  $region3: #{_net_forward.1} parent=0 // pred_check_branch
    %15 = sbr.rel (0) target = $region5
  $region4: #{_net_forward.1} parent=0 // pred_region
    _
  $region5: #{_net_forward.1} parent=0 // pred_fallthru
    _
  // Predicated region
  $region6: #{_net_forward.1} parent=0 // pred_check
    _
  $region7: #{_net_forward.1} parent=0 // pred_check_branch
    %17 = sbr.rel (0) target = $region9
  $region8: #{_net_forward.1} parent=0 // pred_region
    _
  $region9: #{_net_forward.1} parent=0 // pred_fallthru
    _
  // Predicated region
  $region10: #{_net_forward.1} parent=0 // pred_check
    _
  $region11: #{_net_forward.1} parent=0 // pred_check_branch
    %19 = sbr.rel (0) target = $region13
  $region12: #{_net_forward.1} parent=0 // pred_region
    _
  $region13: #{_net_forward.1} parent=0 // pred_fallthru
    _
  // Predicated region
  $region14: #{_net_forward.1} parent=0 // pred_check
    _
  $region15: #{_net_forward.1} parent=0 // pred_check_branch
    %21 = sbr.rel (0) target = $region17
  $region16: #{_net_forward.1} parent=0 // pred_region
    _
  $region17: #{_net_forward.1} parent=0 // pred_fallthru
    _
  // Predicated region
  $region18: #{_net_forward.1} parent=0 // pred_check
    _
  $region19: #{_net_forward.1} parent=0 // pred_check_branch
    %23 = sbr.rel (0) target = $region21
  $region20: #{_net_forward.1} parent=0 // pred_region
    _
  $region21: #{_net_forward.1} parent=0 // pred_fallthru
    _
  // Predicated region
  $region22: #{_net_forward.1} parent=0 // pred_check
    _
  $region23: #{_net_forward.1} parent=0 // pred_check_branch
    %25 = sbr.rel (0) target = $region25
  $region24: #{_net_forward.1} parent=0 // pred_region
    _
  $region25: #{_net_forward.1} parent=0 // pred_fallthru
    _
  // Predicated region
  $region26: #{_net_forward.1} parent=0 // pred_check
    _
  $region27: #{_net_forward.1} parent=0 // pred_check_branch
    %27 = sbr.rel (0) target = $region29
  $region28: #{_net_forward.1} parent=0 // pred_region
    _
  $region29: #{_net_forward.1} parent=0 // pred_fallthru
    _
  // Predicated region
  $region30: #{_net_forward.1} parent=0 // pred_check
    _
  $region31: #{_net_forward.1} parent=0 // pred_check_branch
    %29 = sbr.rel (0) target = $region33
  $region32: #{_net_forward.1} parent=0 // pred_region
    _
  $region33: #{_net_forward.1} parent=0 // pred_fallthru
    _
  // Predicated region
  $region34: #{_net_forward.1} parent=0 // pred_check
    _
  $region35: #{_net_forward.1} parent=0 // pred_check_branch
    %31 = sbr.rel (0) target = $region37
  $region36: #{_net_forward.1} parent=0 // pred_region
    _
  $region37: #{_net_forward.1} parent=0 // pred_fallthru
    _
  %v33 = vld [vmem:[%s0] sm:$0xf]
  %v34 = vld [vmem:[%s0 + $0x4] sm:$0xf]
  %v35 = vld [vmem:[%s0 + $0x8] sm:$0xf]
  %v36 = vld [vmem:[%s0 + $0xc] sm:$0x3]
  %v37 = vld [vmem:[%s0 + $0x10] sm:$0xf]
  %v38 = vld [vmem:[%s0 + $0x14] sm:$0xf]
  %v39 = vld [vmem:[%s0 + $0x18] sm:$0xf]
  %v40 = vld [vmem:[%s0 + $0x1c] sm:$0x3]
  %v41 = vld [vmem:[%s0 + $0x20] sm:$0xf]
  %v42 = vld [vmem:[%s0 + $0x24] sm:$0xf]
  %v43 = vld [vmem:[%s0 + $0x28] sm:$0xf]
  %v44 = vld [vmem:[%s0 + $0x2c] sm:$0x3]
  %v45 = vld [vmem:[%s0 + $0x30] sm:$0xf]
  %v46 = vld [vmem:[%s0 + $0x34] sm:$0xf]
  %v47 = vld [vmem:[%s0 + $0x38] sm:$0xf]
  %v48 = vld [vmem:[%s0 + $0x3c] sm:$0x3]
  %v49 = vld [vmem:[%s0 + $0x40] sm:$0xf]
  %v50 = vld [vmem:[%s0 + $0x44] sm:$0xf]
  %v51 = vld [vmem:[%s0 + $0x48] sm:$0xf]
  %v52 = vld [vmem:[%s0 + $0x4c] sm:$0x3]
  %v53 = vld [vmem:[%s0 + $0x50] sm:$0xf]
  %v54 = vld [vmem:[%s0 + $0x54] sm:$0xf]
  %v55 = vld [vmem:[%s0 + $0x58] sm:$0xf]
  %v56 = vld [vmem:[%s0 + $0x5c] sm:$0x3]
  %v57 = vld [vmem:[%s0 + $0x60] sm:$0xf]
  %v58 = vld [vmem:[%s0 + $0x64] sm:$0xf]
  %v59 = vld [vmem:[%s0 + $0x68] sm:$0xf]
  %v60 = vld [vmem:[%s0 + $0x6c] sm:$0x3]
  %v61 = vld [vmem:[%s0 + $0x70] sm:$0xf]
  %v62 = vld [vmem:[%s0 + $0x74] sm:$0xf]
  %v63 = vld [vmem:[%s0 + $0x78] sm:$0xf]
  %v64 = vld [vmem:[%s0 + $0x7c] sm:$0x3]
  %v65 = vld [vmem:[%s1] sm:$0xff]
  %v66 = vld [vmem:[%s1 + $0x8] sm:$0xff]
  %v67 = vld [vmem:[%s1 + $0x10] sm:$0xff]
  %v68 = vld [vmem:[%s1 + $0x18] sm:$0x33]
  %vm69 = vsmask.f32 3328
  %vm70 = vsmask.f32 7440
  %vm71 = vmor %vm69, %vm70
  %v73 = vshrl.u32 %v33, 16
  %v75 = vrot.slane %v73, 4
  %v76 = vshll.u32 %v33, 16
  %v78 = vrot.slane %v76, 5
  %v79 = vor.u32 %v75, %v78
  %v80 = vrot.slane %v79, 4
  %v82 = vshll.u32 %v34, 16
  %v84 = vrot.slane %v82, 5
  %v85 = vsel %vm71, %v80, %v84
  %v86 = vshrl.u32 %v34, 16
  %v88 = vrot.slane %v86, 4
  %v89 = vor.u32 %v88, %v84
  %v90 = vrot.slane %v89, 4
  %v92 = vshll.u32 %v35, 16
  %v94 = vrot.slane %v92, 5
  %v95 = vsel %vm71, %v90, %v94
  %v96 = vshrl.u32 %v35, 16
  %v98 = vrot.slane %v96, 4
  %v99 = vor.u32 %v98, %v94
  %v100 = vrot.slane %v99, 4
  %v102 = vshll.u32 %v36, 16
  %v104 = vrot.slane %v102, 5
  %v105 = vsel %vm71, %v100, %v104
  %v107 = vshrl.u32 %v37, 16
  %v109 = vrot.slane %v107, 4
  %v110 = vshll.u32 %v37, 16
  %v112 = vrot.slane %v110, 5
  %v113 = vor.u32 %v109, %v112
  %v114 = vrot.slane %v113, 4
  %v116 = vshll.u32 %v38, 16
  %v118 = vrot.slane %v116, 5
  %v119 = vsel %vm71, %v114, %v118
  %v120 = vshrl.u32 %v38, 16
  %v122 = vrot.slane %v120, 4
  %v123 = vor.u32 %v122, %v118
  %v124 = vrot.slane %v123, 4
  %v126 = vshll.u32 %v39, 16
  %v128 = vrot.slane %v126, 5
  %v129 = vsel %vm71, %v124, %v128
  %v130 = vshrl.u32 %v39, 16
  %v132 = vrot.slane %v130, 4
  %v133 = vor.u32 %v132, %v128
  %v134 = vrot.slane %v133, 4
  %v136 = vshll.u32 %v40, 16
  %v138 = vrot.slane %v136, 5
  %v139 = vsel %vm71, %v134, %v138
  %v141 = vshrl.u32 %v41, 16
  %v143 = vrot.slane %v141, 4
  %v144 = vshll.u32 %v41, 16
  %v146 = vrot.slane %v144, 5
  %v147 = vor.u32 %v143, %v146
  %v148 = vrot.slane %v147, 4
  %v150 = vshll.u32 %v42, 16
  %v152 = vrot.slane %v150, 5
  %v153 = vsel %vm71, %v148, %v152
  %v154 = vshrl.u32 %v42, 16
  %v156 = vrot.slane %v154, 4
  %v157 = vor.u32 %v156, %v152
  %v158 = vrot.slane %v157, 4
  %v160 = vshll.u32 %v43, 16
  %v162 = vrot.slane %v160, 5
  %v163 = vsel %vm71, %v158, %v162
  %v164 = vshrl.u32 %v43, 16
  %v166 = vrot.slane %v164, 4
  %v167 = vor.u32 %v166, %v162
  %v168 = vrot.slane %v167, 4
  %v170 = vshll.u32 %v44, 16
  %v172 = vrot.slane %v170, 5
  %v173 = vsel %vm71, %v168, %v172
  %v175 = vshrl.u32 %v45, 16
  %v177 = vrot.slane %v175, 4
  %v178 = vshll.u32 %v45, 16
  %v180 = vrot.slane %v178, 5
  %v181 = vor.u32 %v177, %v180
  %v182 = vrot.slane %v181, 4
  %v184 = vshll.u32 %v46, 16
  %v186 = vrot.slane %v184, 5
  %v187 = vsel %vm71, %v182, %v186
  %v188 = vshrl.u32 %v46, 16
  %v190 = vrot.slane %v188, 4
  %v191 = vor.u32 %v190, %v186
  %v192 = vrot.slane %v191, 4
  %v194 = vshll.u32 %v47, 16
  %v196 = vrot.slane %v194, 5
  %v197 = vsel %vm71, %v192, %v196
  %v198 = vshrl.u32 %v47, 16
  %v200 = vrot.slane %v198, 4
  %v201 = vor.u32 %v200, %v196
  %v202 = vrot.slane %v201, 4
  %v204 = vshll.u32 %v48, 16
  %v206 = vrot.slane %v204, 5
  %v207 = vsel %vm71, %v202, %v206
  %v209 = vshrl.u32 %v49, 16
  %v211 = vrot.slane %v209, 4
  %v212 = vshll.u32 %v49, 16
  %v214 = vrot.slane %v212, 5
  %v215 = vor.u32 %v211, %v214
  %v216 = vrot.slane %v215, 4
  %v218 = vshll.u32 %v50, 16
  %v220 = vrot.slane %v218, 5
  %v221 = vsel %vm71, %v216, %v220
  %v222 = vshrl.u32 %v50, 16
  %v224 = vrot.slane %v222, 4
  %v225 = vor.u32 %v224, %v220
  %v226 = vrot.slane %v225, 4
  %v228 = vshll.u32 %v51, 16
  %v230 = vrot.slane %v228, 5
  %v231 = vsel %vm71, %v226, %v230
  %v232 = vshrl.u32 %v51, 16
  %v234 = vrot.slane %v232, 4
  %v235 = vor.u32 %v234, %v230
  %v236 = vrot.slane %v235, 4
  %v238 = vshll.u32 %v52, 16
  %v240 = vrot.slane %v238, 5
  %v241 = vsel %vm71, %v236, %v240
  %v243 = vshrl.u32 %v53, 16
  %v245 = vrot.slane %v243, 4
  %v246 = vshll.u32 %v53, 16
  %v248 = vrot.slane %v246, 5
  %v249 = vor.u32 %v245, %v248
  %v250 = vrot.slane %v249, 4
  %v252 = vshll.u32 %v54, 16
  %v254 = vrot.slane %v252, 5
  %v255 = vsel %vm71, %v250, %v254
  %v256 = vshrl.u32 %v54, 16
  %v258 = vrot.slane %v256, 4
  %v259 = vor.u32 %v258, %v254
  %v260 = vrot.slane %v259, 4
  %v262 = vshll.u32 %v55, 16
  %v264 = vrot.slane %v262, 5
  %v265 = vsel %vm71, %v260, %v264
  %v266 = vshrl.u32 %v55, 16
  %v268 = vrot.slane %v266, 4
  %v269 = vor.u32 %v268, %v264
  %v270 = vrot.slane %v269, 4
  %v272 = vshll.u32 %v56, 16
  %v274 = vrot.slane %v272, 5
  %v275 = vsel %vm71, %v270, %v274
  %v277 = vshrl.u32 %v57, 16
  %v279 = vrot.slane %v277, 4
  %v280 = vshll.u32 %v57, 16
  %v282 = vrot.slane %v280, 5
  %v283 = vor.u32 %v279, %v282
  %v284 = vrot.slane %v283, 4
  %v286 = vshll.u32 %v58, 16
  %v288 = vrot.slane %v286, 5
  %v289 = vsel %vm71, %v284, %v288
  %v290 = vshrl.u32 %v58, 16
  %v292 = vrot.slane %v290, 4
  %v293 = vor.u32 %v292, %v288
  %v294 = vrot.slane %v293, 4
  %v296 = vshll.u32 %v59, 16
  %v298 = vrot.slane %v296, 5
  %v299 = vsel %vm71, %v294, %v298
  %v300 = vshrl.u32 %v59, 16
  %v302 = vrot.slane %v300, 4
  %v303 = vor.u32 %v302, %v298
  %v304 = vrot.slane %v303, 4
  %v306 = vshll.u32 %v60, 16
  %v308 = vrot.slane %v306, 5
  %v309 = vsel %vm71, %v304, %v308
  %v311 = vshrl.u32 %v61, 16
  %v313 = vrot.slane %v311, 4
  %v314 = vshll.u32 %v61, 16
  %v316 = vrot.slane %v314, 5
  %v317 = vor.u32 %v313, %v316
  %v318 = vrot.slane %v317, 4
  %v320 = vshll.u32 %v62, 16
  %v322 = vrot.slane %v320, 5
  %v323 = vsel %vm71, %v318, %v322
  %v324 = vshrl.u32 %v62, 16
  %v326 = vrot.slane %v324, 4
  %v327 = vor.u32 %v326, %v322
  %v328 = vrot.slane %v327, 4
  %v330 = vshll.u32 %v63, 16
  %v332 = vrot.slane %v330, 5
  %v333 = vsel %vm71, %v328, %v332
  %v334 = vshrl.u32 %v63, 16
  %v336 = vrot.slane %v334, 4
  %v337 = vor.u32 %v336, %v332
  %v338 = vrot.slane %v337, 4
  %v340 = vshll.u32 %v64, 16
  %v342 = vrot.slane %v340, 5
  %v343 = vsel %vm71, %v338, %v342
  %s344 = scalar_lea.vmem %s1, 32
  %v345 = vld [vmem:[%s344] sm:$0xff]
  %v346 = vld [vmem:[%s344 + $0x8] sm:$0xff]
  %v347 = vld [vmem:[%s344 + $0x10] sm:$0xff]
  %v348 = vld [vmem:[%s344 + $0x18] sm:$0x33]
  %v349 = vunpack.c.l.b16 %v85
  %v350 = vunpack.c.l.b16 %v95
  %v351 = vunpack.c.l.b16 %v105
  %v352 = vunpack.c.l.b16 %v119
  %v353 = vunpack.c.l.b16 %v129
  %v354 = vunpack.c.l.b16 %v139
  %v355 = vunpack.c.l.b16 %v153
  %v356 = vunpack.c.l.b16 %v163
  %v357 = vunpack.c.l.b16 %v173
  %v358 = vunpack.c.l.b16 %v187
  %v359 = vunpack.c.l.b16 %v197
  %v360 = vunpack.c.l.b16 %v207
  %v361 = vunpack.c.l.b16 %v221
  %v362 = vunpack.c.l.b16 %v231
  %v363 = vunpack.c.l.b16 %v241
  %v364 = vunpack.c.l.b16 %v255
  %v365 = vunpack.c.l.b16 %v265
  %v366 = vunpack.c.l.b16 %v275
  %v367 = vunpack.c.l.b16 %v289
  %v368 = vunpack.c.l.b16 %v299
  %v369 = vunpack.c.l.b16 %v309
  %v370 = vunpack.c.l.b16 %v323
  %v371 = vunpack.c.l.b16 %v333
  %v372 = vunpack.c.l.b16 %v343
  %v373 = vpack.c.b16 %v350, %v349
  %v374 = vpack.c.b16 %v352, %v351
  %v375 = vpack.c.b16 %v354, %v353
  %v376 = vpack.c.b16 %v356, %v355
  %v377 = vpack.c.b16 %v358, %v357
  %v378 = vpack.c.b16 %v360, %v359
  %v379 = vpack.c.b16 %v362, %v361
  %v380 = vpack.c.b16 %v364, %v363
  %v381 = vpack.c.b16 %v366, %v365
  %v382 = vpack.c.b16 %v368, %v367
  %v383 = vpack.c.b16 %v370, %v369
  %v384 = vpack.c.b16 %v372, %v371
  %v389 = vunpack.c.l.b16 %v345
  %v390 = vunpack.c.h.b16 %v345
  %v391 = vunpack.c.l.b16 %v346
  %v392 = vunpack.c.h.b16 %v346
  %v393 = vunpack.c.l.b16 %v347
  %v394 = vunpack.c.h.b16 %v347
  %v395 = vunpack.c.l.b16 %v348
  %v396 = vunpack.c.h.b16 %v348
  %v397 = vpack.c.b16 %v391, %v389
  %v398 = vpack.c.b16 %v392, %v390
  %v399 = vpack.c.b16 %v395, %v393
  %v400 = vpack.c.b16 %v396, %v394
  %vm403 = vcmask 228352
  %v405 = vsel %vm403, %v373, 0
  %v408 = vsel %vm403, %v374, 0
  %v411 = vsel %vm403, %v375, 0
  %v414 = vsel %vm403, %v376, 0
  %v417 = vsel %vm403, %v377, 0
  %v420 = vsel %vm403, %v378, 0
  %v423 = vsel %vm403, %v379, 0
  %v426 = vsel %vm403, %v380, 0
  %v429 = vsel %vm403, %v381, 0
  %v432 = vsel %vm403, %v382, 0
  %v435 = vsel %vm403, %v383, 0
  %v438 = vsel %vm403, %v384, 0
  %vm440 = vcmask 1045504
  %v442 = vsel %vm440, %v399, 0
  %v445 = vsel %vm440, %v400, 0
  %447 = vmatprep.subr.bf16.mxu0 %v398
  %448 = vmatpush1.bf16.msra.mxu0 %v397
  %449 = vmatprep.subr.bf16.mxu0 %v445
  %450 = vmatpush1.bf16.msra.mxu0 %v442
  %451 = vmatprep.subr.bf16.mxu0 0
  %452 = vmatpush1.bf16.msra.mxu0 0
  %453 = vmatprep.subr.bf16.mxu0 0
  %454 = vmatpush1.bf16.msra.mxu0 0
  %455 = vmatprep.subr.bf16.mxu0 0
  %456 = vmatpush1.bf16.msra.mxu0 0
  %457 = vmatprep.subr.bf16.mxu0 0
  %458 = vmatpush1.bf16.msra.mxu0 0
  %459 = vmatprep.subr.bf16.mxu0 0
  %460 = vmatpush1.bf16.msra.mxu0 0
  %461 = vmatprep.subr.bf16.mxu0 0
  %462 = vmatpush1.bf16.msra.mxu0 0
  %463 = vmatprep.subr.bf16.mxu0 0
  %464 = vmatpush1.bf16.msra.mxu0 0
  %465 = vmatprep.subr.bf16.mxu0 0
  %466 = vmatpush1.bf16.msra.mxu0 0
  %467 = vmatprep.subr.bf16.mxu0 0
  %468 = vmatpush1.bf16.msra.mxu0 0
  %469 = vmatprep.subr.bf16.mxu0 0
  %470 = vmatpush1.bf16.msra.mxu0 0
  %471 = vmatprep.subr.bf16.mxu0 0
  %472 = vmatpush1.bf16.msra.mxu0 0
  %473 = vmatprep.subr.bf16.mxu0 0
  %474 = vmatpush1.bf16.msra.mxu0 0
  %475 = vmatprep.subr.bf16.mxu0 0
  %476 = vmatpush1.bf16.msra.mxu0 0
  %477 = vmatprep.subr.bf16.mxu0 0
  %478 = vmatpush1.bf16.msra.mxu0 0
  %479 = vmatprep.mubr.bf16.mxu0 0
  %480 = vmatmul.mubr.bf16.gmra.mrb[0].mxu0 %v405
  %v481 = vpop.f32.mrb[0].mxu0
  %v482 = vadd.f32 0.0, %v481
  %v483 = vpop.f32.mrb[0].mxu0
  %v484 = vadd.f32 0.0, %v483
  %v485 = vpop.f32.mrb[0].mxu0
  %v486 = vadd.f32 0.0, %v485
  %v487 = vpop.f32.mrb[0].mxu0
  %v488 = vadd.f32 0.0, %v487
  %489 = vmatprep.mubr.bf16.mxu0 0
  %490 = vmatmul.mubr.bf16.gmra.mrb[0].mxu0 %v408
  %v491 = vpop.f32.mrb[0].mxu0
  %v492 = vadd.f32 0.0, %v491
  %v493 = vpop.f32.mrb[0].mxu0
  %v494 = vadd.f32 0.0, %v493
  %v495 = vpop.f32.mrb[0].mxu0
  %v496 = vadd.f32 0.0, %v495
  %v497 = vpop.f32.mrb[0].mxu0
  %v498 = vadd.f32 0.0, %v497
  %499 = vmatprep.mubr.bf16.mxu0 0
  %500 = vmatmul.mubr.bf16.gmra.mrb[0].mxu0 %v411
  %v501 = vpop.f32.mrb[0].mxu0
  %v502 = vadd.f32 0.0, %v501
  %v503 = vpop.f32.mrb[0].mxu0
  %v504 = vadd.f32 0.0, %v503
  %v505 = vpop.f32.mrb[0].mxu0
  %v506 = vadd.f32 0.0, %v505
  %v507 = vpop.f32.mrb[0].mxu0
  %v508 = vadd.f32 0.0, %v507
  %509 = vmatprep.mubr.bf16.mxu0 0
  %510 = vmatmul.mubr.bf16.gmra.mrb[0].mxu0 %v414
  %v511 = vpop.f32.mrb[0].mxu0
  %v512 = vadd.f32 0.0, %v511
  %v513 = vpop.f32.mrb[0].mxu0
  %v514 = vadd.f32 0.0, %v513
  %v515 = vpop.f32.mrb[0].mxu0
  %v516 = vadd.f32 0.0, %v515
  %v517 = vpop.f32.mrb[0].mxu0
  %v518 = vadd.f32 0.0, %v517
  %519 = vmatprep.mubr.bf16.mxu0 0
  %520 = vmatmul.mubr.bf16.gmra.mrb[0].mxu0 %v417
  %v521 = vpop.f32.mrb[0].mxu0
  %v522 = vadd.f32 0.0, %v521
  %v523 = vpop.f32.mrb[0].mxu0
  %v524 = vadd.f32 0.0, %v523
  %v525 = vpop.f32.mrb[0].mxu0
  %v526 = vadd.f32 0.0, %v525
  %v527 = vpop.f32.mrb[0].mxu0
  %v528 = vadd.f32 0.0, %v527
  %529 = vmatprep.mubr.bf16.mxu0 0
  %530 = vmatmul.mubr.bf16.gmra.mrb[0].mxu0 %v420
  %v531 = vpop.f32.mrb[0].mxu0
  %v532 = vadd.f32 0.0, %v531
  %v533 = vpop.f32.mrb[0].mxu0
  %v534 = vadd.f32 0.0, %v533
  %v535 = vpop.f32.mrb[0].mxu0
  %v536 = vadd.f32 0.0, %v535
  %v537 = vpop.f32.mrb[0].mxu0
  %v538 = vadd.f32 0.0, %v537
  %539 = vmatprep.mubr.bf16.mxu0 0
  %540 = vmatmul.mubr.bf16.gmra.mrb[0].mxu0 %v423
  %v541 = vpop.f32.mrb[0].mxu0
  %v542 = vadd.f32 0.0, %v541
  %v543 = vpop.f32.mrb[0].mxu0
  %v544 = vadd.f32 0.0, %v543
  %v545 = vpop.f32.mrb[0].mxu0
  %v546 = vadd.f32 0.0, %v545
  %v547 = vpop.f32.mrb[0].mxu0
  %v548 = vadd.f32 0.0, %v547
  %549 = vmatprep.mubr.bf16.mxu0 0
  %550 = vmatmul.mubr.bf16.gmra.mrb[0].mxu0 %v426
  %v551 = vpop.f32.mrb[0].mxu0
  %v552 = vadd.f32 0.0, %v551
  %v553 = vpop.f32.mrb[0].mxu0
  %v554 = vadd.f32 0.0, %v553
  %v555 = vpop.f32.mrb[0].mxu0
  %v556 = vadd.f32 0.0, %v555
  %v557 = vpop.f32.mrb[0].mxu0
  %v558 = vadd.f32 0.0, %v557
  %559 = vmatprep.mubr.bf16.mxu0 0
  %560 = vmatmul.mubr.bf16.gmra.mrb[0].mxu0 %v429
  %v561 = vpop.f32.mrb[0].mxu0
  %v562 = vadd.f32 0.0, %v561
  %v563 = vpop.f32.mrb[0].mxu0
  %v564 = vadd.f32 0.0, %v563
  %v565 = vpop.f32.mrb[0].mxu0
  %v566 = vadd.f32 0.0, %v565
  %v567 = vpop.f32.mrb[0].mxu0
  %v568 = vadd.f32 0.0, %v567
  %569 = vmatprep.mubr.bf16.mxu0 0
  %570 = vmatmul.mubr.bf16.gmra.mrb[0].mxu0 %v432
  %v571 = vpop.f32.mrb[0].mxu0
  %v572 = vadd.f32 0.0, %v571
  %v573 = vpop.f32.mrb[0].mxu0
  %v574 = vadd.f32 0.0, %v573
  %v575 = vpop.f32.mrb[0].mxu0
  %v576 = vadd.f32 0.0, %v575
  %v577 = vpop.f32.mrb[0].mxu0
  %v578 = vadd.f32 0.0, %v577
  %579 = vmatprep.mubr.bf16.mxu0 0
  %580 = vmatmul.mubr.bf16.gmra.mrb[0].mxu0 %v435
  %v581 = vpop.f32.mrb[0].mxu0
  %v582 = vadd.f32 0.0, %v581
  %v583 = vpop.f32.mrb[0].mxu0
  %v584 = vadd.f32 0.0, %v583
  %v585 = vpop.f32.mrb[0].mxu0
  %v586 = vadd.f32 0.0, %v585
  %v587 = vpop.f32.mrb[0].mxu0
  %v588 = vadd.f32 0.0, %v587
  %589 = vmatprep.mubr.bf16.mxu0 0
  %590 = vmatmul.mubr.bf16.gmra.mrb[0].mxu0 %v438
  %v591 = vpop.f32.mrb[0].mxu0
  %v592 = vadd.f32 0.0, %v591
  %v593 = vpop.f32.mrb[0].mxu0
  %v594 = vadd.f32 0.0, %v593
  %v595 = vpop.f32.mrb[0].mxu0
  %v596 = vadd.f32 0.0, %v595
  %v597 = vpop.f32.mrb[0].mxu0
  %v598 = vadd.f32 0.0, %v597
  %599 = vdwg.mxu0
  %v624 = vunpack.c.l.b16 %v33
  %v625 = vunpack.c.l.b16 %v34
  %v626 = vunpack.c.l.b16 %v35
  %v627 = vunpack.c.l.b16 %v37
  %v628 = vunpack.c.l.b16 %v38
  %v629 = vunpack.c.l.b16 %v39
  %v630 = vunpack.c.l.b16 %v41
  %v631 = vunpack.c.l.b16 %v42
  %v632 = vunpack.c.l.b16 %v43
  %v633 = vunpack.c.l.b16 %v45
  %v634 = vunpack.c.l.b16 %v46
  %v635 = vunpack.c.l.b16 %v47
  %v636 = vunpack.c.l.b16 %v49
  %v637 = vunpack.c.l.b16 %v50
  %v638 = vunpack.c.l.b16 %v51
  %v639 = vunpack.c.l.b16 %v53
  %v640 = vunpack.c.l.b16 %v54
  %v641 = vunpack.c.l.b16 %v55
  %v642 = vunpack.c.l.b16 %v57
  %v643 = vunpack.c.l.b16 %v58
  %v644 = vunpack.c.l.b16 %v59
  %v645 = vunpack.c.l.b16 %v61
  %v646 = vunpack.c.l.b16 %v62
  %v647 = vunpack.c.l.b16 %v63
  %v648 = vpack.c.b16 %v625, %v624
  %v649 = vpack.c.b16 %v627, %v626
  %v650 = vpack.c.b16 %v629, %v628
  %v651 = vpack.c.b16 %v631, %v630
  %v652 = vpack.c.b16 %v633, %v632
  %v653 = vpack.c.b16 %v635, %v634
  %v654 = vpack.c.b16 %v637, %v636
  %v655 = vpack.c.b16 %v639, %v638
  %v656 = vpack.c.b16 %v641, %v640
  %v657 = vpack.c.b16 %v643, %v642
  %v658 = vpack.c.b16 %v645, %v644
  %v659 = vpack.c.b16 %v647, %v646
  %v664 = vunpack.c.l.b16 %v65
  %v665 = vunpack.c.h.b16 %v65
  %v666 = vunpack.c.l.b16 %v66
  %v667 = vunpack.c.h.b16 %v66
  %v668 = vunpack.c.l.b16 %v67
  %v669 = vunpack.c.h.b16 %v67
  %v670 = vunpack.c.l.b16 %v68
  %v671 = vunpack.c.h.b16 %v68
  %v672 = vpack.c.b16 %v666, %v664
  %v673 = vpack.c.b16 %v667, %v665
  %v674 = vpack.c.b16 %v670, %v668
  %v675 = vpack.c.b16 %v671, %v669
  %v679 = vsel %vm403, %v648, 0
  %v682 = vsel %vm403, %v649, 0
  %v685 = vsel %vm403, %v650, 0
  %v688 = vsel %vm403, %v651, 0
  %v691 = vsel %vm403, %v652, 0
  %v694 = vsel %vm403, %v653, 0
  %v697 = vsel %vm403, %v654, 0
  %v700 = vsel %vm403, %v655, 0
  %v703 = vsel %vm403, %v656, 0
  %v706 = vsel %vm403, %v657, 0
  %v709 = vsel %vm403, %v658, 0
  %v712 = vsel %vm403, %v659, 0
  %v715 = vsel %vm440, %v674, 0
  %v718 = vsel %vm440, %v675, 0
  %720 = vmatprep.subr.bf16.mxu0 %v673
  %721 = vmatpush1.bf16.msra.mxu0 %v672
  %722 = vmatprep.subr.bf16.mxu0 %v718
  %723 = vmatpush1.bf16.msra.mxu0 %v715
  %724 = vmatprep.subr.bf16.mxu0 0
  %725 = vmatpush1.bf16.msra.mxu0 0
  %726 = vmatprep.subr.bf16.mxu0 0
  %727 = vmatpush1.bf16.msra.mxu0 0
  %728 = vmatprep.subr.bf16.mxu0 0
  %729 = vmatpush1.bf16.msra.mxu0 0
  %730 = vmatprep.subr.bf16.mxu0 0
  %731 = vmatpush1.bf16.msra.mxu0 0
  %732 = vmatprep.subr.bf16.mxu0 0
  %733 = vmatpush1.bf16.msra.mxu0 0
  %734 = vmatprep.subr.bf16.mxu0 0
  %735 = vmatpush1.bf16.msra.mxu0 0
  %736 = vmatprep.subr.bf16.mxu0 0
  %737 = vmatpush1.bf16.msra.mxu0 0
  %738 = vmatprep.subr.bf16.mxu0 0
  %739 = vmatpush1.bf16.msra.mxu0 0
  %740 = vmatprep.subr.bf16.mxu0 0
  %741 = vmatpush1.bf16.msra.mxu0 0
  %742 = vmatprep.subr.bf16.mxu0 0
  %743 = vmatpush1.bf16.msra.mxu0 0
  %744 = vmatprep.subr.bf16.mxu0 0
  %745 = vmatpush1.bf16.msra.mxu0 0
  %746 = vmatprep.subr.bf16.mxu0 0
  %747 = vmatpush1.bf16.msra.mxu0 0
  %748 = vmatprep.subr.bf16.mxu0 0
  %749 = vmatpush1.bf16.msra.mxu0 0
  %750 = vmatprep.subr.bf16.mxu0 0
  %751 = vmatpush1.bf16.msra.mxu0 0
  %752 = vmatprep.mubr.bf16.mxu0 0
  %753 = vmatmul.mubr.bf16.gmra.mrb[0].mxu0 %v679
  %v754 = vpop.f32.mrb[0].mxu0
  %v755 = vadd.f32 %v482, %v754
  %v756 = vpop.f32.mrb[0].mxu0
  %v757 = vadd.f32 %v484, %v756
  %v758 = vpop.f32.mrb[0].mxu0
  %v759 = vadd.f32 %v486, %v758
  %v760 = vpop.f32.mrb[0].mxu0
  %v761 = vadd.f32 %v488, %v760
  %762 = vmatprep.mubr.bf16.mxu0 0
  %763 = vmatmul.mubr.bf16.gmra.mrb[0].mxu0 %v682
  %v764 = vpop.f32.mrb[0].mxu0
  %v765 = vadd.f32 %v492, %v764
  %v766 = vpop.f32.mrb[0].mxu0
  %v767 = vadd.f32 %v494, %v766
  %v768 = vpop.f32.mrb[0].mxu0
  %v769 = vadd.f32 %v496, %v768
  %v770 = vpop.f32.mrb[0].mxu0
  %v771 = vadd.f32 %v498, %v770
  %772 = vmatprep.mubr.bf16.mxu0 0
  %773 = vmatmul.mubr.bf16.gmra.mrb[0].mxu0 %v685
  %v774 = vpop.f32.mrb[0].mxu0
  %v775 = vadd.f32 %v502, %v774
  %v776 = vpop.f32.mrb[0].mxu0
  %v777 = vadd.f32 %v504, %v776
  %v778 = vpop.f32.mrb[0].mxu0
  %v779 = vadd.f32 %v506, %v778
  %v780 = vpop.f32.mrb[0].mxu0
  %v781 = vadd.f32 %v508, %v780
  %782 = vmatprep.mubr.bf16.mxu0 0
  %783 = vmatmul.mubr.bf16.gmra.mrb[0].mxu0 %v688
  %v784 = vpop.f32.mrb[0].mxu0
  %v785 = vadd.f32 %v512, %v784
  %v786 = vpop.f32.mrb[0].mxu0
  %v787 = vadd.f32 %v514, %v786
  %v788 = vpop.f32.mrb[0].mxu0
  %v789 = vadd.f32 %v516, %v788
  %v790 = vpop.f32.mrb[0].mxu0
  %v791 = vadd.f32 %v518, %v790
  %792 = vmatprep.mubr.bf16.mxu0 0
  %793 = vmatmul.mubr.bf16.gmra.mrb[0].mxu0 %v691
  %v794 = vpop.f32.mrb[0].mxu0
  %v795 = vadd.f32 %v522, %v794
  %v796 = vpop.f32.mrb[0].mxu0
  %v797 = vadd.f32 %v524, %v796
  %v798 = vpop.f32.mrb[0].mxu0
  %v799 = vadd.f32 %v526, %v798
  %v800 = vpop.f32.mrb[0].mxu0
  %v801 = vadd.f32 %v528, %v800
  %802 = vmatprep.mubr.bf16.mxu0 0
  %803 = vmatmul.mubr.bf16.gmra.mrb[0].mxu0 %v694
  %v804 = vpop.f32.mrb[0].mxu0
  %v805 = vadd.f32 %v532, %v804
  %v806 = vpop.f32.mrb[0].mxu0
  %v807 = vadd.f32 %v534, %v806
  %v808 = vpop.f32.mrb[0].mxu0
  %v809 = vadd.f32 %v536, %v808
  %v810 = vpop.f32.mrb[0].mxu0
  %v811 = vadd.f32 %v538, %v810
  %812 = vmatprep.mubr.bf16.mxu0 0
  %813 = vmatmul.mubr.bf16.gmra.mrb[0].mxu0 %v697
  %v814 = vpop.f32.mrb[0].mxu0
  %v815 = vadd.f32 %v542, %v814
  %v816 = vpop.f32.mrb[0].mxu0
  %v817 = vadd.f32 %v544, %v816
  %v818 = vpop.f32.mrb[0].mxu0
  %v819 = vadd.f32 %v546, %v818
  %v820 = vpop.f32.mrb[0].mxu0
  %v821 = vadd.f32 %v548, %v820
  %822 = vmatprep.mubr.bf16.mxu0 0
  %823 = vmatmul.mubr.bf16.gmra.mrb[0].mxu0 %v700
  %v824 = vpop.f32.mrb[0].mxu0
  %v825 = vadd.f32 %v552, %v824
  %v826 = vpop.f32.mrb[0].mxu0
  %v827 = vadd.f32 %v554, %v826
  %v828 = vpop.f32.mrb[0].mxu0
  %v829 = vadd.f32 %v556, %v828
  %v830 = vpop.f32.mrb[0].mxu0
  %v831 = vadd.f32 %v558, %v830
  %832 = vmatprep.mubr.bf16.mxu0 0
  %833 = vmatmul.mubr.bf16.gmra.mrb[0].mxu0 %v703
  %v834 = vpop.f32.mrb[0].mxu0
  %v835 = vadd.f32 %v562, %v834
  %v836 = vpop.f32.mrb[0].mxu0
  %v837 = vadd.f32 %v564, %v836
  %v838 = vpop.f32.mrb[0].mxu0
  %v839 = vadd.f32 %v566, %v838
  %v840 = vpop.f32.mrb[0].mxu0
  %v841 = vadd.f32 %v568, %v840
  %842 = vmatprep.mubr.bf16.mxu0 0
  %843 = vmatmul.mubr.bf16.gmra.mrb[0].mxu0 %v706
  %v844 = vpop.f32.mrb[0].mxu0
  %v845 = vadd.f32 %v572, %v844
  %v846 = vpop.f32.mrb[0].mxu0
  %v847 = vadd.f32 %v574, %v846
  %v848 = vpop.f32.mrb[0].mxu0
  %v849 = vadd.f32 %v576, %v848
  %v850 = vpop.f32.mrb[0].mxu0
  %v851 = vadd.f32 %v578, %v850
  %852 = vmatprep.mubr.bf16.mxu0 0
  %853 = vmatmul.mubr.bf16.gmra.mrb[0].mxu0 %v709
  %v854 = vpop.f32.mrb[0].mxu0
  %v855 = vadd.f32 %v582, %v854
  %v856 = vpop.f32.mrb[0].mxu0
  %v857 = vadd.f32 %v584, %v856
  %v858 = vpop.f32.mrb[0].mxu0
  %v859 = vadd.f32 %v586, %v858
  %v860 = vpop.f32.mrb[0].mxu0
  %v861 = vadd.f32 %v588, %v860
  %862 = vmatprep.mubr.bf16.mxu0 0
  %863 = vmatmul.mubr.bf16.gmra.mrb[0].mxu0 %v712
  %v864 = vpop.f32.mrb[0].mxu0
  %v865 = vadd.f32 %v592, %v864
  %v866 = vpop.f32.mrb[0].mxu0
  %v867 = vadd.f32 %v594, %v866
  %v868 = vpop.f32.mrb[0].mxu0
  %v869 = vadd.f32 %v596, %v868
  %v870 = vpop.f32.mrb[0].mxu0
  %v871 = vadd.f32 %v598, %v870
  %872 = vdwg.mxu0
  %vm881 = vcmask 1042432
  %vm882 = vcmask 1046532
  %vm883 = vmor %vm881, %vm882
  %v884 = vrot.slane %v33, 5
  %v885 = vrot.slane %v884, 4
  %v886 = vrot.slane %v34, 5
  %v887 = vsel %vm883, %v885, %v886
  %v888 = vrot.slane %v886, 4
  %v889 = vrot.slane %v35, 5
  %v890 = vsel %vm883, %v888, %v889
  %v891 = vrot.slane %v889, 4
  %v892 = vrot.slane %v36, 5
  %v893 = vsel %vm883, %v891, %v892
  %v894 = vrot.slane %v37, 5
  %v895 = vrot.slane %v894, 4
  %v896 = vrot.slane %v38, 5
  %v897 = vsel %vm883, %v895, %v896
  %v898 = vrot.slane %v896, 4
  %v899 = vrot.slane %v39, 5
  %v900 = vsel %vm883, %v898, %v899
  %v901 = vrot.slane %v899, 4
  %v902 = vrot.slane %v40, 5
  %v903 = vsel %vm883, %v901, %v902
  %v904 = vrot.slane %v41, 5
  %v905 = vrot.slane %v904, 4
  %v906 = vrot.slane %v42, 5
  %v907 = vsel %vm883, %v905, %v906
  %v908 = vrot.slane %v906, 4
  %v909 = vrot.slane %v43, 5
  %v910 = vsel %vm883, %v908, %v909
  %v911 = vrot.slane %v909, 4
  %v912 = vrot.slane %v44, 5
  %v913 = vsel %vm883, %v911, %v912
  %v914 = vrot.slane %v45, 5
  %v915 = vrot.slane %v914, 4
  %v916 = vrot.slane %v46, 5
  %v917 = vsel %vm883, %v915, %v916
  %v918 = vrot.slane %v916, 4
  %v919 = vrot.slane %v47, 5
  %v920 = vsel %vm883, %v918, %v919
  %v921 = vrot.slane %v919, 4
  %v922 = vrot.slane %v48, 5
  %v923 = vsel %vm883, %v921, %v922
  %v924 = vrot.slane %v49, 5
  %v925 = vrot.slane %v924, 4
  %v926 = vrot.slane %v50, 5
  %v927 = vsel %vm883, %v925, %v926
  %v928 = vrot.slane %v926, 4
  %v929 = vrot.slane %v51, 5
  %v930 = vsel %vm883, %v928, %v929
  %v931 = vrot.slane %v929, 4
  %v932 = vrot.slane %v52, 5
  %v933 = vsel %vm883, %v931, %v932
  %v934 = vrot.slane %v53, 5
  %v935 = vrot.slane %v934, 4
  %v936 = vrot.slane %v54, 5
  %v937 = vsel %vm883, %v935, %v936
  %v938 = vrot.slane %v936, 4
  %v939 = vrot.slane %v55, 5
  %v940 = vsel %vm883, %v938, %v939
  %v941 = vrot.slane %v939, 4
  %v942 = vrot.slane %v56, 5
  %v943 = vsel %vm883, %v941, %v942
  %v944 = vrot.slane %v57, 5
  %v945 = vrot.slane %v944, 4
  %v946 = vrot.slane %v58, 5
  %v947 = vsel %vm883, %v945, %v946
  %v948 = vrot.slane %v946, 4
  %v949 = vrot.slane %v59, 5
  %v950 = vsel %vm883, %v948, %v949
  %v951 = vrot.slane %v949, 4
  %v952 = vrot.slane %v60, 5
  %v953 = vsel %vm883, %v951, %v952
  %v954 = vrot.slane %v61, 5
  %v955 = vrot.slane %v954, 4
  %v956 = vrot.slane %v62, 5
  %v957 = vsel %vm883, %v955, %v956
  %v958 = vrot.slane %v956, 4
  %v959 = vrot.slane %v63, 5
  %v960 = vsel %vm883, %v958, %v959
  %v961 = vrot.slane %v959, 4
  %v962 = vrot.slane %v64, 5
  %v963 = vsel %vm883, %v961, %v962
  %s964 = scalar_lea.vmem %s1, 64
  %v965 = vld [vmem:[%s964] sm:$0xff]
  %v966 = vld [vmem:[%s964 + $0x8] sm:$0xff]
  %v967 = vld [vmem:[%s964 + $0x10] sm:$0xff]
  %v968 = vld [vmem:[%s964 + $0x18] sm:$0x33]
  %v969 = vunpack.c.l.b16 %v887
  %v970 = vunpack.c.l.b16 %v890
  %v971 = vunpack.c.l.b16 %v893
  %v972 = vunpack.c.l.b16 %v897
  %v973 = vunpack.c.l.b16 %v900
  %v974 = vunpack.c.l.b16 %v903
  %v975 = vunpack.c.l.b16 %v907
  %v976 = vunpack.c.l.b16 %v910
  %v977 = vunpack.c.l.b16 %v913
  %v978 = vunpack.c.l.b16 %v917
  %v979 = vunpack.c.l.b16 %v920
  %v980 = vunpack.c.l.b16 %v923
  %v981 = vunpack.c.l.b16 %v927
  %v982 = vunpack.c.l.b16 %v930
  %v983 = vunpack.c.l.b16 %v933
  %v984 = vunpack.c.l.b16 %v937
  %v985 = vunpack.c.l.b16 %v940
  %v986 = vunpack.c.l.b16 %v943
  %v987 = vunpack.c.l.b16 %v947
  %v988 = vunpack.c.l.b16 %v950
  %v989 = vunpack.c.l.b16 %v953
  %v990 = vunpack.c.l.b16 %v957
  %v991 = vunpack.c.l.b16 %v960
  %v992 = vunpack.c.l.b16 %v963
  %v993 = vpack.c.b16 %v970, %v969
  %v994 = vpack.c.b16 %v972, %v971
  %v995 = vpack.c.b16 %v974, %v973
  %v996 = vpack.c.b16 %v976, %v975
  %v997 = vpack.c.b16 %v978, %v977
  %v998 = vpack.c.b16 %v980, %v979
  %v999 = vpack.c.b16 %v982, %v981
  %v1000 = vpack.c.b16 %v984, %v983
  %v1001 = vpack.c.b16 %v986, %v985
  %v1002 = vpack.c.b16 %v988, %v987
  %v1003 = vpack.c.b16 %v990, %v989
  %v1004 = vpack.c.b16 %v992, %v991
  %v1009 = vunpack.c.l.b16 %v965
  %v1010 = vunpack.c.h.b16 %v965
  %v1011 = vunpack.c.l.b16 %v966
  %v1012 = vunpack.c.h.b16 %v966
  %v1013 = vunpack.c.l.b16 %v967
  %v1014 = vunpack.c.h.b16 %v967
  %v1015 = vunpack.c.l.b16 %v968
  %v1016 = vunpack.c.h.b16 %v968
  %v1017 = vpack.c.b16 %v1011, %v1009
  %v1018 = vpack.c.b16 %v1012, %v1010
  %v1019 = vpack.c.b16 %v1015, %v1013
  %v1020 = vpack.c.b16 %v1016, %v1014
  %v1024 = vsel %vm403, %v993, 0
  %v1027 = vsel %vm403, %v994, 0
  %v1030 = vsel %vm403, %v995, 0
  %v1033 = vsel %vm403, %v996, 0
  %v1036 = vsel %vm403, %v997, 0
  %v1039 = vsel %vm403, %v998, 0
  %v1042 = vsel %vm403, %v999, 0
  %v1045 = vsel %vm403, %v1000, 0
  %v1048 = vsel %vm403, %v1001, 0
  %v1051 = vsel %vm403, %v1002, 0
  %v1054 = vsel %vm403, %v1003, 0
  %v1057 = vsel %vm403, %v1004, 0
  %v1060 = vsel %vm440, %v1019, 0
  %v1063 = vsel %vm440, %v1020, 0
  %1065 = vmatprep.subr.bf16.mxu0 %v1018
  %1066 = vmatpush1.bf16.msra.mxu0 %v1017
  %1067 = vmatprep.subr.bf16.mxu0 %v1063
  %1068 = vmatpush1.bf16.msra.mxu0 %v1060
  %1069 = vmatprep.subr.bf16.mxu0 0
  %1070 = vmatpush1.bf16.msra.mxu0 0
  %1071 = vmatprep.subr.bf16.mxu0 0
  %1072 = vmatpush1.bf16.msra.mxu0 0
  %1073 = vmatprep.subr.bf16.mxu0 0
  %1074 = vmatpush1.bf16.msra.mxu0 0
  %1075 = vmatprep.subr.bf16.mxu0 0
  %1076 = vmatpush1.bf16.msra.mxu0 0
  %1077 = vmatprep.subr.bf16.mxu0 0
  %1078 = vmatpush1.bf16.msra.mxu0 0
  %1079 = vmatprep.subr.bf16.mxu0 0
  %1080 = vmatpush1.bf16.msra.mxu0 0
  %1081 = vmatprep.subr.bf16.mxu0 0
  %1082 = vmatpush1.bf16.msra.mxu0 0
  %1083 = vmatprep.subr.bf16.mxu0 0
  %1084 = vmatpush1.bf16.msra.mxu0 0
  %1085 = vmatprep.subr.bf16.mxu0 0
  %1086 = vmatpush1.bf16.msra.mxu0 0
  %1087 = vmatprep.subr.bf16.mxu0 0
  %1088 = vmatpush1.bf16.msra.mxu0 0
  %1089 = vmatprep.subr.bf16.mxu0 0
  %1090 = vmatpush1.bf16.msra.mxu0 0
  %1091 = vmatprep.subr.bf16.mxu0 0
  %1092 = vmatpush1.bf16.msra.mxu0 0
  %1093 = vmatprep.subr.bf16.mxu0 0
  %1094 = vmatpush1.bf16.msra.mxu0 0
  %1095 = vmatprep.subr.bf16.mxu0 0
  %1096 = vmatpush1.bf16.msra.mxu0 0
  %1097 = vmatprep.mubr.bf16.mxu0 0
  %1098 = vmatmul.mubr.bf16.gmra.mrb[0].mxu0 %v1024
  %v1099 = vpop.f32.mrb[0].mxu0
  %v1100 = vadd.f32 0.0, %v1099
  %v1101 = vpop.f32.mrb[0].mxu0
  %v1102 = vadd.f32 0.0, %v1101
  %v1103 = vpop.f32.mrb[0].mxu0
  %v1104 = vadd.f32 0.0, %v1103
  %v1105 = vpop.f32.mrb[0].mxu0
  %v1106 = vadd.f32 0.0, %v1105
  %1107 = vmatprep.mubr.bf16.mxu0 0
  %1108 = vmatmul.mubr.bf16.gmra.mrb[0].mxu0 %v1027
  %v1109 = vpop.f32.mrb[0].mxu0
  %v1110 = vadd.f32 0.0, %v1109
  %v1111 = vpop.f32.mrb[0].mxu0
  %v1112 = vadd.f32 0.0, %v1111
  %v1113 = vpop.f32.mrb[0].mxu0
  %v1114 = vadd.f32 0.0, %v1113
  %v1115 = vpop.f32.mrb[0].mxu0
  %v1116 = vadd.f32 0.0, %v1115
  %1117 = vmatprep.mubr.bf16.mxu0 0
  %1118 = vmatmul.mubr.bf16.gmra.mrb[0].mxu0 %v1030
  %v1119 = vpop.f32.mrb[0].mxu0
  %v1120 = vadd.f32 0.0, %v1119
  %v1121 = vpop.f32.mrb[0].mxu0
  %v1122 = vadd.f32 0.0, %v1121
  %v1123 = vpop.f32.mrb[0].mxu0
  %v1124 = vadd.f32 0.0, %v1123
  %v1125 = vpop.f32.mrb[0].mxu0
  %v1126 = vadd.f32 0.0, %v1125
  %1127 = vmatprep.mubr.bf16.mxu0 0
  %1128 = vmatmul.mubr.bf16.gmra.mrb[0].mxu0 %v1033
  %v1129 = vpop.f32.mrb[0].mxu0
  %v1130 = vadd.f32 0.0, %v1129
  %v1131 = vpop.f32.mrb[0].mxu0
  %v1132 = vadd.f32 0.0, %v1131
  %v1133 = vpop.f32.mrb[0].mxu0
  %v1134 = vadd.f32 0.0, %v1133
  %v1135 = vpop.f32.mrb[0].mxu0
  %v1136 = vadd.f32 0.0, %v1135
  %1137 = vmatprep.mubr.bf16.mxu0 0
  %1138 = vmatmul.mubr.bf16.gmra.mrb[0].mxu0 %v1036
  %v1139 = vpop.f32.mrb[0].mxu0
  %v1140 = vadd.f32 0.0, %v1139
  %v1141 = vpop.f32.mrb[0].mxu0
  %v1142 = vadd.f32 0.0, %v1141
  %v1143 = vpop.f32.mrb[0].mxu0
  %v1144 = vadd.f32 0.0, %v1143
  %v1145 = vpop.f32.mrb[0].mxu0
  %v1146 = vadd.f32 0.0, %v1145
  %1147 = vmatprep.mubr.bf16.mxu0 0
  %1148 = vmatmul.mubr.bf16.gmra.mrb[0].mxu0 %v1039
  %v1149 = vpop.f32.mrb[0].mxu0
  %v1150 = vadd.f32 0.0, %v1149
  %v1151 = vpop.f32.mrb[0].mxu0
  %v1152 = vadd.f32 0.0, %v1151
  %v1153 = vpop.f32.mrb[0].mxu0
  %v1154 = vadd.f32 0.0, %v1153
  %v1155 = vpop.f32.mrb[0].mxu0
  %v1156 = vadd.f32 0.0, %v1155
  %1157 = vmatprep.mubr.bf16.mxu0 0
  %1158 = vmatmul.mubr.bf16.gmra.mrb[0].mxu0 %v1042
  %v1159 = vpop.f32.mrb[0].mxu0
  %v1160 = vadd.f32 0.0, %v1159
  %v1161 = vpop.f32.mrb[0].mxu0
  %v1162 = vadd.f32 0.0, %v1161
  %v1163 = vpop.f32.mrb[0].mxu0
  %v1164 = vadd.f32 0.0, %v1163
  %v1165 = vpop.f32.mrb[0].mxu0
  %v1166 = vadd.f32 0.0, %v1165
  %1167 = vmatprep.mubr.bf16.mxu0 0
  %1168 = vmatmul.mubr.bf16.gmra.mrb[0].mxu0 %v1045
  %v1169 = vpop.f32.mrb[0].mxu0
  %v1170 = vadd.f32 0.0, %v1169
  %v1171 = vpop.f32.mrb[0].mxu0
  %v1172 = vadd.f32 0.0, %v1171
  %v1173 = vpop.f32.mrb[0].mxu0
  %v1174 = vadd.f32 0.0, %v1173
  %v1175 = vpop.f32.mrb[0].mxu0
  %v1176 = vadd.f32 0.0, %v1175
  %1177 = vmatprep.mubr.bf16.mxu0 0
  %1178 = vmatmul.mubr.bf16.gmra.mrb[0].mxu0 %v1048
  %v1179 = vpop.f32.mrb[0].mxu0
  %v1180 = vadd.f32 0.0, %v1179
  %v1181 = vpop.f32.mrb[0].mxu0
  %v1182 = vadd.f32 0.0, %v1181
  %v1183 = vpop.f32.mrb[0].mxu0
  %v1184 = vadd.f32 0.0, %v1183
  %v1185 = vpop.f32.mrb[0].mxu0
  %v1186 = vadd.f32 0.0, %v1185
  %1187 = vmatprep.mubr.bf16.mxu0 0
  %1188 = vmatmul.mubr.bf16.gmra.mrb[0].mxu0 %v1051
  %v1189 = vpop.f32.mrb[0].mxu0
  %v1190 = vadd.f32 0.0, %v1189
  %v1191 = vpop.f32.mrb[0].mxu0
  %v1192 = vadd.f32 0.0, %v1191
  %v1193 = vpop.f32.mrb[0].mxu0
  %v1194 = vadd.f32 0.0, %v1193
  %v1195 = vpop.f32.mrb[0].mxu0
  %v1196 = vadd.f32 0.0, %v1195
  %1197 = vmatprep.mubr.bf16.mxu0 0
  %1198 = vmatmul.mubr.bf16.gmra.mrb[0].mxu0 %v1054
  %v1199 = vpop.f32.mrb[0].mxu0
  %v1200 = vadd.f32 0.0, %v1199
  %v1201 = vpop.f32.mrb[0].mxu0
  %v1202 = vadd.f32 0.0, %v1201
  %v1203 = vpop.f32.mrb[0].mxu0
  %v1204 = vadd.f32 0.0, %v1203
  %v1205 = vpop.f32.mrb[0].mxu0
  %v1206 = vadd.f32 0.0, %v1205
  %1207 = vmatprep.mubr.bf16.mxu0 0
  %1208 = vmatmul.mubr.bf16.gmra.mrb[0].mxu0 %v1057
  %v1209 = vpop.f32.mrb[0].mxu0
  %v1210 = vadd.f32 0.0, %v1209
  %v1211 = vpop.f32.mrb[0].mxu0
  %v1212 = vadd.f32 0.0, %v1211
  %v1213 = vpop.f32.mrb[0].mxu0
  %v1214 = vadd.f32 0.0, %v1213
  %v1215 = vpop.f32.mrb[0].mxu0
  %v1216 = vadd.f32 0.0, %v1215
  %1217 = vdwg.mxu0
  %v1218 = vadd.f32 %v755, %v1100
  %v1219 = vadd.f32 %v757, %v1102
  %v1220 = vadd.f32 %v759, %v1104
  %v1221 = vadd.f32 %v761, %v1106
  %v1222 = vadd.f32 %v765, %v1110
  %v1223 = vadd.f32 %v767, %v1112
  %v1224 = vadd.f32 %v769, %v1114
  %v1225 = vadd.f32 %v771, %v1116
  %v1226 = vadd.f32 %v775, %v1120
  %v1227 = vadd.f32 %v777, %v1122
  %v1228 = vadd.f32 %v779, %v1124
  %v1229 = vadd.f32 %v781, %v1126
  %v1230 = vadd.f32 %v785, %v1130
  %v1231 = vadd.f32 %v787, %v1132
  %v1232 = vadd.f32 %v789, %v1134
  %v1233 = vadd.f32 %v791, %v1136
  %v1234 = vadd.f32 %v795, %v1140
  %v1235 = vadd.f32 %v797, %v1142
  %v1236 = vadd.f32 %v799, %v1144
  %v1237 = vadd.f32 %v801, %v1146
  %v1238 = vadd.f32 %v805, %v1150
  %v1239 = vadd.f32 %v807, %v1152
  %v1240 = vadd.f32 %v809, %v1154
  %v1241 = vadd.f32 %v811, %v1156
  %v1242 = vadd.f32 %v815, %v1160
  %v1243 = vadd.f32 %v817, %v1162
  %v1244 = vadd.f32 %v819, %v1164
  %v1245 = vadd.f32 %v821, %v1166
  %v1246 = vadd.f32 %v825, %v1170
  %v1247 = vadd.f32 %v827, %v1172
  %v1248 = vadd.f32 %v829, %v1174
  %v1249 = vadd.f32 %v831, %v1176
  %v1250 = vadd.f32 %v835, %v1180
  %v1251 = vadd.f32 %v837, %v1182
  %v1252 = vadd.f32 %v839, %v1184
  %v1253 = vadd.f32 %v841, %v1186
  %v1254 = vadd.f32 %v845, %v1190
  %v1255 = vadd.f32 %v847, %v1192
  %v1256 = vadd.f32 %v849, %v1194
  %v1257 = vadd.f32 %v851, %v1196
  %v1258 = vadd.f32 %v855, %v1200
  %v1259 = vadd.f32 %v857, %v1202
  %v1260 = vadd.f32 %v859, %v1204
  %v1261 = vadd.f32 %v861, %v1206
  %v1262 = vadd.f32 %v865, %v1210
  %v1263 = vadd.f32 %v867, %v1212
  %v1264 = vadd.f32 %v869, %v1214
  %v1265 = vadd.f32 %v871, %v1216
  %vm1266 = vsmask.f32 2304
  %vm1267 = vsmask.f32 6416
  %vm1268 = vmor %vm1266, %vm1267
  %v1269 = vrot.slane %v73, 5
  %v1270 = vrot.slane %v76, 6
  %v1271 = vor.u32 %v1269, %v1270
  %v1272 = vrot.slane %v1271, 4
  %v1273 = vrot.slane %v86, 5
  %v1274 = vrot.slane %v82, 6
  %v1275 = vor.u32 %v1273, %v1274
  %v1276 = vsel %vm1268, %v1272, %v1275
  %v1277 = vrot.slane %v1275, 4
  %v1278 = vrot.slane %v96, 5
  %v1279 = vrot.slane %v92, 6
  %v1280 = vor.u32 %v1278, %v1279
  %v1281 = vsel %vm1268, %v1277, %v1280
  %v1282 = vrot.slane %v1280, 4
  %v1283 = vshrl.u32 %v36, 16
  %v1285 = vrot.slane %v1283, 5
  %v1286 = vrot.slane %v102, 6
  %v1287 = vor.u32 %v1285, %v1286
  %v1288 = vsel %vm1268, %v1282, %v1287
  %v1289 = vrot.slane %v107, 5
  %v1290 = vrot.slane %v110, 6
  %v1291 = vor.u32 %v1289, %v1290
  %v1292 = vrot.slane %v1291, 4
  %v1293 = vrot.slane %v120, 5
  %v1294 = vrot.slane %v116, 6
  %v1295 = vor.u32 %v1293, %v1294
  %v1296 = vsel %vm1268, %v1292, %v1295
  %v1297 = vrot.slane %v1295, 4
  %v1298 = vrot.slane %v130, 5
  %v1299 = vrot.slane %v126, 6
  %v1300 = vor.u32 %v1298, %v1299
  %v1301 = vsel %vm1268, %v1297, %v1300
  %v1302 = vrot.slane %v1300, 4
  %v1303 = vshrl.u32 %v40, 16
  %v1305 = vrot.slane %v1303, 5
  %v1306 = vrot.slane %v136, 6
  %v1307 = vor.u32 %v1305, %v1306
  %v1308 = vsel %vm1268, %v1302, %v1307
  %v1309 = vrot.slane %v141, 5
  %v1310 = vrot.slane %v144, 6
  %v1311 = vor.u32 %v1309, %v1310
  %v1312 = vrot.slane %v1311, 4
  %v1313 = vrot.slane %v154, 5
  %v1314 = vrot.slane %v150, 6
  %v1315 = vor.u32 %v1313, %v1314
  %v1316 = vsel %vm1268, %v1312, %v1315
  %v1317 = vrot.slane %v1315, 4
  %v1318 = vrot.slane %v164, 5
  %v1319 = vrot.slane %v160, 6
  %v1320 = vor.u32 %v1318, %v1319
  %v1321 = vsel %vm1268, %v1317, %v1320
  %v1322 = vrot.slane %v1320, 4
  %v1323 = vshrl.u32 %v44, 16
  %v1325 = vrot.slane %v1323, 5
  %v1326 = vrot.slane %v170, 6
  %v1327 = vor.u32 %v1325, %v1326
  %v1328 = vsel %vm1268, %v1322, %v1327
  %v1329 = vrot.slane %v175, 5
  %v1330 = vrot.slane %v178, 6
  %v1331 = vor.u32 %v1329, %v1330
  %v1332 = vrot.slane %v1331, 4
  %v1333 = vrot.slane %v188, 5
  %v1334 = vrot.slane %v184, 6
  %v1335 = vor.u32 %v1333, %v1334
  %v1336 = vsel %vm1268, %v1332, %v1335
  %v1337 = vrot.slane %v1335, 4
  %v1338 = vrot.slane %v198, 5
  %v1339 = vrot.slane %v194, 6
  %v1340 = vor.u32 %v1338, %v1339
  %v1341 = vsel %vm1268, %v1337, %v1340
  %v1342 = vrot.slane %v1340, 4
  %v1343 = vshrl.u32 %v48, 16
  %v1345 = vrot.slane %v1343, 5
  %v1346 = vrot.slane %v204, 6
  %v1347 = vor.u32 %v1345, %v1346
  %v1348 = vsel %vm1268, %v1342, %v1347
  %v1349 = vrot.slane %v209, 5
  %v1350 = vrot.slane %v212, 6
  %v1351 = vor.u32 %v1349, %v1350
  %v1352 = vrot.slane %v1351, 4
  %v1353 = vrot.slane %v222, 5
  %v1354 = vrot.slane %v218, 6
  %v1355 = vor.u32 %v1353, %v1354
  %v1356 = vsel %vm1268, %v1352, %v1355
  %v1357 = vrot.slane %v1355, 4
  %v1358 = vrot.slane %v232, 5
  %v1359 = vrot.slane %v228, 6
  %v1360 = vor.u32 %v1358, %v1359
  %v1361 = vsel %vm1268, %v1357, %v1360
  %v1362 = vrot.slane %v1360, 4
  %v1363 = vshrl.u32 %v52, 16
  %v1365 = vrot.slane %v1363, 5
  %v1366 = vrot.slane %v238, 6
  %v1367 = vor.u32 %v1365, %v1366
  %v1368 = vsel %vm1268, %v1362, %v1367
  %v1369 = vrot.slane %v243, 5
  %v1370 = vrot.slane %v246, 6
  %v1371 = vor.u32 %v1369, %v1370
  %v1372 = vrot.slane %v1371, 4
  %v1373 = vrot.slane %v256, 5
  %v1374 = vrot.slane %v252, 6
  %v1375 = vor.u32 %v1373, %v1374
  %v1376 = vsel %vm1268, %v1372, %v1375
  %v1377 = vrot.slane %v1375, 4
  %v1378 = vrot.slane %v266, 5
  %v1379 = vrot.slane %v262, 6
  %v1380 = vor.u32 %v1378, %v1379
  %v1381 = vsel %vm1268, %v1377, %v1380
  %v1382 = vrot.slane %v1380, 4
  %v1383 = vshrl.u32 %v56, 16
  %v1385 = vrot.slane %v1383, 5
  %v1386 = vrot.slane %v272, 6
  %v1387 = vor.u32 %v1385, %v1386
  %v1388 = vsel %vm1268, %v1382, %v1387
  %v1389 = vrot.slane %v277, 5
  %v1390 = vrot.slane %v280, 6
  %v1391 = vor.u32 %v1389, %v1390
  %v1392 = vrot.slane %v1391, 4
  %v1393 = vrot.slane %v290, 5
  %v1394 = vrot.slane %v286, 6
  %v1395 = vor.u32 %v1393, %v1394
  %v1396 = vsel %vm1268, %v1392, %v1395
  %v1397 = vrot.slane %v1395, 4
  %v1398 = vrot.slane %v300, 5
  %v1399 = vrot.slane %v296, 6
  %v1400 = vor.u32 %v1398, %v1399
  %v1401 = vsel %vm1268, %v1397, %v1400
  %v1402 = vrot.slane %v1400, 4
  %v1403 = vshrl.u32 %v60, 16
  %v1405 = vrot.slane %v1403, 5
  %v1406 = vrot.slane %v306, 6
  %v1407 = vor.u32 %v1405, %v1406
  %v1408 = vsel %vm1268, %v1402, %v1407
  %v1409 = vrot.slane %v311, 5
  %v1410 = vrot.slane %v314, 6
  %v1411 = vor.u32 %v1409, %v1410
  %v1412 = vrot.slane %v1411, 4
  %v1413 = vrot.slane %v324, 5
  %v1414 = vrot.slane %v320, 6
  %v1415 = vor.u32 %v1413, %v1414
  %v1416 = vsel %vm1268, %v1412, %v1415
  %v1417 = vrot.slane %v1415, 4
  %v1418 = vrot.slane %v334, 5
  %v1419 = vrot.slane %v330, 6
  %v1420 = vor.u32 %v1418, %v1419
  %v1421 = vsel %vm1268, %v1417, %v1420
  %v1422 = vrot.slane %v1420, 4
  %v1423 = vshrl.u32 %v64, 16
  %v1425 = vrot.slane %v1423, 5
  %v1426 = vrot.slane %v340, 6
  %v1427 = vor.u32 %v1425, %v1426
  %v1428 = vsel %vm1268, %v1422, %v1427
  %s1429 = scalar_lea.vmem %s1, 96
  %v1430 = vld [vmem:[%s1429] sm:$0xff]
  %v1431 = vld [vmem:[%s1429 + $0x8] sm:$0xff]
  %v1432 = vld [vmem:[%s1429 + $0x10] sm:$0xff]
  %v1433 = vld [vmem:[%s1429 + $0x18] sm:$0x33]
  %v1434 = vunpack.c.l.b16 %v1276
  %v1435 = vunpack.c.l.b16 %v1281
  %v1436 = vunpack.c.l.b16 %v1288
  %v1437 = vunpack.c.l.b16 %v1296
  %v1438 = vunpack.c.l.b16 %v1301
  %v1439 = vunpack.c.l.b16 %v1308
  %v1440 = vunpack.c.l.b16 %v1316
  %v1441 = vunpack.c.l.b16 %v1321
  %v1442 = vunpack.c.l.b16 %v1328
  %v1443 = vunpack.c.l.b16 %v1336
  %v1444 = vunpack.c.l.b16 %v1341
  %v1445 = vunpack.c.l.b16 %v1348
  %v1446 = vunpack.c.l.b16 %v1356
  %v1447 = vunpack.c.l.b16 %v1361
  %v1448 = vunpack.c.l.b16 %v1368
  %v1449 = vunpack.c.l.b16 %v1376
  %v1450 = vunpack.c.l.b16 %v1381
  %v1451 = vunpack.c.l.b16 %v1388
  %v1452 = vunpack.c.l.b16 %v1396
  %v1453 = vunpack.c.l.b16 %v1401
  %v1454 = vunpack.c.l.b16 %v1408
  %v1455 = vunpack.c.l.b16 %v1416
  %v1456 = vunpack.c.l.b16 %v1421
  %v1457 = vunpack.c.l.b16 %v1428
  %v1458 = vpack.c.b16 %v1435, %v1434
  %v1459 = vpack.c.b16 %v1437, %v1436
  %v1460 = vpack.c.b16 %v1439, %v1438
  %v1461 = vpack.c.b16 %v1441, %v1440
  %v1462 = vpack.c.b16 %v1443, %v1442
  %v1463 = vpack.c.b16 %v1445, %v1444
  %v1464 = vpack.c.b16 %v1447, %v1446
  %v1465 = vpack.c.b16 %v1449, %v1448
  %v1466 = vpack.c.b16 %v1451, %v1450
  %v1467 = vpack.c.b16 %v1453, %v1452
  %v1468 = vpack.c.b16 %v1455, %v1454
  %v1469 = vpack.c.b16 %v1457, %v1456
  %v1474 = vunpack.c.l.b16 %v1430
  %v1475 = vunpack.c.h.b16 %v1430
  %v1476 = vunpack.c.l.b16 %v1431
  %v1477 = vunpack.c.h.b16 %v1431
  %v1478 = vunpack.c.l.b16 %v1432
  %v1479 = vunpack.c.h.b16 %v1432
  %v1480 = vunpack.c.l.b16 %v1433
  %v1481 = vunpack.c.h.b16 %v1433
  %v1482 = vpack.c.b16 %v1476, %v1474
  %v1483 = vpack.c.b16 %v1477, %v1475
  %v1484 = vpack.c.b16 %v1480, %v1478
  %v1485 = vpack.c.b16 %v1481, %v1479
  %v1489 = vsel %vm403, %v1458, 0
  %v1492 = vsel %vm403, %v1459, 0
  %v1495 = vsel %vm403, %v1460, 0
  %v1498 = vsel %vm403, %v1461, 0
  %v1501 = vsel %vm403, %v1462, 0
  %v1504 = vsel %vm403, %v1463, 0
  %v1507 = vsel %vm403, %v1464, 0
  %v1510 = vsel %vm403, %v1465, 0
  %v1513 = vsel %vm403, %v1466, 0
  %v1516 = vsel %vm403, %v1467, 0
  %v1519 = vsel %vm403, %v1468, 0
  %v1522 = vsel %vm403, %v1469, 0
  %v1525 = vsel %vm440, %v1484, 0
  %v1528 = vsel %vm440, %v1485, 0
  %1530 = vmatprep.subr.bf16.mxu0 %v1483
  %1531 = vmatpush1.bf16.msra.mxu0 %v1482
  %1532 = vmatprep.subr.bf16.mxu0 %v1528
  %1533 = vmatpush1.bf16.msra.mxu0 %v1525
  %1534 = vmatprep.subr.bf16.mxu0 0
  %1535 = vmatpush1.bf16.msra.mxu0 0
  %1536 = vmatprep.subr.bf16.mxu0 0
  %1537 = vmatpush1.bf16.msra.mxu0 0
  %1538 = vmatprep.subr.bf16.mxu0 0
  %1539 = vmatpush1.bf16.msra.mxu0 0
  %1540 = vmatprep.subr.bf16.mxu0 0
  %1541 = vmatpush1.bf16.msra.mxu0 0
  %1542 = vmatprep.subr.bf16.mxu0 0
  %1543 = vmatpush1.bf16.msra.mxu0 0
  %1544 = vmatprep.subr.bf16.mxu0 0
  %1545 = vmatpush1.bf16.msra.mxu0 0
  %1546 = vmatprep.subr.bf16.mxu0 0
  %1547 = vmatpush1.bf16.msra.mxu0 0
  %1548 = vmatprep.subr.bf16.mxu0 0
  %1549 = vmatpush1.bf16.msra.mxu0 0
  %1550 = vmatprep.subr.bf16.mxu0 0
  %1551 = vmatpush1.bf16.msra.mxu0 0
  %1552 = vmatprep.subr.bf16.mxu0 0
  %1553 = vmatpush1.bf16.msra.mxu0 0
  %1554 = vmatprep.subr.bf16.mxu0 0
  %1555 = vmatpush1.bf16.msra.mxu0 0
  %1556 = vmatprep.subr.bf16.mxu0 0
  %1557 = vmatpush1.bf16.msra.mxu0 0
  %1558 = vmatprep.subr.bf16.mxu0 0
  %1559 = vmatpush1.bf16.msra.mxu0 0
  %1560 = vmatprep.subr.bf16.mxu0 0
  %1561 = vmatpush1.bf16.msra.mxu0 0
  %1562 = vmatprep.mubr.bf16.mxu0 0
  %1563 = vmatmul.mubr.bf16.gmra.mrb[0].mxu0 %v1489
  %v1564 = vpop.f32.mrb[0].mxu0
  %v1565 = vadd.f32 0.0, %v1564
  %v1566 = vpop.f32.mrb[0].mxu0
  %v1567 = vadd.f32 0.0, %v1566
  %v1568 = vpop.f32.mrb[0].mxu0
  %v1569 = vadd.f32 0.0, %v1568
  %v1570 = vpop.f32.mrb[0].mxu0
  %v1571 = vadd.f32 0.0, %v1570
  %1572 = vmatprep.mubr.bf16.mxu0 0
  %1573 = vmatmul.mubr.bf16.gmra.mrb[0].mxu0 %v1492
  %v1574 = vpop.f32.mrb[0].mxu0
  %v1575 = vadd.f32 0.0, %v1574
  %v1576 = vpop.f32.mrb[0].mxu0
  %v1577 = vadd.f32 0.0, %v1576
  %v1578 = vpop.f32.mrb[0].mxu0
  %v1579 = vadd.f32 0.0, %v1578
  %v1580 = vpop.f32.mrb[0].mxu0
  %v1581 = vadd.f32 0.0, %v1580
  %1582 = vmatprep.mubr.bf16.mxu0 0
  %1583 = vmatmul.mubr.bf16.gmra.mrb[0].mxu0 %v1495
  %v1584 = vpop.f32.mrb[0].mxu0
  %v1585 = vadd.f32 0.0, %v1584
  %v1586 = vpop.f32.mrb[0].mxu0
  %v1587 = vadd.f32 0.0, %v1586
  %v1588 = vpop.f32.mrb[0].mxu0
  %v1589 = vadd.f32 0.0, %v1588
  %v1590 = vpop.f32.mrb[0].mxu0
  %v1591 = vadd.f32 0.0, %v1590
  %1592 = vmatprep.mubr.bf16.mxu0 0
  %1593 = vmatmul.mubr.bf16.gmra.mrb[0].mxu0 %v1498
  %v1594 = vpop.f32.mrb[0].mxu0
  %v1595 = vadd.f32 0.0, %v1594
  %v1596 = vpop.f32.mrb[0].mxu0
  %v1597 = vadd.f32 0.0, %v1596
  %v1598 = vpop.f32.mrb[0].mxu0
  %v1599 = vadd.f32 0.0, %v1598
  %v1600 = vpop.f32.mrb[0].mxu0
  %v1601 = vadd.f32 0.0, %v1600
  %1602 = vmatprep.mubr.bf16.mxu0 0
  %1603 = vmatmul.mubr.bf16.gmra.mrb[0].mxu0 %v1501
  %v1604 = vpop.f32.mrb[0].mxu0
  %v1605 = vadd.f32 0.0, %v1604
  %v1606 = vpop.f32.mrb[0].mxu0
  %v1607 = vadd.f32 0.0, %v1606
  %v1608 = vpop.f32.mrb[0].mxu0
  %v1609 = vadd.f32 0.0, %v1608
  %v1610 = vpop.f32.mrb[0].mxu0
  %v1611 = vadd.f32 0.0, %v1610
  %1612 = vmatprep.mubr.bf16.mxu0 0
  %1613 = vmatmul.mubr.bf16.gmra.mrb[0].mxu0 %v1504
  %v1614 = vpop.f32.mrb[0].mxu0
  %v1615 = vadd.f32 0.0, %v1614
  %v1616 = vpop.f32.mrb[0].mxu0
  %v1617 = vadd.f32 0.0, %v1616
  %v1618 = vpop.f32.mrb[0].mxu0
  %v1619 = vadd.f32 0.0, %v1618
  %v1620 = vpop.f32.mrb[0].mxu0
  %v1621 = vadd.f32 0.0, %v1620
  %1622 = vmatprep.mubr.bf16.mxu0 0
  %1623 = vmatmul.mubr.bf16.gmra.mrb[0].mxu0 %v1507
  %v1624 = vpop.f32.mrb[0].mxu0
  %v1625 = vadd.f32 0.0, %v1624
  %v1626 = vpop.f32.mrb[0].mxu0
  %v1627 = vadd.f32 0.0, %v1626
  %v1628 = vpop.f32.mrb[0].mxu0
  %v1629 = vadd.f32 0.0, %v1628
  %v1630 = vpop.f32.mrb[0].mxu0
  %v1631 = vadd.f32 0.0, %v1630
  %1632 = vmatprep.mubr.bf16.mxu0 0
  %1633 = vmatmul.mubr.bf16.gmra.mrb[0].mxu0 %v1510
  %v1634 = vpop.f32.mrb[0].mxu0
  %v1635 = vadd.f32 0.0, %v1634
  %v1636 = vpop.f32.mrb[0].mxu0
  %v1637 = vadd.f32 0.0, %v1636
  %v1638 = vpop.f32.mrb[0].mxu0
  %v1639 = vadd.f32 0.0, %v1638
  %v1640 = vpop.f32.mrb[0].mxu0
  %v1641 = vadd.f32 0.0, %v1640
  %1642 = vmatprep.mubr.bf16.mxu0 0
  %1643 = vmatmul.mubr.bf16.gmra.mrb[0].mxu0 %v1513
  %v1644 = vpop.f32.mrb[0].mxu0
  %v1645 = vadd.f32 0.0, %v1644
  %v1646 = vpop.f32.mrb[0].mxu0
  %v1647 = vadd.f32 0.0, %v1646
  %v1648 = vpop.f32.mrb[0].mxu0
  %v1649 = vadd.f32 0.0, %v1648
  %v1650 = vpop.f32.mrb[0].mxu0
  %v1651 = vadd.f32 0.0, %v1650
  %1652 = vmatprep.mubr.bf16.mxu0 0
  %1653 = vmatmul.mubr.bf16.gmra.mrb[0].mxu0 %v1516
  %v1654 = vpop.f32.mrb[0].mxu0
  %v1655 = vadd.f32 0.0, %v1654
  %v1656 = vpop.f32.mrb[0].mxu0
  %v1657 = vadd.f32 0.0, %v1656
  %v1658 = vpop.f32.mrb[0].mxu0
  %v1659 = vadd.f32 0.0, %v1658
  %v1660 = vpop.f32.mrb[0].mxu0
  %v1661 = vadd.f32 0.0, %v1660
  %1662 = vmatprep.mubr.bf16.mxu0 0
  %1663 = vmatmul.mubr.bf16.gmra.mrb[0].mxu0 %v1519
  %v1664 = vpop.f32.mrb[0].mxu0
  %v1665 = vadd.f32 0.0, %v1664
  %v1666 = vpop.f32.mrb[0].mxu0
  %v1667 = vadd.f32 0.0, %v1666
  %v1668 = vpop.f32.mrb[0].mxu0
  %v1669 = vadd.f32 0.0, %v1668
  %v1670 = vpop.f32.mrb[0].mxu0
  %v1671 = vadd.f32 0.0, %v1670
  %1672 = vmatprep.mubr.bf16.mxu0 0
  %1673 = vmatmul.mubr.bf16.gmra.mrb[0].mxu0 %v1522
  %v1674 = vpop.f32.mrb[0].mxu0
  %v1675 = vadd.f32 0.0, %v1674
  %v1676 = vpop.f32.mrb[0].mxu0
  %v1677 = vadd.f32 0.0, %v1676
  %v1678 = vpop.f32.mrb[0].mxu0
  %v1679 = vadd.f32 0.0, %v1678
  %v1680 = vpop.f32.mrb[0].mxu0
  %v1681 = vadd.f32 0.0, %v1680
  %1682 = vdwg.mxu0
  %v1683 = vadd.f32 %v1218, %v1565
  %v1684 = vadd.f32 %v1219, %v1567
  %v1685 = vadd.f32 %v1220, %v1569
  %v1686 = vadd.f32 %v1221, %v1571
  %v1687 = vadd.f32 %v1222, %v1575
  %v1688 = vadd.f32 %v1223, %v1577
  %v1689 = vadd.f32 %v1224, %v1579
  %v1690 = vadd.f32 %v1225, %v1581
  %v1691 = vadd.f32 %v1226, %v1585
  %v1692 = vadd.f32 %v1227, %v1587
  %v1693 = vadd.f32 %v1228, %v1589
  %v1694 = vadd.f32 %v1229, %v1591
  %v1695 = vadd.f32 %v1230, %v1595
  %v1696 = vadd.f32 %v1231, %v1597
  %v1697 = vadd.f32 %v1232, %v1599
  %v1698 = vadd.f32 %v1233, %v1601
  %v1699 = vadd.f32 %v1234, %v1605
  %v1700 = vadd.f32 %v1235, %v1607
  %v1701 = vadd.f32 %v1236, %v1609
  %v1702 = vadd.f32 %v1237, %v1611
  %v1703 = vadd.f32 %v1238, %v1615
  %v1704 = vadd.f32 %v1239, %v1617
  %v1705 = vadd.f32 %v1240, %v1619
  %v1706 = vadd.f32 %v1241, %v1621
  %v1707 = vadd.f32 %v1242, %v1625
  %v1708 = vadd.f32 %v1243, %v1627
  %v1709 = vadd.f32 %v1244, %v1629
  %v1710 = vadd.f32 %v1245, %v1631
  %v1711 = vadd.f32 %v1246, %v1635
  %v1712 = vadd.f32 %v1247, %v1637
  %v1713 = vadd.f32 %v1248, %v1639
  %v1714 = vadd.f32 %v1249, %v1641
  %v1715 = vadd.f32 %v1250, %v1645
  %v1716 = vadd.f32 %v1251, %v1647
  %v1717 = vadd.f32 %v1252, %v1649
  %v1718 = vadd.f32 %v1253, %v1651
  %v1719 = vadd.f32 %v1254, %v1655
  %v1720 = vadd.f32 %v1255, %v1657
  %v1721 = vadd.f32 %v1256, %v1659
  %v1722 = vadd.f32 %v1257, %v1661
  %v1723 = vadd.f32 %v1258, %v1665
  %v1724 = vadd.f32 %v1259, %v1667
  %v1725 = vadd.f32 %v1260, %v1669
  %v1726 = vadd.f32 %v1261, %v1671
  %v1727 = vadd.f32 %v1262, %v1675
  %v1728 = vadd.f32 %v1263, %v1677
  %v1729 = vadd.f32 %v1264, %v1679
  %v1730 = vadd.f32 %v1265, %v1681
  %vm1731 = vcmask 1041408
  %vm1732 = vcmask 1045508
  %vm1733 = vmor %vm1731, %vm1732
  %v1734 = vrot.slane %v33, 6
  %v1735 = vrot.slane %v1734, 4
  %v1736 = vrot.slane %v34, 6
  %v1737 = vsel %vm1733, %v1735, %v1736
  %v1738 = vrot.slane %v1736, 4
  %v1739 = vrot.slane %v35, 6
  %v1740 = vsel %vm1733, %v1738, %v1739
  %v1741 = vrot.slane %v1739, 4
  %v1742 = vrot.slane %v36, 6
  %v1743 = vsel %vm1733, %v1741, %v1742
  %v1744 = vrot.slane %v37, 6
  %v1745 = vrot.slane %v1744, 4
  %v1746 = vrot.slane %v38, 6
  %v1747 = vsel %vm1733, %v1745, %v1746
  %v1748 = vrot.slane %v1746, 4
  %v1749 = vrot.slane %v39, 6
  %v1750 = vsel %vm1733, %v1748, %v1749
  %v1751 = vrot.slane %v1749, 4
  %v1752 = vrot.slane %v40, 6
  %v1753 = vsel %vm1733, %v1751, %v1752
  %v1754 = vrot.slane %v41, 6
  %v1755 = vrot.slane %v1754, 4
  %v1756 = vrot.slane %v42, 6
  %v1757 = vsel %vm1733, %v1755, %v1756
  %v1758 = vrot.slane %v1756, 4
  %v1759 = vrot.slane %v43, 6
  %v1760 = vsel %vm1733, %v1758, %v1759
  %v1761 = vrot.slane %v1759, 4
  %v1762 = vrot.slane %v44, 6
  %v1763 = vsel %vm1733, %v1761, %v1762
  %v1764 = vrot.slane %v45, 6
  %v1765 = vrot.slane %v1764, 4
  %v1766 = vrot.slane %v46, 6
  %v1767 = vsel %vm1733, %v1765, %v1766
  %v1768 = vrot.slane %v1766, 4
  %v1769 = vrot.slane %v47, 6
  %v1770 = vsel %vm1733, %v1768, %v1769
  %v1771 = vrot.slane %v1769, 4
  %v1772 = vrot.slane %v48, 6
  %v1773 = vsel %vm1733, %v1771, %v1772
  %v1774 = vrot.slane %v49, 6
  %v1775 = vrot.slane %v1774, 4
  %v1776 = vrot.slane %v50, 6
  %v1777 = vsel %vm1733, %v1775, %v1776
  %v1778 = vrot.slane %v1776, 4
  %v1779 = vrot.slane %v51, 6
  %v1780 = vsel %vm1733, %v1778, %v1779
  %v1781 = vrot.slane %v1779, 4
  %v1782 = vrot.slane %v52, 6
  %v1783 = vsel %vm1733, %v1781, %v1782
  %v1784 = vrot.slane %v53, 6
  %v1785 = vrot.slane %v1784, 4
  %v1786 = vrot.slane %v54, 6
  %v1787 = vsel %vm1733, %v1785, %v1786
  %v1788 = vrot.slane %v1786, 4
  %v1789 = vrot.slane %v55, 6
  %v1790 = vsel %vm1733, %v1788, %v1789
  %v1791 = vrot.slane %v1789, 4
  %v1792 = vrot.slane %v56, 6
  %v1793 = vsel %vm1733, %v1791, %v1792
  %v1794 = vrot.slane %v57, 6
  %v1795 = vrot.slane %v1794, 4
  %v1796 = vrot.slane %v58, 6
  %v1797 = vsel %vm1733, %v1795, %v1796
  %v1798 = vrot.slane %v1796, 4
  %v1799 = vrot.slane %v59, 6
  %v1800 = vsel %vm1733, %v1798, %v1799
  %v1801 = vrot.slane %v1799, 4
  %v1802 = vrot.slane %v60, 6
  %v1803 = vsel %vm1733, %v1801, %v1802
  %v1804 = vrot.slane %v61, 6
  %v1805 = vrot.slane %v1804, 4
  %v1806 = vrot.slane %v62, 6
  %v1807 = vsel %vm1733, %v1805, %v1806
  %v1808 = vrot.slane %v1806, 4
  %v1809 = vrot.slane %v63, 6
  %v1810 = vsel %vm1733, %v1808, %v1809
  %v1811 = vrot.slane %v1809, 4
  %v1812 = vrot.slane %v64, 6
  %v1813 = vsel %vm1733, %v1811, %v1812
  %s1814 = scalar_lea.vmem %s1, 128
  %v1815 = vld [vmem:[%s1814] sm:$0xff]
  %v1816 = vld [vmem:[%s1814 + $0x8] sm:$0xff]
  %v1817 = vld [vmem:[%s1814 + $0x10] sm:$0xff]
  %v1818 = vld [vmem:[%s1814 + $0x18] sm:$0x33]
  %v1819 = vunpack.c.l.b16 %v1737
  %v1820 = vunpack.c.l.b16 %v1740
  %v1821 = vunpack.c.l.b16 %v1743
  %v1822 = vunpack.c.l.b16 %v1747
  %v1823 = vunpack.c.l.b16 %v1750
  %v1824 = vunpack.c.l.b16 %v1753
  %v1825 = vunpack.c.l.b16 %v1757
  %v1826 = vunpack.c.l.b16 %v1760
  %v1827 = vunpack.c.l.b16 %v1763
  %v1828 = vunpack.c.l.b16 %v1767
  %v1829 = vunpack.c.l.b16 %v1770
  %v1830 = vunpack.c.l.b16 %v1773
  %v1831 = vunpack.c.l.b16 %v1777
  %v1832 = vunpack.c.l.b16 %v1780
  %v1833 = vunpack.c.l.b16 %v1783
  %v1834 = vunpack.c.l.b16 %v1787
  %v1835 = vunpack.c.l.b16 %v1790
  %v1836 = vunpack.c.l.b16 %v1793
  %v1837 = vunpack.c.l.b16 %v1797
  %v1838 = vunpack.c.l.b16 %v1800
  %v1839 = vunpack.c.l.b16 %v1803
  %v1840 = vunpack.c.l.b16 %v1807
  %v1841 = vunpack.c.l.b16 %v1810
  %v1842 = vunpack.c.l.b16 %v1813
  %v1843 = vpack.c.b16 %v1820, %v1819
  %v1844 = vpack.c.b16 %v1822, %v1821
  %v1845 = vpack.c.b16 %v1824, %v1823
  %v1846 = vpack.c.b16 %v1826, %v1825
  %v1847 = vpack.c.b16 %v1828, %v1827
  %v1848 = vpack.c.b16 %v1830, %v1829
  %v1849 = vpack.c.b16 %v1832, %v1831
  %v1850 = vpack.c.b16 %v1834, %v1833
  %v1851 = vpack.c.b16 %v1836, %v1835
  %v1852 = vpack.c.b16 %v1838, %v1837
  %v1853 = vpack.c.b16 %v1840, %v1839
  %v1854 = vpack.c.b16 %v1842, %v1841
  %v1859 = vunpack.c.l.b16 %v1815
  %v1860 = vunpack.c.h.b16 %v1815
  %v1861 = vunpack.c.l.b16 %v1816
  %v1862 = vunpack.c.h.b16 %v1816
  %v1863 = vunpack.c.l.b16 %v1817
  %v1864 = vunpack.c.h.b16 %v1817
  %v1865 = vunpack.c.l.b16 %v1818
  %v1866 = vunpack.c.h.b16 %v1818
  %v1867 = vpack.c.b16 %v1861, %v1859
  %v1868 = vpack.c.b16 %v1862, %v1860
  %v1869 = vpack.c.b16 %v1865, %v1863
  %v1870 = vpack.c.b16 %v1866, %v1864
  %v1874 = vsel %vm403, %v1843, 0
  %v1877 = vsel %vm403, %v1844, 0
  %v1880 = vsel %vm403, %v1845, 0
  %v1883 = vsel %vm403, %v1846, 0
  %v1886 = vsel %vm403, %v1847, 0
  %v1889 = vsel %vm403, %v1848, 0
  %v1892 = vsel %vm403, %v1849, 0
  %v1895 = vsel %vm403, %v1850, 0
  %v1898 = vsel %vm403, %v1851, 0
  %v1901 = vsel %vm403, %v1852, 0
  %v1904 = vsel %vm403, %v1853, 0
  %v1907 = vsel %vm403, %v1854, 0
  %v1910 = vsel %vm440, %v1869, 0
  %v1913 = vsel %vm440, %v1870, 0
  %1915 = vmatprep.subr.bf16.mxu0 %v1868
  %1916 = vmatpush1.bf16.msra.mxu0 %v1867
  %1917 = vmatprep.subr.bf16.mxu0 %v1913
  %1918 = vmatpush1.bf16.msra.mxu0 %v1910
  %1919 = vmatprep.subr.bf16.mxu0 0
  %1920 = vmatpush1.bf16.msra.mxu0 0
  %1921 = vmatprep.subr.bf16.mxu0 0
  %1922 = vmatpush1.bf16.msra.mxu0 0
  %1923 = vmatprep.subr.bf16.mxu0 0
  %1924 = vmatpush1.bf16.msra.mxu0 0
  %1925 = vmatprep.subr.bf16.mxu0 0
  %1926 = vmatpush1.bf16.msra.mxu0 0
  %1927 = vmatprep.subr.bf16.mxu0 0
  %1928 = vmatpush1.bf16.msra.mxu0 0
  %1929 = vmatprep.subr.bf16.mxu0 0
  %1930 = vmatpush1.bf16.msra.mxu0 0
  %1931 = vmatprep.subr.bf16.mxu0 0
  %1932 = vmatpush1.bf16.msra.mxu0 0
  %1933 = vmatprep.subr.bf16.mxu0 0
  %1934 = vmatpush1.bf16.msra.mxu0 0
  %1935 = vmatprep.subr.bf16.mxu0 0
  %1936 = vmatpush1.bf16.msra.mxu0 0
  %1937 = vmatprep.subr.bf16.mxu0 0
  %1938 = vmatpush1.bf16.msra.mxu0 0
  %1939 = vmatprep.subr.bf16.mxu0 0
  %1940 = vmatpush1.bf16.msra.mxu0 0
  %1941 = vmatprep.subr.bf16.mxu0 0
  %1942 = vmatpush1.bf16.msra.mxu0 0
  %1943 = vmatprep.subr.bf16.mxu0 0
  %1944 = vmatpush1.bf16.msra.mxu0 0
  %1945 = vmatprep.subr.bf16.mxu0 0
  %1946 = vmatpush1.bf16.msra.mxu0 0
  %1947 = vmatprep.mubr.bf16.mxu0 0
  %1948 = vmatmul.mubr.bf16.gmra.mrb[0].mxu0 %v1874
  %v1949 = vpop.f32.mrb[0].mxu0
  %v1950 = vadd.f32 0.0, %v1949
  %v1951 = vpop.f32.mrb[0].mxu0
  %v1952 = vadd.f32 0.0, %v1951
  %v1953 = vpop.f32.mrb[0].mxu0
  %v1954 = vadd.f32 0.0, %v1953
  %v1955 = vpop.f32.mrb[0].mxu0
  %v1956 = vadd.f32 0.0, %v1955
  %1957 = vmatprep.mubr.bf16.mxu0 0
  %1958 = vmatmul.mubr.bf16.gmra.mrb[0].mxu0 %v1877
  %v1959 = vpop.f32.mrb[0].mxu0
  %v1960 = vadd.f32 0.0, %v1959
  %v1961 = vpop.f32.mrb[0].mxu0
  %v1962 = vadd.f32 0.0, %v1961
  %v1963 = vpop.f32.mrb[0].mxu0
  %v1964 = vadd.f32 0.0, %v1963
  %v1965 = vpop.f32.mrb[0].mxu0
  %v1966 = vadd.f32 0.0, %v1965
  %1967 = vmatprep.mubr.bf16.mxu0 0
  %1968 = vmatmul.mubr.bf16.gmra.mrb[0].mxu0 %v1880
  %v1969 = vpop.f32.mrb[0].mxu0
  %v1970 = vadd.f32 0.0, %v1969
  %v1971 = vpop.f32.mrb[0].mxu0
  %v1972 = vadd.f32 0.0, %v1971
  %v1973 = vpop.f32.mrb[0].mxu0
  %v1974 = vadd.f32 0.0, %v1973
  %v1975 = vpop.f32.mrb[0].mxu0
  %v1976 = vadd.f32 0.0, %v1975
  %1977 = vmatprep.mubr.bf16.mxu0 0
  %1978 = vmatmul.mubr.bf16.gmra.mrb[0].mxu0 %v1883
  %v1979 = vpop.f32.mrb[0].mxu0
  %v1980 = vadd.f32 0.0, %v1979
  %v1981 = vpop.f32.mrb[0].mxu0
  %v1982 = vadd.f32 0.0, %v1981
  %v1983 = vpop.f32.mrb[0].mxu0
  %v1984 = vadd.f32 0.0, %v1983
  %v1985 = vpop.f32.mrb[0].mxu0
  %v1986 = vadd.f32 0.0, %v1985
  %1987 = vmatprep.mubr.bf16.mxu0 0
  %1988 = vmatmul.mubr.bf16.gmra.mrb[0].mxu0 %v1886
  %v1989 = vpop.f32.mrb[0].mxu0
  %v1990 = vadd.f32 0.0, %v1989
  %v1991 = vpop.f32.mrb[0].mxu0
  %v1992 = vadd.f32 0.0, %v1991
  %v1993 = vpop.f32.mrb[0].mxu0
  %v1994 = vadd.f32 0.0, %v1993
  %v1995 = vpop.f32.mrb[0].mxu0
  %v1996 = vadd.f32 0.0, %v1995
  %1997 = vmatprep.mubr.bf16.mxu0 0
  %1998 = vmatmul.mubr.bf16.gmra.mrb[0].mxu0 %v1889
  %v1999 = vpop.f32.mrb[0].mxu0
  %v2000 = vadd.f32 0.0, %v1999
  %v2001 = vpop.f32.mrb[0].mxu0
  %v2002 = vadd.f32 0.0, %v2001
  %v2003 = vpop.f32.mrb[0].mxu0
  %v2004 = vadd.f32 0.0, %v2003
  %v2005 = vpop.f32.mrb[0].mxu0
  %v2006 = vadd.f32 0.0, %v2005
  %2007 = vmatprep.mubr.bf16.mxu0 0
  %2008 = vmatmul.mubr.bf16.gmra.mrb[0].mxu0 %v1892
  %v2009 = vpop.f32.mrb[0].mxu0
  %v2010 = vadd.f32 0.0, %v2009
  %v2011 = vpop.f32.mrb[0].mxu0
  %v2012 = vadd.f32 0.0, %v2011
  %v2013 = vpop.f32.mrb[0].mxu0
  %v2014 = vadd.f32 0.0, %v2013
  %v2015 = vpop.f32.mrb[0].mxu0
  %v2016 = vadd.f32 0.0, %v2015
  %2017 = vmatprep.mubr.bf16.mxu0 0
  %2018 = vmatmul.mubr.bf16.gmra.mrb[0].mxu0 %v1895
  %v2019 = vpop.f32.mrb[0].mxu0
  %v2020 = vadd.f32 0.0, %v2019
  %v2021 = vpop.f32.mrb[0].mxu0
  %v2022 = vadd.f32 0.0, %v2021
  %v2023 = vpop.f32.mrb[0].mxu0
  %v2024 = vadd.f32 0.0, %v2023
  %v2025 = vpop.f32.mrb[0].mxu0
  %v2026 = vadd.f32 0.0, %v2025
  %2027 = vmatprep.mubr.bf16.mxu0 0
  %2028 = vmatmul.mubr.bf16.gmra.mrb[0].mxu0 %v1898
  %v2029 = vpop.f32.mrb[0].mxu0
  %v2030 = vadd.f32 0.0, %v2029
  %v2031 = vpop.f32.mrb[0].mxu0
  %v2032 = vadd.f32 0.0, %v2031
  %v2033 = vpop.f32.mrb[0].mxu0
  %v2034 = vadd.f32 0.0, %v2033
  %v2035 = vpop.f32.mrb[0].mxu0
  %v2036 = vadd.f32 0.0, %v2035
  %2037 = vmatprep.mubr.bf16.mxu0 0
  %2038 = vmatmul.mubr.bf16.gmra.mrb[0].mxu0 %v1901
  %v2039 = vpop.f32.mrb[0].mxu0
  %v2040 = vadd.f32 0.0, %v2039
  %v2041 = vpop.f32.mrb[0].mxu0
  %v2042 = vadd.f32 0.0, %v2041
  %v2043 = vpop.f32.mrb[0].mxu0
  %v2044 = vadd.f32 0.0, %v2043
  %v2045 = vpop.f32.mrb[0].mxu0
  %v2046 = vadd.f32 0.0, %v2045
  %2047 = vmatprep.mubr.bf16.mxu0 0
  %2048 = vmatmul.mubr.bf16.gmra.mrb[0].mxu0 %v1904
  %v2049 = vpop.f32.mrb[0].mxu0
  %v2050 = vadd.f32 0.0, %v2049
  %v2051 = vpop.f32.mrb[0].mxu0
  %v2052 = vadd.f32 0.0, %v2051
  %v2053 = vpop.f32.mrb[0].mxu0
  %v2054 = vadd.f32 0.0, %v2053
  %v2055 = vpop.f32.mrb[0].mxu0
  %v2056 = vadd.f32 0.0, %v2055
  %2057 = vmatprep.mubr.bf16.mxu0 0
  %2058 = vmatmul.mubr.bf16.gmra.mrb[0].mxu0 %v1907
  %v2059 = vpop.f32.mrb[0].mxu0
  %v2060 = vadd.f32 0.0, %v2059
  %v2061 = vpop.f32.mrb[0].mxu0
  %v2062 = vadd.f32 0.0, %v2061
  %v2063 = vpop.f32.mrb[0].mxu0
  %v2064 = vadd.f32 0.0, %v2063
  %v2065 = vpop.f32.mrb[0].mxu0
  %v2066 = vadd.f32 0.0, %v2065
  %2067 = vdwg.mxu0
  %v2068 = vadd.f32 %v1683, %v1950
  %v2069 = vadd.f32 %v1684, %v1952
  %v2070 = vadd.f32 %v1685, %v1954
  %v2071 = vadd.f32 %v1686, %v1956
  %v2072 = vadd.f32 %v1687, %v1960
  %v2073 = vadd.f32 %v1688, %v1962
  %v2074 = vadd.f32 %v1689, %v1964
  %v2075 = vadd.f32 %v1690, %v1966
  %v2076 = vadd.f32 %v1691, %v1970
  %v2077 = vadd.f32 %v1692, %v1972
  %v2078 = vadd.f32 %v1693, %v1974
  %v2079 = vadd.f32 %v1694, %v1976
  %v2080 = vadd.f32 %v1695, %v1980
  %v2081 = vadd.f32 %v1696, %v1982
  %v2082 = vadd.f32 %v1697, %v1984
  %v2083 = vadd.f32 %v1698, %v1986
  %v2084 = vadd.f32 %v1699, %v1990
  %v2085 = vadd.f32 %v1700, %v1992
  %v2086 = vadd.f32 %v1701, %v1994
  %v2087 = vadd.f32 %v1702, %v1996
  %v2088 = vadd.f32 %v1703, %v2000
  %v2089 = vadd.f32 %v1704, %v2002
  %v2090 = vadd.f32 %v1705, %v2004
  %v2091 = vadd.f32 %v1706, %v2006
  %v2092 = vadd.f32 %v1707, %v2010
  %v2093 = vadd.f32 %v1708, %v2012
  %v2094 = vadd.f32 %v1709, %v2014
  %v2095 = vadd.f32 %v1710, %v2016
  %v2096 = vadd.f32 %v1711, %v2020
  %v2097 = vadd.f32 %v1712, %v2022
  %v2098 = vadd.f32 %v1713, %v2024
  %v2099 = vadd.f32 %v1714, %v2026
  %v2100 = vadd.f32 %v1715, %v2030
  %v2101 = vadd.f32 %v1716, %v2032
  %v2102 = vadd.f32 %v1717, %v2034
  %v2103 = vadd.f32 %v1718, %v2036
  %v2104 = vadd.f32 %v1719, %v2040
  %v2105 = vadd.f32 %v1720, %v2042
  %v2106 = vadd.f32 %v1721, %v2044
  %v2107 = vadd.f32 %v1722, %v2046
  %v2108 = vadd.f32 %v1723, %v2050
  %v2109 = vadd.f32 %v1724, %v2052
  %v2110 = vadd.f32 %v1725, %v2054
  %v2111 = vadd.f32 %v1726, %v2056
  %v2112 = vadd.f32 %v1727, %v2060
  %v2113 = vadd.f32 %v1728, %v2062
  %v2114 = vadd.f32 %v1729, %v2064
  %v2115 = vadd.f32 %v1730, %v2066
  %v2116 = vld [vmem:[%s2] sm:$0x3]
  %v2118 = vlaneseq
  %v2119 = vshrl.u32 %v2118, 7
  %v2120 = vsub.s32 0, %v2119
  %v2121 = vrot.slane %v2116, %v2120
  %v2122 = vlaneseq
  %v2123 = vshrl.u32 %v2122, 7
  %v2124 = vsub.s32 1, %v2123
  %v2125 = vrot.slane %v2116, %v2124
  %v2128 = vadd.f32 %v2068, %v2121
  %v2129 = vadd.f32 %v2069, %v2125
  %v2130 = vadd.f32 %v2070, %v2121
  %v2131 = vadd.f32 %v2071, %v2125
  %v2132 = vadd.f32 %v2072, %v2121
  %v2133 = vadd.f32 %v2073, %v2125
  %v2134 = vadd.f32 %v2074, %v2121
  %v2135 = vadd.f32 %v2075, %v2125
  %v2136 = vadd.f32 %v2076, %v2121
  %v2137 = vadd.f32 %v2077, %v2125
  %v2138 = vadd.f32 %v2078, %v2121
  %v2139 = vadd.f32 %v2079, %v2125
  %v2140 = vadd.f32 %v2080, %v2121
  %v2141 = vadd.f32 %v2081, %v2125
  %v2142 = vadd.f32 %v2082, %v2121
  %v2143 = vadd.f32 %v2083, %v2125
  %v2144 = vadd.f32 %v2084, %v2121
  %v2145 = vadd.f32 %v2085, %v2125
  %v2146 = vadd.f32 %v2086, %v2121
  %v2147 = vadd.f32 %v2087, %v2125
  %v2148 = vadd.f32 %v2088, %v2121
  %v2149 = vadd.f32 %v2089, %v2125
  %v2150 = vadd.f32 %v2090, %v2121
  %v2151 = vadd.f32 %v2091, %v2125
  %v2152 = vadd.f32 %v2092, %v2121
  %v2153 = vadd.f32 %v2093, %v2125
  %v2154 = vadd.f32 %v2094, %v2121
  %v2155 = vadd.f32 %v2095, %v2125
  %v2156 = vadd.f32 %v2096, %v2121
  %v2157 = vadd.f32 %v2097, %v2125
  %v2158 = vadd.f32 %v2098, %v2121
  %v2159 = vadd.f32 %v2099, %v2125
  %v2160 = vadd.f32 %v2100, %v2121
  %v2161 = vadd.f32 %v2101, %v2125
  %v2162 = vadd.f32 %v2102, %v2121
  %v2163 = vadd.f32 %v2103, %v2125
  %v2164 = vadd.f32 %v2104, %v2121
  %v2165 = vadd.f32 %v2105, %v2125
  %v2166 = vadd.f32 %v2106, %v2121
  %v2167 = vadd.f32 %v2107, %v2125
  %v2168 = vadd.f32 %v2108, %v2121
  %v2169 = vadd.f32 %v2109, %v2125
  %v2170 = vadd.f32 %v2110, %v2121
  %v2171 = vadd.f32 %v2111, %v2125
  %v2172 = vadd.f32 %v2112, %v2121
  %v2173 = vadd.f32 %v2113, %v2125
  %v2174 = vadd.f32 %v2114, %v2121
  %v2175 = vadd.f32 %v2115, %v2125
  %2224 = vrot.lane.b32.xlu0 %v2128, 127
  %v2225 = vpop.permute.xlu0 %2224
  %2226 = vrot.lane.b32.xlu0 %v2129, 127
  %v2227 = vpop.permute.xlu0 %2226
  %2228 = vrot.lane.b32.xlu0 %v2130, 127
  %v2229 = vpop.permute.xlu0 %2228
  %2230 = vrot.lane.b32.xlu0 %v2131, 127
  %v2231 = vpop.permute.xlu0 %2230
  %2232 = vrot.lane.b32.xlu0 %v2132, 127
  %v2233 = vpop.permute.xlu0 %2232
  %2234 = vrot.lane.b32.xlu0 %v2133, 127
  %v2235 = vpop.permute.xlu0 %2234
  %2236 = vrot.lane.b32.xlu0 %v2134, 127
  %v2237 = vpop.permute.xlu0 %2236
  %2238 = vrot.lane.b32.xlu0 %v2135, 127
  %v2239 = vpop.permute.xlu0 %2238
  %2240 = vrot.lane.b32.xlu0 %v2136, 127
  %v2241 = vpop.permute.xlu0 %2240
  %2242 = vrot.lane.b32.xlu0 %v2137, 127
  %v2243 = vpop.permute.xlu0 %2242
  %2244 = vrot.lane.b32.xlu0 %v2138, 127
  %v2245 = vpop.permute.xlu0 %2244
  %2246 = vrot.lane.b32.xlu0 %v2139, 127
  %v2247 = vpop.permute.xlu0 %2246
  %2248 = vrot.lane.b32.xlu0 %v2140, 127
  %v2249 = vpop.permute.xlu0 %2248
  %2250 = vrot.lane.b32.xlu0 %v2141, 127
  %v2251 = vpop.permute.xlu0 %2250
  %2252 = vrot.lane.b32.xlu0 %v2142, 127
  %v2253 = vpop.permute.xlu0 %2252
  %2254 = vrot.lane.b32.xlu0 %v2143, 127
  %v2255 = vpop.permute.xlu0 %2254
  %2256 = vrot.lane.b32.xlu0 %v2144, 127
  %v2257 = vpop.permute.xlu0 %2256
  %2258 = vrot.lane.b32.xlu0 %v2145, 127
  %v2259 = vpop.permute.xlu0 %2258
  %2260 = vrot.lane.b32.xlu0 %v2146, 127
  %v2261 = vpop.permute.xlu0 %2260
  %2262 = vrot.lane.b32.xlu0 %v2147, 127
  %v2263 = vpop.permute.xlu0 %2262
  %2264 = vrot.lane.b32.xlu0 %v2148, 127
  %v2265 = vpop.permute.xlu0 %2264
  %2266 = vrot.lane.b32.xlu0 %v2149, 127
  %v2267 = vpop.permute.xlu0 %2266
  %2268 = vrot.lane.b32.xlu0 %v2150, 127
  %v2269 = vpop.permute.xlu0 %2268
  %2270 = vrot.lane.b32.xlu0 %v2151, 127
  %v2271 = vpop.permute.xlu0 %2270
  %2272 = vrot.lane.b32.xlu0 %v2152, 127
  %v2273 = vpop.permute.xlu0 %2272
  %2274 = vrot.lane.b32.xlu0 %v2153, 127
  %v2275 = vpop.permute.xlu0 %2274
  %2276 = vrot.lane.b32.xlu0 %v2154, 127
  %v2277 = vpop.permute.xlu0 %2276
  %2278 = vrot.lane.b32.xlu0 %v2155, 127
  %v2279 = vpop.permute.xlu0 %2278
  %2280 = vrot.lane.b32.xlu0 %v2156, 127
  %v2281 = vpop.permute.xlu0 %2280
  %2282 = vrot.lane.b32.xlu0 %v2157, 127
  %v2283 = vpop.permute.xlu0 %2282
  %2284 = vrot.lane.b32.xlu0 %v2158, 127
  %v2285 = vpop.permute.xlu0 %2284
  %2286 = vrot.lane.b32.xlu0 %v2159, 127
  %v2287 = vpop.permute.xlu0 %2286
  %2288 = vrot.lane.b32.xlu0 %v2160, 127
  %v2289 = vpop.permute.xlu0 %2288
  %2290 = vrot.lane.b32.xlu0 %v2161, 127
  %v2291 = vpop.permute.xlu0 %2290
  %2292 = vrot.lane.b32.xlu0 %v2162, 127
  %v2293 = vpop.permute.xlu0 %2292
  %2294 = vrot.lane.b32.xlu0 %v2163, 127
  %v2295 = vpop.permute.xlu0 %2294
  %2296 = vrot.lane.b32.xlu0 %v2164, 127
  %v2297 = vpop.permute.xlu0 %2296
  %2298 = vrot.lane.b32.xlu0 %v2165, 127
  %v2299 = vpop.permute.xlu0 %2298
  %2300 = vrot.lane.b32.xlu0 %v2166, 127
  %v2301 = vpop.permute.xlu0 %2300
  %2302 = vrot.lane.b32.xlu0 %v2167, 127
  %v2303 = vpop.permute.xlu0 %2302
  %2304 = vrot.lane.b32.xlu0 %v2168, 127
  %v2305 = vpop.permute.xlu0 %2304
  %2306 = vrot.lane.b32.xlu0 %v2169, 127
  %v2307 = vpop.permute.xlu0 %2306
  %2308 = vrot.lane.b32.xlu0 %v2170, 127
  %v2309 = vpop.permute.xlu0 %2308
  %2310 = vrot.lane.b32.xlu0 %v2171, 127
  %v2311 = vpop.permute.xlu0 %2310
  %2312 = vrot.lane.b32.xlu0 %v2172, 127
  %v2313 = vpop.permute.xlu0 %2312
  %2314 = vrot.lane.b32.xlu0 %v2173, 127
  %v2315 = vpop.permute.xlu0 %2314
  %2316 = vrot.lane.b32.xlu0 %v2174, 127
  %v2317 = vpop.permute.xlu0 %2316
  %2318 = vrot.lane.b32.xlu0 %v2175, 127
  %v2319 = vpop.permute.xlu0 %2318
  %vm2320 = vcmask 1039360
  %v2321 = vsel %vm2320, %v2225, %v2227
  %v2322 = vsel %vm2320, %v2229, %v2231
  %v2323 = vsel %vm2320, %v2233, %v2235
  %v2324 = vsel %vm2320, %v2237, %v2239
  %v2325 = vsel %vm2320, %v2241, %v2243
  %v2326 = vsel %vm2320, %v2245, %v2247
  %v2327 = vsel %vm2320, %v2249, %v2251
  %v2328 = vsel %vm2320, %v2253, %v2255
  %v2329 = vsel %vm2320, %v2257, %v2259
  %v2330 = vsel %vm2320, %v2261, %v2263
  %v2331 = vsel %vm2320, %v2265, %v2267
  %v2332 = vsel %vm2320, %v2269, %v2271
  %v2333 = vsel %vm2320, %v2273, %v2275
  %v2334 = vsel %vm2320, %v2277, %v2279
  %v2335 = vsel %vm2320, %v2281, %v2283
  %v2336 = vsel %vm2320, %v2285, %v2287
  %v2337 = vsel %vm2320, %v2289, %v2291
  %v2338 = vsel %vm2320, %v2293, %v2295
  %v2339 = vsel %vm2320, %v2297, %v2299
  %v2340 = vsel %vm2320, %v2301, %v2303
  %v2341 = vsel %vm2320, %v2305, %v2307
  %v2342 = vsel %vm2320, %v2309, %v2311
  %v2343 = vsel %vm2320, %v2313, %v2315
  %v2344 = vsel %vm2320, %v2317, %v2319
  %2393 = vrot.lane.b32.xlu0 %v2128, 111
  %v2394 = vpop.permute.xlu0 %2393
  %2395 = vrot.lane.b32.xlu0 %v2130, 111
  %v2396 = vpop.permute.xlu0 %2395
  %2397 = vrot.lane.b32.xlu0 %v2132, 111
  %v2398 = vpop.permute.xlu0 %2397
  %2399 = vrot.lane.b32.xlu0 %v2134, 111
  %v2400 = vpop.permute.xlu0 %2399
  %2401 = vrot.lane.b32.xlu0 %v2136, 111
  %v2402 = vpop.permute.xlu0 %2401
  %2403 = vrot.lane.b32.xlu0 %v2138, 111
  %v2404 = vpop.permute.xlu0 %2403
  %2405 = vrot.lane.b32.xlu0 %v2140, 111
  %v2406 = vpop.permute.xlu0 %2405
  %2407 = vrot.lane.b32.xlu0 %v2142, 111
  %v2408 = vpop.permute.xlu0 %2407
  %2409 = vrot.lane.b32.xlu0 %v2144, 111
  %v2410 = vpop.permute.xlu0 %2409
  %2411 = vrot.lane.b32.xlu0 %v2146, 111
  %v2412 = vpop.permute.xlu0 %2411
  %2413 = vrot.lane.b32.xlu0 %v2148, 111
  %v2414 = vpop.permute.xlu0 %2413
  %2415 = vrot.lane.b32.xlu0 %v2150, 111
  %v2416 = vpop.permute.xlu0 %2415
  %2417 = vrot.lane.b32.xlu0 %v2152, 111
  %v2418 = vpop.permute.xlu0 %2417
  %2419 = vrot.lane.b32.xlu0 %v2154, 111
  %v2420 = vpop.permute.xlu0 %2419
  %2421 = vrot.lane.b32.xlu0 %v2156, 111
  %v2422 = vpop.permute.xlu0 %2421
  %2423 = vrot.lane.b32.xlu0 %v2158, 111
  %v2424 = vpop.permute.xlu0 %2423
  %2425 = vrot.lane.b32.xlu0 %v2160, 111
  %v2426 = vpop.permute.xlu0 %2425
  %2427 = vrot.lane.b32.xlu0 %v2162, 111
  %v2428 = vpop.permute.xlu0 %2427
  %2429 = vrot.lane.b32.xlu0 %v2164, 111
  %v2430 = vpop.permute.xlu0 %2429
  %2431 = vrot.lane.b32.xlu0 %v2166, 111
  %v2432 = vpop.permute.xlu0 %2431
  %2433 = vrot.lane.b32.xlu0 %v2168, 111
  %v2434 = vpop.permute.xlu0 %2433
  %2435 = vrot.lane.b32.xlu0 %v2170, 111
  %v2436 = vpop.permute.xlu0 %2435
  %2437 = vrot.lane.b32.xlu0 %v2172, 111
  %v2438 = vpop.permute.xlu0 %2437
  %2439 = vrot.lane.b32.xlu0 %v2174, 111
  %v2440 = vpop.permute.xlu0 %2439
  %vm2465 = vcmask 908288
  %v2466 = vsel %vm2465, %v2227, %v2394
  %v2467 = vsel %vm2465, %v2231, %v2396
  %v2468 = vsel %vm2465, %v2235, %v2398
  %v2469 = vsel %vm2465, %v2239, %v2400
  %v2470 = vsel %vm2465, %v2243, %v2402
  %v2471 = vsel %vm2465, %v2247, %v2404
  %v2472 = vsel %vm2465, %v2251, %v2406
  %v2473 = vsel %vm2465, %v2255, %v2408
  %v2474 = vsel %vm2465, %v2259, %v2410
  %v2475 = vsel %vm2465, %v2263, %v2412
  %v2476 = vsel %vm2465, %v2267, %v2414
  %v2477 = vsel %vm2465, %v2271, %v2416
  %v2478 = vsel %vm2465, %v2275, %v2418
  %v2479 = vsel %vm2465, %v2279, %v2420
  %v2480 = vsel %vm2465, %v2283, %v2422
  %v2481 = vsel %vm2465, %v2287, %v2424
  %v2482 = vsel %vm2465, %v2291, %v2426
  %v2483 = vsel %vm2465, %v2295, %v2428
  %v2484 = vsel %vm2465, %v2299, %v2430
  %v2485 = vsel %vm2465, %v2303, %v2432
  %v2486 = vsel %vm2465, %v2307, %v2434
  %v2487 = vsel %vm2465, %v2311, %v2436
  %v2488 = vsel %vm2465, %v2315, %v2438
  %v2489 = vsel %vm2465, %v2319, %v2440
  %v2490 = vmax.f32 %v2128, %v2321
  %v2491 = vmax.f32 %v2129, %v2466
  %v2492 = vmax.f32 %v2130, %v2322
  %v2493 = vmax.f32 %v2131, %v2467
  %v2494 = vmax.f32 %v2132, %v2323
  %v2495 = vmax.f32 %v2133, %v2468
  %v2496 = vmax.f32 %v2134, %v2324
  %v2497 = vmax.f32 %v2135, %v2469
  %v2498 = vmax.f32 %v2136, %v2325
  %v2499 = vmax.f32 %v2137, %v2470
  %v2500 = vmax.f32 %v2138, %v2326
  %v2501 = vmax.f32 %v2139, %v2471
  %v2502 = vmax.f32 %v2140, %v2327
  %v2503 = vmax.f32 %v2141, %v2472
  %v2504 = vmax.f32 %v2142, %v2328
  %v2505 = vmax.f32 %v2143, %v2473
  %v2506 = vmax.f32 %v2144, %v2329
  %v2507 = vmax.f32 %v2145, %v2474
  %v2508 = vmax.f32 %v2146, %v2330
  %v2509 = vmax.f32 %v2147, %v2475
  %v2510 = vmax.f32 %v2148, %v2331
  %v2511 = vmax.f32 %v2149, %v2476
  %v2512 = vmax.f32 %v2150, %v2332
  %v2513 = vmax.f32 %v2151, %v2477
  %v2514 = vmax.f32 %v2152, %v2333
  %v2515 = vmax.f32 %v2153, %v2478
  %v2516 = vmax.f32 %v2154, %v2334
  %v2517 = vmax.f32 %v2155, %v2479
  %v2518 = vmax.f32 %v2156, %v2335
  %v2519 = vmax.f32 %v2157, %v2480
  %v2520 = vmax.f32 %v2158, %v2336
  %v2521 = vmax.f32 %v2159, %v2481
  %v2522 = vmax.f32 %v2160, %v2337
  %v2523 = vmax.f32 %v2161, %v2482
  %v2524 = vmax.f32 %v2162, %v2338
  %v2525 = vmax.f32 %v2163, %v2483
  %v2526 = vmax.f32 %v2164, %v2339
  %v2527 = vmax.f32 %v2165, %v2484
  %v2528 = vmax.f32 %v2166, %v2340
  %v2529 = vmax.f32 %v2167, %v2485
  %v2530 = vmax.f32 %v2168, %v2341
  %v2531 = vmax.f32 %v2169, %v2486
  %v2532 = vmax.f32 %v2170, %v2342
  %v2533 = vmax.f32 %v2171, %v2487
  %v2534 = vmax.f32 %v2172, %v2343
  %v2535 = vmax.f32 %v2173, %v2488
  %v2536 = vmax.f32 %v2174, %v2344
  %v2537 = vmax.f32 %v2175, %v2489
  %v2538 = vmax.f32 %v2490, 0.0
  %v2539 = vmax.f32 %v2491, 0.0
  %v2540 = vmax.f32 %v2492, 0.0
  %v2541 = vmax.f32 %v2493, 0.0
  %v2542 = vmax.f32 %v2494, 0.0
  %v2543 = vmax.f32 %v2495, 0.0
  %v2544 = vmax.f32 %v2496, 0.0
  %v2545 = vmax.f32 %v2497, 0.0
  %v2546 = vmax.f32 %v2498, 0.0
  %v2547 = vmax.f32 %v2499, 0.0
  %v2548 = vmax.f32 %v2500, 0.0
  %v2549 = vmax.f32 %v2501, 0.0
  %v2550 = vmax.f32 %v2502, 0.0
  %v2551 = vmax.f32 %v2503, 0.0
  %v2552 = vmax.f32 %v2504, 0.0
  %v2553 = vmax.f32 %v2505, 0.0
  %v2554 = vmax.f32 %v2506, 0.0
  %v2555 = vmax.f32 %v2507, 0.0
  %v2556 = vmax.f32 %v2508, 0.0
  %v2557 = vmax.f32 %v2509, 0.0
  %v2558 = vmax.f32 %v2510, 0.0
  %v2559 = vmax.f32 %v2511, 0.0
  %v2560 = vmax.f32 %v2512, 0.0
  %v2561 = vmax.f32 %v2513, 0.0
  %v2562 = vmax.f32 %v2514, 0.0
  %v2563 = vmax.f32 %v2515, 0.0
  %v2564 = vmax.f32 %v2516, 0.0
  %v2565 = vmax.f32 %v2517, 0.0
  %v2566 = vmax.f32 %v2518, 0.0
  %v2567 = vmax.f32 %v2519, 0.0
  %v2568 = vmax.f32 %v2520, 0.0
  %v2569 = vmax.f32 %v2521, 0.0
  %v2570 = vmax.f32 %v2522, 0.0
  %v2571 = vmax.f32 %v2523, 0.0
  %v2572 = vmax.f32 %v2524, 0.0
  %v2573 = vmax.f32 %v2525, 0.0
  %v2574 = vmax.f32 %v2526, 0.0
  %v2575 = vmax.f32 %v2527, 0.0
  %v2576 = vmax.f32 %v2528, 0.0
  %v2577 = vmax.f32 %v2529, 0.0
  %v2578 = vmax.f32 %v2530, 0.0
  %v2579 = vmax.f32 %v2531, 0.0
  %v2580 = vmax.f32 %v2532, 0.0
  %v2581 = vmax.f32 %v2533, 0.0
  %v2582 = vmax.f32 %v2534, 0.0
  %v2583 = vmax.f32 %v2535, 0.0
  %v2584 = vmax.f32 %v2536, 0.0
  %v2585 = vmax.f32 %v2537, 0.0
  %vm2634 = vcmask 1046528
  %v2635 = vrot.slane %v2538, 1
  %v2636 = vrot.slane %v2540, 1
  %v2637 = vsel %vm2634, %v2635, %v2636
  %v2638 = vrot.slane %v2539, 1
  %v2639 = vrot.slane %v2541, 1
  %v2640 = vsel %vm2634, %v2638, %v2639
  %v2641 = vrot.slane %v2542, 1
  %v2642 = vsel %vm2634, %v2636, %v2641
  %v2643 = vrot.slane %v2543, 1
  %v2644 = vsel %vm2634, %v2639, %v2643
  %v2645 = vrot.slane %v2544, 1
  %v2646 = vsel %vm2634, %v2641, %v2645
  %v2647 = vrot.slane %v2545, 1
  %v2648 = vsel %vm2634, %v2643, %v2647
  %v2649 = vrot.slane %v2546, 1
  %v2650 = vsel %vm2634, %v2645, %v2649
  %v2651 = vrot.slane %v2547, 1
  %v2652 = vsel %vm2634, %v2647, %v2651
  %v2653 = vrot.slane %v2548, 1
  %v2654 = vsel %vm2634, %v2649, %v2653
  %v2655 = vrot.slane %v2549, 1
  %v2656 = vsel %vm2634, %v2651, %v2655
  %v2657 = vrot.slane %v2550, 1
  %v2658 = vsel %vm2634, %v2653, %v2657
  %v2659 = vrot.slane %v2551, 1
  %v2660 = vsel %vm2634, %v2655, %v2659
  %v2661 = vrot.slane %v2552, 1
  %v2662 = vsel %vm2634, %v2657, %v2661
  %v2663 = vrot.slane %v2553, 1
  %v2664 = vsel %vm2634, %v2659, %v2663
  %v2665 = vrot.slane %v2554, 1
  %v2666 = vsel %vm2634, %v2661, %v2665
  %v2667 = vrot.slane %v2555, 1
  %v2668 = vsel %vm2634, %v2663, %v2667
  %v2669 = vrot.slane %v2556, 1
  %v2670 = vsel %vm2634, %v2665, %v2669
  %v2671 = vrot.slane %v2557, 1
  %v2672 = vsel %vm2634, %v2667, %v2671
  %v2673 = vrot.slane %v2558, 1
  %v2674 = vsel %vm2634, %v2669, %v2673
  %v2675 = vrot.slane %v2559, 1
  %v2676 = vsel %vm2634, %v2671, %v2675
  %v2677 = vrot.slane %v2560, 1
  %v2678 = vsel %vm2634, %v2673, %v2677
  %v2679 = vrot.slane %v2561, 1
  %v2680 = vsel %vm2634, %v2675, %v2679
  %v2681 = vrot.slane %v2562, 1
  %v2682 = vsel %vm2634, %v2677, %v2681
  %v2683 = vrot.slane %v2563, 1
  %v2684 = vsel %vm2634, %v2679, %v2683
  %v2685 = vrot.slane %v2564, 1
  %v2686 = vsel %vm2634, %v2681, %v2685
  %v2687 = vrot.slane %v2565, 1
  %v2688 = vsel %vm2634, %v2683, %v2687
  %v2689 = vrot.slane %v2566, 1
  %v2690 = vsel %vm2634, %v2685, %v2689
  %v2691 = vrot.slane %v2567, 1
  %v2692 = vsel %vm2634, %v2687, %v2691
  %v2693 = vrot.slane %v2568, 1
  %v2694 = vsel %vm2634, %v2689, %v2693
  %v2695 = vrot.slane %v2569, 1
  %v2696 = vsel %vm2634, %v2691, %v2695
  %v2697 = vrot.slane %v2570, 1
  %v2698 = vsel %vm2634, %v2693, %v2697
  %v2699 = vrot.slane %v2571, 1
  %v2700 = vsel %vm2634, %v2695, %v2699
  %v2701 = vrot.slane %v2572, 1
  %v2702 = vsel %vm2634, %v2697, %v2701
  %v2703 = vrot.slane %v2573, 1
  %v2704 = vsel %vm2634, %v2699, %v2703
  %v2705 = vrot.slane %v2574, 1
  %v2706 = vsel %vm2634, %v2701, %v2705
  %v2707 = vrot.slane %v2575, 1
  %v2708 = vsel %vm2634, %v2703, %v2707
  %v2709 = vrot.slane %v2576, 1
  %v2710 = vsel %vm2634, %v2705, %v2709
  %v2711 = vrot.slane %v2577, 1
  %v2712 = vsel %vm2634, %v2707, %v2711
  %v2713 = vrot.slane %v2578, 1
  %v2714 = vsel %vm2634, %v2709, %v2713
  %v2715 = vrot.slane %v2579, 1
  %v2716 = vsel %vm2634, %v2711, %v2715
  %v2717 = vrot.slane %v2580, 1
  %v2718 = vsel %vm2634, %v2713, %v2717
  %v2719 = vrot.slane %v2581, 1
  %v2720 = vsel %vm2634, %v2715, %v2719
  %v2721 = vrot.slane %v2582, 1
  %v2722 = vsel %vm2634, %v2717, %v2721
  %v2723 = vrot.slane %v2583, 1
  %v2724 = vsel %vm2634, %v2719, %v2723
  %v2725 = vrot.slane %v2584, 1
  %v2726 = vsel %vm2634, %v2721, %v2725
  %v2727 = vrot.slane %v2585, 1
  %v2728 = vsel %vm2634, %v2723, %v2727
  %v2779 = vsel %vm2634, %v2725, %v2635
  %v2780 = vsel %vm2634, %v2727, %v2638
  %v2781 = vmax.f32 %v2538, %v2637
  %v2782 = vmax.f32 %v2539, %v2640
  %v2783 = vmax.f32 %v2540, %v2642
  %v2784 = vmax.f32 %v2541, %v2644
  %v2785 = vmax.f32 %v2542, %v2646
  %v2786 = vmax.f32 %v2543, %v2648
  %v2787 = vmax.f32 %v2544, %v2650
  %v2788 = vmax.f32 %v2545, %v2652
  %v2789 = vmax.f32 %v2546, %v2654
  %v2790 = vmax.f32 %v2547, %v2656
  %v2791 = vmax.f32 %v2548, %v2658
  %v2792 = vmax.f32 %v2549, %v2660
  %v2793 = vmax.f32 %v2550, %v2662
  %v2794 = vmax.f32 %v2551, %v2664
  %v2795 = vmax.f32 %v2552, %v2666
  %v2796 = vmax.f32 %v2553, %v2668
  %v2797 = vmax.f32 %v2554, %v2670
  %v2798 = vmax.f32 %v2555, %v2672
  %v2799 = vmax.f32 %v2556, %v2674
  %v2800 = vmax.f32 %v2557, %v2676
  %v2801 = vmax.f32 %v2558, %v2678
  %v2802 = vmax.f32 %v2559, %v2680
  %v2803 = vmax.f32 %v2560, %v2682
  %v2804 = vmax.f32 %v2561, %v2684
  %v2805 = vmax.f32 %v2562, %v2686
  %v2806 = vmax.f32 %v2563, %v2688
  %v2807 = vmax.f32 %v2564, %v2690
  %v2808 = vmax.f32 %v2565, %v2692
  %v2809 = vmax.f32 %v2566, %v2694
  %v2810 = vmax.f32 %v2567, %v2696
  %v2811 = vmax.f32 %v2568, %v2698
  %v2812 = vmax.f32 %v2569, %v2700
  %v2813 = vmax.f32 %v2570, %v2702
  %v2814 = vmax.f32 %v2571, %v2704
  %v2815 = vmax.f32 %v2572, %v2706
  %v2816 = vmax.f32 %v2573, %v2708
  %v2817 = vmax.f32 %v2574, %v2710
  %v2818 = vmax.f32 %v2575, %v2712
  %v2819 = vmax.f32 %v2576, %v2714
  %v2820 = vmax.f32 %v2577, %v2716
  %v2821 = vmax.f32 %v2578, %v2718
  %v2822 = vmax.f32 %v2579, %v2720
  %v2823 = vmax.f32 %v2580, %v2722
  %v2824 = vmax.f32 %v2581, %v2724
  %v2825 = vmax.f32 %v2582, %v2726
  %v2826 = vmax.f32 %v2583, %v2728
  %v2827 = vmax.f32 %v2584, %v2779
  %v2828 = vmax.f32 %v2585, %v2780
  %v2829 = vpack.c.bf16 %v2783, %v2781
  %v2830 = vpack.c.bf16 %v2784, %v2782
  %v2831 = vpack.c.bf16 %v2789, %v2787
  %v2832 = vpack.c.bf16 %v2790, %v2788
  %v2833 = vpack.c.bf16 %v2795, %v2793
  %v2834 = vpack.c.bf16 %v2796, %v2794
  %v2835 = vpack.c.bf16 %v2801, %v2799
  %v2836 = vpack.c.bf16 %v2802, %v2800
  %v2837 = vpack.c.bf16 %v2807, %v2805
  %v2838 = vpack.c.bf16 %v2808, %v2806
  %v2839 = vpack.c.bf16 %v2813, %v2811
  %v2840 = vpack.c.bf16 %v2814, %v2812
  %v2841 = vpack.c.bf16 %v2819, %v2817
  %v2842 = vpack.c.bf16 %v2820, %v2818
  %v2843 = vpack.c.bf16 %v2825, %v2823
  %v2844 = vpack.c.bf16 %v2826, %v2824
  %v2845 = vld [vmem:[%s3] sm:$0xff]
  %v2846 = vld [vmem:[%s3 + $0x8] sm:$0xff]
  %v2847 = vld [vmem:[%s3 + $0x10] sm:$0xff]
  %v2848 = vld [vmem:[%s3 + $0x18] sm:$0xff]
  %v2849 = vld [vmem:[%s3 + $0x20] sm:$0xff]
  %v2850 = vld [vmem:[%s3 + $0x28] sm:$0xff]
  %v2851 = vld [vmem:[%s3 + $0x30] sm:$0xff]
  %v2852 = vld [vmem:[%s3 + $0x38] sm:$0xff]
  %v2853 = vld [vmem:[%s3 + $0x40] sm:$0xff]
  %v2854 = vld [vmem:[%s3 + $0x48] sm:$0xff]
  %v2855 = vld [vmem:[%s3 + $0x50] sm:$0xff]
  %v2856 = vld [vmem:[%s3 + $0x58] sm:$0xff]
  %v2857 = vld [vmem:[%s3 + $0x60] sm:$0xff]
  %v2858 = vld [vmem:[%s3 + $0x68] sm:$0xff]
  %v2859 = vld [vmem:[%s3 + $0x70] sm:$0xff]
  %v2860 = vld [vmem:[%s3 + $0x78] sm:$0xff]
  %v2861 = vld [vmem:[%s3 + $0x80] sm:$0xff]
  %v2862 = vld [vmem:[%s3 + $0x88] sm:$0xff]
  %v2863 = vld [vmem:[%s3 + $0x90] sm:$0xff]
  %v2864 = vld [vmem:[%s3 + $0x98] sm:$0xff]
  %v2865 = vld [vmem:[%s3 + $0xa0] sm:$0xff]
  %v2866 = vld [vmem:[%s3 + $0xa8] sm:$0xff]
  %v2867 = vld [vmem:[%s3 + $0xb0] sm:$0xff]
  %v2868 = vld [vmem:[%s3 + $0xb8] sm:$0xff]
  %v2869 = vld [vmem:[%s3 + $0xc0] sm:$0xff]
  %v2870 = vld [vmem:[%s3 + $0xc8] sm:$0xff]
  %v2871 = vld [vmem:[%s3 + $0xd0] sm:$0xff]
  %v2872 = vld [vmem:[%s3 + $0xd8] sm:$0xff]
  %v2873 = vld [vmem:[%s3 + $0xe0] sm:$0xff]
  %v2874 = vld [vmem:[%s3 + $0xe8] sm:$0xff]
  %v2923 = vrot.slane %v2781, 2
  %v2924 = vrot.slane %v2783, 2
  %v2925 = vsel %vm440, %v2923, %v2924
  %v2926 = vrot.slane %v2782, 2
  %v2927 = vrot.slane %v2784, 2
  %v2928 = vsel %vm440, %v2926, %v2927
  %v2929 = vrot.slane %v2785, 2
  %v2930 = vsel %vm440, %v2924, %v2929
  %v2931 = vrot.slane %v2786, 2
  %v2932 = vsel %vm440, %v2927, %v2931
  %v2933 = vrot.slane %v2787, 2
  %v2934 = vrot.slane %v2789, 2
  %v2935 = vsel %vm440, %v2933, %v2934
  %v2936 = vrot.slane %v2788, 2
  %v2937 = vrot.slane %v2790, 2
  %v2938 = vsel %vm440, %v2936, %v2937
  %v2939 = vrot.slane %v2791, 2
  %v2940 = vsel %vm440, %v2934, %v2939
  %v2941 = vrot.slane %v2792, 2
  %v2942 = vsel %vm440, %v2937, %v2941
  %v2943 = vrot.slane %v2793, 2
  %v2944 = vrot.slane %v2795, 2
  %v2945 = vsel %vm440, %v2943, %v2944
  %v2946 = vrot.slane %v2794, 2
  %v2947 = vrot.slane %v2796, 2
  %v2948 = vsel %vm440, %v2946, %v2947
  %v2949 = vrot.slane %v2797, 2
  %v2950 = vsel %vm440, %v2944, %v2949
  %v2951 = vrot.slane %v2798, 2
  %v2952 = vsel %vm440, %v2947, %v2951
  %v2953 = vrot.slane %v2799, 2
  %v2954 = vrot.slane %v2801, 2
  %v2955 = vsel %vm440, %v2953, %v2954
  %v2956 = vrot.slane %v2800, 2
  %v2957 = vrot.slane %v2802, 2
  %v2958 = vsel %vm440, %v2956, %v2957
  %v2959 = vrot.slane %v2803, 2
  %v2960 = vsel %vm440, %v2954, %v2959
  %v2961 = vrot.slane %v2804, 2
  %v2962 = vsel %vm440, %v2957, %v2961
  %v2963 = vrot.slane %v2805, 2
  %v2964 = vrot.slane %v2807, 2
  %v2965 = vsel %vm440, %v2963, %v2964
  %v2966 = vrot.slane %v2806, 2
  %v2967 = vrot.slane %v2808, 2
  %v2968 = vsel %vm440, %v2966, %v2967
  %v2969 = vrot.slane %v2809, 2
  %v2970 = vsel %vm440, %v2964, %v2969
  %v2971 = vrot.slane %v2810, 2
  %v2972 = vsel %vm440, %v2967, %v2971
  %v2973 = vrot.slane %v2811, 2
  %v2974 = vrot.slane %v2813, 2
  %v2975 = vsel %vm440, %v2973, %v2974
  %v2976 = vrot.slane %v2812, 2
  %v2977 = vrot.slane %v2814, 2
  %v2978 = vsel %vm440, %v2976, %v2977
  %v2979 = vrot.slane %v2815, 2
  %v2980 = vsel %vm440, %v2974, %v2979
  %v2981 = vrot.slane %v2816, 2
  %v2982 = vsel %vm440, %v2977, %v2981
  %v2983 = vrot.slane %v2817, 2
  %v2984 = vrot.slane %v2819, 2
  %v2985 = vsel %vm440, %v2983, %v2984
  %v2986 = vrot.slane %v2818, 2
  %v2987 = vrot.slane %v2820, 2
  %v2988 = vsel %vm440, %v2986, %v2987
  %v2989 = vrot.slane %v2821, 2
  %v2990 = vsel %vm440, %v2984, %v2989
  %v2991 = vrot.slane %v2822, 2
  %v2992 = vsel %vm440, %v2987, %v2991
  %v2993 = vrot.slane %v2823, 2
  %v2994 = vrot.slane %v2825, 2
  %v2995 = vsel %vm440, %v2993, %v2994
  %v2996 = vrot.slane %v2824, 2
  %v2997 = vrot.slane %v2826, 2
  %v2998 = vsel %vm440, %v2996, %v2997
  %v2999 = vrot.slane %v2827, 2
  %v3000 = vsel %vm440, %v2994, %v2999
  %v3001 = vrot.slane %v2828, 2
  %v3002 = vsel %vm440, %v2997, %v3001
  %v3035 = vpack.c.bf16 %v2930, %v2925
  %v3036 = vpack.c.bf16 %v2932, %v2928
  %v3037 = vpack.c.bf16 %v2940, %v2935
  %v3038 = vpack.c.bf16 %v2942, %v2938
  %v3039 = vpack.c.bf16 %v2950, %v2945
  %v3040 = vpack.c.bf16 %v2952, %v2948
  %v3041 = vpack.c.bf16 %v2960, %v2955
  %v3042 = vpack.c.bf16 %v2962, %v2958
  %v3043 = vpack.c.bf16 %v2970, %v2965
  %v3044 = vpack.c.bf16 %v2972, %v2968
  %v3045 = vpack.c.bf16 %v2980, %v2975
  %v3046 = vpack.c.bf16 %v2982, %v2978
  %v3047 = vpack.c.bf16 %v2990, %v2985
  %v3048 = vpack.c.bf16 %v2992, %v2988
  %v3049 = vpack.c.bf16 %v3000, %v2995
  %v3050 = vpack.c.bf16 %v3002, %v2998
  %s3051 = scalar_lea.vmem %s3, 240
  %v3052 = vld [vmem:[%s3051] sm:$0xff]
  %v3053 = vld [vmem:[%s3051 + $0x8] sm:$0xff]
  %v3054 = vld [vmem:[%s3051 + $0x10] sm:$0xff]
  %v3055 = vld [vmem:[%s3051 + $0x18] sm:$0xff]
  %v3056 = vld [vmem:[%s3051 + $0x20] sm:$0xff]
  %v3057 = vld [vmem:[%s3051 + $0x28] sm:$0xff]
  %v3058 = vld [vmem:[%s3051 + $0x30] sm:$0xff]
  %v3059 = vld [vmem:[%s3051 + $0x38] sm:$0xff]
  %v3060 = vld [vmem:[%s3051 + $0x40] sm:$0xff]
  %v3061 = vld [vmem:[%s3051 + $0x48] sm:$0xff]
  %v3062 = vld [vmem:[%s3051 + $0x50] sm:$0xff]
  %v3063 = vld [vmem:[%s3051 + $0x58] sm:$0xff]
  %v3064 = vld [vmem:[%s3051 + $0x60] sm:$0xff]
  %v3065 = vld [vmem:[%s3051 + $0x68] sm:$0xff]
  %v3066 = vld [vmem:[%s3051 + $0x70] sm:$0xff]
  %v3067 = vld [vmem:[%s3051 + $0x78] sm:$0xff]
  %v3068 = vld [vmem:[%s3051 + $0x80] sm:$0xff]
  %v3069 = vld [vmem:[%s3051 + $0x88] sm:$0xff]
  %v3070 = vld [vmem:[%s3051 + $0x90] sm:$0xff]
  %v3071 = vld [vmem:[%s3051 + $0x98] sm:$0xff]
  %v3072 = vld [vmem:[%s3051 + $0xa0] sm:$0xff]
  %v3073 = vld [vmem:[%s3051 + $0xa8] sm:$0xff]
  %v3074 = vld [vmem:[%s3051 + $0xb0] sm:$0xff]
  %v3075 = vld [vmem:[%s3051 + $0xb8] sm:$0xff]
  %v3076 = vld [vmem:[%s3051 + $0xc0] sm:$0xff]
  %v3077 = vld [vmem:[%s3051 + $0xc8] sm:$0xff]
  %v3078 = vld [vmem:[%s3051 + $0xd0] sm:$0xff]
  %v3079 = vld [vmem:[%s3051 + $0xd8] sm:$0xff]
  %v3080 = vld [vmem:[%s3051 + $0xe0] sm:$0xff]
  %v3081 = vld [vmem:[%s3051 + $0xe8] sm:$0xff]
  %v3112 = vunpack.c.l.b16 %v3052
  %v3113 = vunpack.c.h.b16 %v3052
  %v3114 = vunpack.c.l.b16 %v3053
  %v3115 = vunpack.c.h.b16 %v3053
  %v3116 = vunpack.c.l.b16 %v3054
  %v3117 = vunpack.c.h.b16 %v3054
  %v3118 = vunpack.c.l.b16 %v3055
  %v3119 = vunpack.c.h.b16 %v3055
  %v3120 = vunpack.c.l.b16 %v3056
  %v3121 = vunpack.c.h.b16 %v3056
  %v3122 = vunpack.c.l.b16 %v3057
  %v3123 = vunpack.c.h.b16 %v3057
  %v3124 = vunpack.c.l.b16 %v3058
  %v3125 = vunpack.c.h.b16 %v3058
  %v3126 = vunpack.c.l.b16 %v3059
  %v3127 = vunpack.c.h.b16 %v3059
  %v3128 = vunpack.c.l.b16 %v3060
  %v3129 = vunpack.c.h.b16 %v3060
  %v3130 = vunpack.c.l.b16 %v3061
  %v3131 = vunpack.c.h.b16 %v3061
  %v3132 = vunpack.c.l.b16 %v3062
  %v3133 = vunpack.c.h.b16 %v3062
  %v3134 = vunpack.c.l.b16 %v3063
  %v3135 = vunpack.c.h.b16 %v3063
  %v3136 = vunpack.c.l.b16 %v3064
  %v3137 = vunpack.c.h.b16 %v3064
  %v3138 = vunpack.c.l.b16 %v3065
  %v3139 = vunpack.c.h.b16 %v3065
  %v3140 = vunpack.c.l.b16 %v3066
  %v3141 = vunpack.c.h.b16 %v3066
  %v3142 = vunpack.c.l.b16 %v3067
  %v3143 = vunpack.c.h.b16 %v3067
  %v3144 = vunpack.c.l.b16 %v3068
  %v3145 = vunpack.c.h.b16 %v3068
  %v3146 = vunpack.c.l.b16 %v3069
  %v3147 = vunpack.c.h.b16 %v3069
  %v3148 = vunpack.c.l.b16 %v3070
  %v3149 = vunpack.c.h.b16 %v3070
  %v3150 = vunpack.c.l.b16 %v3071
  %v3151 = vunpack.c.h.b16 %v3071
  %v3152 = vunpack.c.l.b16 %v3072
  %v3153 = vunpack.c.h.b16 %v3072
  %v3154 = vunpack.c.l.b16 %v3073
  %v3155 = vunpack.c.h.b16 %v3073
  %v3156 = vunpack.c.l.b16 %v3074
  %v3157 = vunpack.c.h.b16 %v3074
  %v3158 = vunpack.c.l.b16 %v3075
  %v3159 = vunpack.c.h.b16 %v3075
  %v3160 = vunpack.c.l.b16 %v3076
  %v3161 = vunpack.c.h.b16 %v3076
  %v3162 = vunpack.c.l.b16 %v3077
  %v3163 = vunpack.c.h.b16 %v3077
  %v3164 = vunpack.c.l.b16 %v3078
  %v3165 = vunpack.c.h.b16 %v3078
  %v3166 = vunpack.c.l.b16 %v3079
  %v3167 = vunpack.c.h.b16 %v3079
  %v3168 = vunpack.c.l.b16 %v3080
  %v3169 = vunpack.c.h.b16 %v3080
  %v3170 = vunpack.c.l.b16 %v3081
  %v3171 = vunpack.c.h.b16 %v3081
  %v3172 = vpack.c.b16 %v3114, %v3112
  %v3173 = vpack.c.b16 %v3115, %v3113
  %v3174 = vpack.c.b16 %v3118, %v3116
  %v3175 = vpack.c.b16 %v3119, %v3117
  %v3176 = vpack.c.b16 %v3122, %v3120
  %v3177 = vpack.c.b16 %v3123, %v3121
  %v3178 = vpack.c.b16 %v3126, %v3124
  %v3179 = vpack.c.b16 %v3127, %v3125
  %v3180 = vpack.c.b16 %v3130, %v3128
  %v3181 = vpack.c.b16 %v3131, %v3129
  %v3182 = vpack.c.b16 %v3134, %v3132
  %v3183 = vpack.c.b16 %v3135, %v3133
  %v3184 = vpack.c.b16 %v3138, %v3136
  %v3185 = vpack.c.b16 %v3139, %v3137
  %v3186 = vpack.c.b16 %v3142, %v3140
  %v3187 = vpack.c.b16 %v3143, %v3141
  %v3188 = vpack.c.b16 %v3146, %v3144
  %v3189 = vpack.c.b16 %v3147, %v3145
  %v3190 = vpack.c.b16 %v3150, %v3148
  %v3191 = vpack.c.b16 %v3151, %v3149
  %v3192 = vpack.c.b16 %v3154, %v3152
  %v3193 = vpack.c.b16 %v3155, %v3153
  %v3194 = vpack.c.b16 %v3158, %v3156
  %v3195 = vpack.c.b16 %v3159, %v3157
  %v3196 = vpack.c.b16 %v3162, %v3160
  %v3197 = vpack.c.b16 %v3163, %v3161
  %v3198 = vpack.c.b16 %v3166, %v3164
  %v3199 = vpack.c.b16 %v3167, %v3165
  %v3200 = vpack.c.b16 %v3170, %v3168
  %v3201 = vpack.c.b16 %v3171, %v3169
  %vm3232 = vcmask 916480
  %v3234 = vsel %vm3232, %v3036, 0
  %v3237 = vsel %vm3232, %v3038, 0
  %v3240 = vsel %vm3232, %v3040, 0
  %v3243 = vsel %vm3232, %v3042, 0
  %v3246 = vsel %vm3232, %v3044, 0
  %v3249 = vsel %vm3232, %v3046, 0
  %v3252 = vsel %vm3232, %v3048, 0
  %v3255 = vsel %vm3232, %v3050, 0
  %3257 = vmatprep.subr.bf16.mxu0 %v3173
  %3258 = vmatpush1.bf16.msra.mxu0 %v3172
  %3259 = vmatprep.subr.bf16.mxu0 %v3175
  %3260 = vmatpush1.bf16.msra.mxu0 %v3174
  %3261 = vmatprep.subr.bf16.mxu0 %v3177
  %3262 = vmatpush1.bf16.msra.mxu0 %v3176
  %3263 = vmatprep.subr.bf16.mxu0 %v3179
  %3264 = vmatpush1.bf16.msra.mxu0 %v3178
  %3265 = vmatprep.subr.bf16.mxu0 %v3181
  %3266 = vmatpush1.bf16.msra.mxu0 %v3180
  %3267 = vmatprep.subr.bf16.mxu0 %v3183
  %3268 = vmatpush1.bf16.msra.mxu0 %v3182
  %3269 = vmatprep.subr.bf16.mxu0 %v3185
  %3270 = vmatpush1.bf16.msra.mxu0 %v3184
  %3271 = vmatprep.subr.bf16.mxu0 %v3187
  %3272 = vmatpush1.bf16.msra.mxu0 %v3186
  %3273 = vmatprep.subr.bf16.mxu0 %v3189
  %3274 = vmatpush1.bf16.msra.mxu0 %v3188
  %3275 = vmatprep.subr.bf16.mxu0 %v3191
  %3276 = vmatpush1.bf16.msra.mxu0 %v3190
  %3277 = vmatprep.subr.bf16.mxu0 %v3193
  %3278 = vmatpush1.bf16.msra.mxu0 %v3192
  %3279 = vmatprep.subr.bf16.mxu0 %v3195
  %3280 = vmatpush1.bf16.msra.mxu0 %v3194
  %3281 = vmatprep.subr.bf16.mxu0 %v3197
  %3282 = vmatpush1.bf16.msra.mxu0 %v3196
  %3283 = vmatprep.subr.bf16.mxu0 %v3199
  %3284 = vmatpush1.bf16.msra.mxu0 %v3198
  %3285 = vmatprep.subr.bf16.mxu0 %v3201
  %3286 = vmatpush1.bf16.msra.mxu0 %v3200
  %3287 = vmatprep.subr.bf16.mxu0 0
  %3288 = vmatpush1.bf16.msra.mxu0 0
  %3289 = vmatprep.mubr.bf16.mxu0 %v3234
  %3290 = vmatmul.mubr.bf16.gmra.mrb[0].mxu0 %v3035
  %v3291 = vpop.f32.mrb[0].mxu0
  %v3292 = vadd.f32 0.0, %v3291
  %v3293 = vpop.f32.mrb[0].mxu0
  %v3294 = vadd.f32 0.0, %v3293
  %v3295 = vpop.f32.mrb[0].mxu0
  %v3296 = vadd.f32 0.0, %v3295
  %v3297 = vpop.f32.mrb[0].mxu0
  %v3298 = vadd.f32 0.0, %v3297
  %3299 = vmatprep.mubr.bf16.mxu0 %v3237
  %3300 = vmatmul.mubr.bf16.gmra.mrb[0].mxu0 %v3037
  %v3301 = vpop.f32.mrb[0].mxu0
  %v3302 = vadd.f32 0.0, %v3301
  %v3303 = vpop.f32.mrb[0].mxu0
  %v3304 = vadd.f32 0.0, %v3303
  %v3305 = vpop.f32.mrb[0].mxu0
  %v3306 = vadd.f32 0.0, %v3305
  %v3307 = vpop.f32.mrb[0].mxu0
  %v3308 = vadd.f32 0.0, %v3307
  %3309 = vmatprep.mubr.bf16.mxu0 %v3240
  %3310 = vmatmul.mubr.bf16.gmra.mrb[0].mxu0 %v3039
  %v3311 = vpop.f32.mrb[0].mxu0
  %v3312 = vadd.f32 0.0, %v3311
  %v3313 = vpop.f32.mrb[0].mxu0
  %v3314 = vadd.f32 0.0, %v3313
  %v3315 = vpop.f32.mrb[0].mxu0
  %v3316 = vadd.f32 0.0, %v3315
  %v3317 = vpop.f32.mrb[0].mxu0
  %v3318 = vadd.f32 0.0, %v3317
  %3319 = vmatprep.mubr.bf16.mxu0 %v3243
  %3320 = vmatmul.mubr.bf16.gmra.mrb[0].mxu0 %v3041
  %v3321 = vpop.f32.mrb[0].mxu0
  %v3322 = vadd.f32 0.0, %v3321
  %v3323 = vpop.f32.mrb[0].mxu0
  %v3324 = vadd.f32 0.0, %v3323
  %v3325 = vpop.f32.mrb[0].mxu0
  %v3326 = vadd.f32 0.0, %v3325
  %v3327 = vpop.f32.mrb[0].mxu0
  %v3328 = vadd.f32 0.0, %v3327
  %3329 = vmatprep.mubr.bf16.mxu0 %v3246
  %3330 = vmatmul.mubr.bf16.gmra.mrb[0].mxu0 %v3043
  %v3331 = vpop.f32.mrb[0].mxu0
  %v3332 = vadd.f32 0.0, %v3331
  %v3333 = vpop.f32.mrb[0].mxu0
  %v3334 = vadd.f32 0.0, %v3333
  %v3335 = vpop.f32.mrb[0].mxu0
  %v3336 = vadd.f32 0.0, %v3335
  %v3337 = vpop.f32.mrb[0].mxu0
  %v3338 = vadd.f32 0.0, %v3337
  %3339 = vmatprep.mubr.bf16.mxu0 %v3249
  %3340 = vmatmul.mubr.bf16.gmra.mrb[0].mxu0 %v3045
  %v3341 = vpop.f32.mrb[0].mxu0
  %v3342 = vadd.f32 0.0, %v3341
  %v3343 = vpop.f32.mrb[0].mxu0
  %v3344 = vadd.f32 0.0, %v3343
  %v3345 = vpop.f32.mrb[0].mxu0
  %v3346 = vadd.f32 0.0, %v3345
  %v3347 = vpop.f32.mrb[0].mxu0
  %v3348 = vadd.f32 0.0, %v3347
  %3349 = vmatprep.mubr.bf16.mxu0 %v3252
  %3350 = vmatmul.mubr.bf16.gmra.mrb[0].mxu0 %v3047
  %v3351 = vpop.f32.mrb[0].mxu0
  %v3352 = vadd.f32 0.0, %v3351
  %v3353 = vpop.f32.mrb[0].mxu0
  %v3354 = vadd.f32 0.0, %v3353
  %v3355 = vpop.f32.mrb[0].mxu0
  %v3356 = vadd.f32 0.0, %v3355
  %v3357 = vpop.f32.mrb[0].mxu0
  %v3358 = vadd.f32 0.0, %v3357
  %3359 = vmatprep.mubr.bf16.mxu0 %v3255
  %3360 = vmatmul.mubr.bf16.gmra.mrb[0].mxu0 %v3049
  %v3361 = vpop.f32.mrb[0].mxu0
  %v3362 = vadd.f32 0.0, %v3361
  %v3363 = vpop.f32.mrb[0].mxu0
  %v3364 = vadd.f32 0.0, %v3363
  %v3365 = vpop.f32.mrb[0].mxu0
  %v3366 = vadd.f32 0.0, %v3365
  %v3367 = vpop.f32.mrb[0].mxu0
  %v3368 = vadd.f32 0.0, %v3367
  %3369 = vdwg.mxu0
  %v3400 = vunpack.c.l.b16 %v2845
  %v3401 = vunpack.c.h.b16 %v2845
  %v3402 = vunpack.c.l.b16 %v2846
  %v3403 = vunpack.c.h.b16 %v2846
  %v3404 = vunpack.c.l.b16 %v2847
  %v3405 = vunpack.c.h.b16 %v2847
  %v3406 = vunpack.c.l.b16 %v2848
  %v3407 = vunpack.c.h.b16 %v2848
  %v3408 = vunpack.c.l.b16 %v2849
  %v3409 = vunpack.c.h.b16 %v2849
  %v3410 = vunpack.c.l.b16 %v2850
  %v3411 = vunpack.c.h.b16 %v2850
  %v3412 = vunpack.c.l.b16 %v2851
  %v3413 = vunpack.c.h.b16 %v2851
  %v3414 = vunpack.c.l.b16 %v2852
  %v3415 = vunpack.c.h.b16 %v2852
  %v3416 = vunpack.c.l.b16 %v2853
  %v3417 = vunpack.c.h.b16 %v2853
  %v3418 = vunpack.c.l.b16 %v2854
  %v3419 = vunpack.c.h.b16 %v2854
  %v3420 = vunpack.c.l.b16 %v2855
  %v3421 = vunpack.c.h.b16 %v2855
  %v3422 = vunpack.c.l.b16 %v2856
  %v3423 = vunpack.c.h.b16 %v2856
  %v3424 = vunpack.c.l.b16 %v2857
  %v3425 = vunpack.c.h.b16 %v2857
  %v3426 = vunpack.c.l.b16 %v2858
  %v3427 = vunpack.c.h.b16 %v2858
  %v3428 = vunpack.c.l.b16 %v2859
  %v3429 = vunpack.c.h.b16 %v2859
  %v3430 = vunpack.c.l.b16 %v2860
  %v3431 = vunpack.c.h.b16 %v2860
  %v3432 = vunpack.c.l.b16 %v2861
  %v3433 = vunpack.c.h.b16 %v2861
  %v3434 = vunpack.c.l.b16 %v2862
  %v3435 = vunpack.c.h.b16 %v2862
  %v3436 = vunpack.c.l.b16 %v2863
  %v3437 = vunpack.c.h.b16 %v2863
  %v3438 = vunpack.c.l.b16 %v2864
  %v3439 = vunpack.c.h.b16 %v2864
  %v3440 = vunpack.c.l.b16 %v2865
  %v3441 = vunpack.c.h.b16 %v2865
  %v3442 = vunpack.c.l.b16 %v2866
  %v3443 = vunpack.c.h.b16 %v2866
  %v3444 = vunpack.c.l.b16 %v2867
  %v3445 = vunpack.c.h.b16 %v2867
  %v3446 = vunpack.c.l.b16 %v2868
  %v3447 = vunpack.c.h.b16 %v2868
  %v3448 = vunpack.c.l.b16 %v2869
  %v3449 = vunpack.c.h.b16 %v2869
  %v3450 = vunpack.c.l.b16 %v2870
  %v3451 = vunpack.c.h.b16 %v2870
  %v3452 = vunpack.c.l.b16 %v2871
  %v3453 = vunpack.c.h.b16 %v2871
  %v3454 = vunpack.c.l.b16 %v2872
  %v3455 = vunpack.c.h.b16 %v2872
  %v3456 = vunpack.c.l.b16 %v2873
  %v3457 = vunpack.c.h.b16 %v2873
  %v3458 = vunpack.c.l.b16 %v2874
  %v3459 = vunpack.c.h.b16 %v2874
  %v3460 = vpack.c.b16 %v3402, %v3400
  %v3461 = vpack.c.b16 %v3403, %v3401
  %v3462 = vpack.c.b16 %v3406, %v3404
  %v3463 = vpack.c.b16 %v3407, %v3405
  %v3464 = vpack.c.b16 %v3410, %v3408
  %v3465 = vpack.c.b16 %v3411, %v3409
  %v3466 = vpack.c.b16 %v3414, %v3412
  %v3467 = vpack.c.b16 %v3415, %v3413
  %v3468 = vpack.c.b16 %v3418, %v3416
  %v3469 = vpack.c.b16 %v3419, %v3417
  %v3470 = vpack.c.b16 %v3422, %v3420
  %v3471 = vpack.c.b16 %v3423, %v3421
  %v3472 = vpack.c.b16 %v3426, %v3424
  %v3473 = vpack.c.b16 %v3427, %v3425
  %v3474 = vpack.c.b16 %v3430, %v3428
  %v3475 = vpack.c.b16 %v3431, %v3429
  %v3476 = vpack.c.b16 %v3434, %v3432
  %v3477 = vpack.c.b16 %v3435, %v3433
  %v3478 = vpack.c.b16 %v3438, %v3436
  %v3479 = vpack.c.b16 %v3439, %v3437
  %v3480 = vpack.c.b16 %v3442, %v3440
  %v3481 = vpack.c.b16 %v3443, %v3441
  %v3482 = vpack.c.b16 %v3446, %v3444
  %v3483 = vpack.c.b16 %v3447, %v3445
  %v3484 = vpack.c.b16 %v3450, %v3448
  %v3485 = vpack.c.b16 %v3451, %v3449
  %v3486 = vpack.c.b16 %v3454, %v3452
  %v3487 = vpack.c.b16 %v3455, %v3453
  %v3488 = vpack.c.b16 %v3458, %v3456
  %v3489 = vpack.c.b16 %v3459, %v3457
  %v3521 = vsel %vm3232, %v2830, 0
  %v3524 = vsel %vm3232, %v2832, 0
  %v3527 = vsel %vm3232, %v2834, 0
  %v3530 = vsel %vm3232, %v2836, 0
  %v3533 = vsel %vm3232, %v2838, 0
  %v3536 = vsel %vm3232, %v2840, 0
  %v3539 = vsel %vm3232, %v2842, 0
  %v3542 = vsel %vm3232, %v2844, 0
  %3544 = vmatprep.subr.bf16.mxu0 %v3461
  %3545 = vmatpush1.bf16.msra.mxu0 %v3460
  %3546 = vmatprep.subr.bf16.mxu0 %v3463
  %3547 = vmatpush1.bf16.msra.mxu0 %v3462
  %3548 = vmatprep.subr.bf16.mxu0 %v3465
  %3549 = vmatpush1.bf16.msra.mxu0 %v3464
  %3550 = vmatprep.subr.bf16.mxu0 %v3467
  %3551 = vmatpush1.bf16.msra.mxu0 %v3466
  %3552 = vmatprep.subr.bf16.mxu0 %v3469
  %3553 = vmatpush1.bf16.msra.mxu0 %v3468
  %3554 = vmatprep.subr.bf16.mxu0 %v3471
  %3555 = vmatpush1.bf16.msra.mxu0 %v3470
  %3556 = vmatprep.subr.bf16.mxu0 %v3473
  %3557 = vmatpush1.bf16.msra.mxu0 %v3472
  %3558 = vmatprep.subr.bf16.mxu0 %v3475
  %3559 = vmatpush1.bf16.msra.mxu0 %v3474
  %3560 = vmatprep.subr.bf16.mxu0 %v3477
  %3561 = vmatpush1.bf16.msra.mxu0 %v3476
  %3562 = vmatprep.subr.bf16.mxu0 %v3479
  %3563 = vmatpush1.bf16.msra.mxu0 %v3478
  %3564 = vmatprep.subr.bf16.mxu0 %v3481
  %3565 = vmatpush1.bf16.msra.mxu0 %v3480
  %3566 = vmatprep.subr.bf16.mxu0 %v3483
  %3567 = vmatpush1.bf16.msra.mxu0 %v3482
  %3568 = vmatprep.subr.bf16.mxu0 %v3485
  %3569 = vmatpush1.bf16.msra.mxu0 %v3484
  %3570 = vmatprep.subr.bf16.mxu0 %v3487
  %3571 = vmatpush1.bf16.msra.mxu0 %v3486
  %3572 = vmatprep.subr.bf16.mxu0 %v3489
  %3573 = vmatpush1.bf16.msra.mxu0 %v3488
  %3574 = vmatprep.subr.bf16.mxu0 0
  %3575 = vmatpush1.bf16.msra.mxu0 0
  %3576 = vmatprep.mubr.bf16.mxu0 %v3521
  %3577 = vmatmul.mubr.bf16.gmra.mrb[0].mxu0 %v2829
  %v3578 = vpop.f32.mrb[0].mxu0
  %v3579 = vadd.f32 %v3292, %v3578
  %v3580 = vpop.f32.mrb[0].mxu0
  %v3581 = vadd.f32 %v3294, %v3580
  %v3582 = vpop.f32.mrb[0].mxu0
  %v3583 = vadd.f32 %v3296, %v3582
  %v3584 = vpop.f32.mrb[0].mxu0
  %v3585 = vadd.f32 %v3298, %v3584
  %3586 = vmatprep.mubr.bf16.mxu0 %v3524
  %3587 = vmatmul.mubr.bf16.gmra.mrb[0].mxu0 %v2831
  %v3588 = vpop.f32.mrb[0].mxu0
  %v3589 = vadd.f32 %v3302, %v3588
  %v3590 = vpop.f32.mrb[0].mxu0
  %v3591 = vadd.f32 %v3304, %v3590
  %v3592 = vpop.f32.mrb[0].mxu0
  %v3593 = vadd.f32 %v3306, %v3592
  %v3594 = vpop.f32.mrb[0].mxu0
  %v3595 = vadd.f32 %v3308, %v3594
  %3596 = vmatprep.mubr.bf16.mxu0 %v3527
  %3597 = vmatmul.mubr.bf16.gmra.mrb[0].mxu0 %v2833
  %v3598 = vpop.f32.mrb[0].mxu0
  %v3599 = vadd.f32 %v3312, %v3598
  %v3600 = vpop.f32.mrb[0].mxu0
  %v3601 = vadd.f32 %v3314, %v3600
  %v3602 = vpop.f32.mrb[0].mxu0
  %v3603 = vadd.f32 %v3316, %v3602
  %v3604 = vpop.f32.mrb[0].mxu0
  %v3605 = vadd.f32 %v3318, %v3604
  %3606 = vmatprep.mubr.bf16.mxu0 %v3530
  %3607 = vmatmul.mubr.bf16.gmra.mrb[0].mxu0 %v2835
  %v3608 = vpop.f32.mrb[0].mxu0
  %v3609 = vadd.f32 %v3322, %v3608
  %v3610 = vpop.f32.mrb[0].mxu0
  %v3611 = vadd.f32 %v3324, %v3610
  %v3612 = vpop.f32.mrb[0].mxu0
  %v3613 = vadd.f32 %v3326, %v3612
  %v3614 = vpop.f32.mrb[0].mxu0
  %v3615 = vadd.f32 %v3328, %v3614
  %3616 = vmatprep.mubr.bf16.mxu0 %v3533
  %3617 = vmatmul.mubr.bf16.gmra.mrb[0].mxu0 %v2837
  %v3618 = vpop.f32.mrb[0].mxu0
  %v3619 = vadd.f32 %v3332, %v3618
  %v3620 = vpop.f32.mrb[0].mxu0
  %v3621 = vadd.f32 %v3334, %v3620
  %v3622 = vpop.f32.mrb[0].mxu0
  %v3623 = vadd.f32 %v3336, %v3622
  %v3624 = vpop.f32.mrb[0].mxu0
  %v3625 = vadd.f32 %v3338, %v3624
  %3626 = vmatprep.mubr.bf16.mxu0 %v3536
  %3627 = vmatmul.mubr.bf16.gmra.mrb[0].mxu0 %v2839
  %v3628 = vpop.f32.mrb[0].mxu0
  %v3629 = vadd.f32 %v3342, %v3628
  %v3630 = vpop.f32.mrb[0].mxu0
  %v3631 = vadd.f32 %v3344, %v3630
  %v3632 = vpop.f32.mrb[0].mxu0
  %v3633 = vadd.f32 %v3346, %v3632
  %v3634 = vpop.f32.mrb[0].mxu0
  %v3635 = vadd.f32 %v3348, %v3634
  %3636 = vmatprep.mubr.bf16.mxu0 %v3539
  %3637 = vmatmul.mubr.bf16.gmra.mrb[0].mxu0 %v2841
  %v3638 = vpop.f32.mrb[0].mxu0
  %v3639 = vadd.f32 %v3352, %v3638
  %v3640 = vpop.f32.mrb[0].mxu0
  %v3641 = vadd.f32 %v3354, %v3640
  %v3642 = vpop.f32.mrb[0].mxu0
  %v3643 = vadd.f32 %v3356, %v3642
  %v3644 = vpop.f32.mrb[0].mxu0
  %v3645 = vadd.f32 %v3358, %v3644
  %3646 = vmatprep.mubr.bf16.mxu0 %v3542
  %3647 = vmatmul.mubr.bf16.gmra.mrb[0].mxu0 %v2843
  %v3648 = vpop.f32.mrb[0].mxu0
  %v3649 = vadd.f32 %v3362, %v3648
  %v3650 = vpop.f32.mrb[0].mxu0
  %v3651 = vadd.f32 %v3364, %v3650
  %v3652 = vpop.f32.mrb[0].mxu0
  %v3653 = vadd.f32 %v3366, %v3652
  %v3654 = vpop.f32.mrb[0].mxu0
  %v3655 = vadd.f32 %v3368, %v3654
  %3656 = vdwg.mxu0
  %vm3657 = vcmask 1043456
  %v3658 = vrot.slane %v2781, 4
  %v3659 = vrot.slane %v2783, 4
  %v3660 = vsel %vm3657, %v3658, %v3659
  %v3661 = vrot.slane %v2782, 4
  %v3662 = vrot.slane %v2784, 4
  %v3663 = vsel %vm3657, %v3661, %v3662
  %v3664 = vrot.slane %v2785, 4
  %v3665 = vsel %vm3657, %v3659, %v3664
  %v3666 = vrot.slane %v2786, 4
  %v3667 = vsel %vm3657, %v3662, %v3666
  %v3668 = vrot.slane %v2787, 4
  %v3669 = vrot.slane %v2789, 4
  %v3670 = vsel %vm3657, %v3668, %v3669
  %v3671 = vrot.slane %v2788, 4
  %v3672 = vrot.slane %v2790, 4
  %v3673 = vsel %vm3657, %v3671, %v3672
  %v3674 = vrot.slane %v2791, 4
  %v3675 = vsel %vm3657, %v3669, %v3674
  %v3676 = vrot.slane %v2792, 4
  %v3677 = vsel %vm3657, %v3672, %v3676
  %v3678 = vrot.slane %v2793, 4
  %v3679 = vrot.slane %v2795, 4
  %v3680 = vsel %vm3657, %v3678, %v3679
  %v3681 = vrot.slane %v2794, 4
  %v3682 = vrot.slane %v2796, 4
  %v3683 = vsel %vm3657, %v3681, %v3682
  %v3684 = vrot.slane %v2797, 4
  %v3685 = vsel %vm3657, %v3679, %v3684
  %v3686 = vrot.slane %v2798, 4
  %v3687 = vsel %vm3657, %v3682, %v3686
  %v3688 = vrot.slane %v2799, 4
  %v3689 = vrot.slane %v2801, 4
  %v3690 = vsel %vm3657, %v3688, %v3689
  %v3691 = vrot.slane %v2800, 4
  %v3692 = vrot.slane %v2802, 4
  %v3693 = vsel %vm3657, %v3691, %v3692
  %v3694 = vrot.slane %v2803, 4
  %v3695 = vsel %vm3657, %v3689, %v3694
  %v3696 = vrot.slane %v2804, 4
  %v3697 = vsel %vm3657, %v3692, %v3696
  %v3698 = vrot.slane %v2805, 4
  %v3699 = vrot.slane %v2807, 4
  %v3700 = vsel %vm3657, %v3698, %v3699
  %v3701 = vrot.slane %v2806, 4
  %v3702 = vrot.slane %v2808, 4
  %v3703 = vsel %vm3657, %v3701, %v3702
  %v3704 = vrot.slane %v2809, 4
  %v3705 = vsel %vm3657, %v3699, %v3704
  %v3706 = vrot.slane %v2810, 4
  %v3707 = vsel %vm3657, %v3702, %v3706
  %v3708 = vrot.slane %v2811, 4
  %v3709 = vrot.slane %v2813, 4
  %v3710 = vsel %vm3657, %v3708, %v3709
  %v3711 = vrot.slane %v2812, 4
  %v3712 = vrot.slane %v2814, 4
  %v3713 = vsel %vm3657, %v3711, %v3712
  %v3714 = vrot.slane %v2815, 4
  %v3715 = vsel %vm3657, %v3709, %v3714
  %v3716 = vrot.slane %v2816, 4
  %v3717 = vsel %vm3657, %v3712, %v3716
  %v3718 = vrot.slane %v2817, 4
  %v3719 = vrot.slane %v2819, 4
  %v3720 = vsel %vm3657, %v3718, %v3719
  %v3721 = vrot.slane %v2818, 4
  %v3722 = vrot.slane %v2820, 4
  %v3723 = vsel %vm3657, %v3721, %v3722
  %v3724 = vrot.slane %v2821, 4
  %v3725 = vsel %vm3657, %v3719, %v3724
  %v3726 = vrot.slane %v2822, 4
  %v3727 = vsel %vm3657, %v3722, %v3726
  %v3728 = vrot.slane %v2823, 4
  %v3729 = vrot.slane %v2825, 4
  %v3730 = vsel %vm3657, %v3728, %v3729
  %v3731 = vrot.slane %v2824, 4
  %v3732 = vrot.slane %v2826, 4
  %v3733 = vsel %vm3657, %v3731, %v3732
  %v3734 = vrot.slane %v2827, 4
  %v3735 = vsel %vm3657, %v3729, %v3734
  %v3736 = vrot.slane %v2828, 4
  %v3737 = vsel %vm3657, %v3732, %v3736
  %v3770 = vpack.c.bf16 %v3665, %v3660
  %v3771 = vpack.c.bf16 %v3667, %v3663
  %v3772 = vpack.c.bf16 %v3675, %v3670
  %v3773 = vpack.c.bf16 %v3677, %v3673
  %v3774 = vpack.c.bf16 %v3685, %v3680
  %v3775 = vpack.c.bf16 %v3687, %v3683
  %v3776 = vpack.c.bf16 %v3695, %v3690
  %v3777 = vpack.c.bf16 %v3697, %v3693
  %v3778 = vpack.c.bf16 %v3705, %v3700
  %v3779 = vpack.c.bf16 %v3707, %v3703
  %v3780 = vpack.c.bf16 %v3715, %v3710
  %v3781 = vpack.c.bf16 %v3717, %v3713
  %v3782 = vpack.c.bf16 %v3725, %v3720
  %v3783 = vpack.c.bf16 %v3727, %v3723
  %v3784 = vpack.c.bf16 %v3735, %v3730
  %v3785 = vpack.c.bf16 %v3737, %v3733
  %s3786 = scalar_lea.vmem %s3, 480
  %v3787 = vld [vmem:[%s3786] sm:$0xff]
  %v3788 = vld [vmem:[%s3786 + $0x8] sm:$0xff]
  %v3789 = vld [vmem:[%s3786 + $0x10] sm:$0xff]
  %v3790 = vld [vmem:[%s3786 + $0x18] sm:$0xff]
  %v3791 = vld [vmem:[%s3786 + $0x20] sm:$0xff]
  %v3792 = vld [vmem:[%s3786 + $0x28] sm:$0xff]
  %v3793 = vld [vmem:[%s3786 + $0x30] sm:$0xff]
  %v3794 = vld [vmem:[%s3786 + $0x38] sm:$0xff]
  %v3795 = vld [vmem:[%s3786 + $0x40] sm:$0xff]
  %v3796 = vld [vmem:[%s3786 + $0x48] sm:$0xff]
  %v3797 = vld [vmem:[%s3786 + $0x50] sm:$0xff]
  %v3798 = vld [vmem:[%s3786 + $0x58] sm:$0xff]
  %v3799 = vld [vmem:[%s3786 + $0x60] sm:$0xff]
  %v3800 = vld [vmem:[%s3786 + $0x68] sm:$0xff]
  %v3801 = vld [vmem:[%s3786 + $0x70] sm:$0xff]
  %v3802 = vld [vmem:[%s3786 + $0x78] sm:$0xff]
  %v3803 = vld [vmem:[%s3786 + $0x80] sm:$0xff]
  %v3804 = vld [vmem:[%s3786 + $0x88] sm:$0xff]
  %v3805 = vld [vmem:[%s3786 + $0x90] sm:$0xff]
  %v3806 = vld [vmem:[%s3786 + $0x98] sm:$0xff]
  %v3807 = vld [vmem:[%s3786 + $0xa0] sm:$0xff]
  %v3808 = vld [vmem:[%s3786 + $0xa8] sm:$0xff]
  %v3809 = vld [vmem:[%s3786 + $0xb0] sm:$0xff]
  %v3810 = vld [vmem:[%s3786 + $0xb8] sm:$0xff]
  %v3811 = vld [vmem:[%s3786 + $0xc0] sm:$0xff]
  %v3812 = vld [vmem:[%s3786 + $0xc8] sm:$0xff]
  %v3813 = vld [vmem:[%s3786 + $0xd0] sm:$0xff]
  %v3814 = vld [vmem:[%s3786 + $0xd8] sm:$0xff]
  %v3815 = vld [vmem:[%s3786 + $0xe0] sm:$0xff]
  %v3816 = vld [vmem:[%s3786 + $0xe8] sm:$0xff]
  %v3847 = vunpack.c.l.b16 %v3787
  %v3848 = vunpack.c.h.b16 %v3787
  %v3849 = vunpack.c.l.b16 %v3788
  %v3850 = vunpack.c.h.b16 %v3788
  %v3851 = vunpack.c.l.b16 %v3789
  %v3852 = vunpack.c.h.b16 %v3789
  %v3853 = vunpack.c.l.b16 %v3790
  %v3854 = vunpack.c.h.b16 %v3790
  %v3855 = vunpack.c.l.b16 %v3791
  %v3856 = vunpack.c.h.b16 %v3791
  %v3857 = vunpack.c.l.b16 %v3792
  %v3858 = vunpack.c.h.b16 %v3792
  %v3859 = vunpack.c.l.b16 %v3793
  %v3860 = vunpack.c.h.b16 %v3793
  %v3861 = vunpack.c.l.b16 %v3794
  %v3862 = vunpack.c.h.b16 %v3794
  %v3863 = vunpack.c.l.b16 %v3795
  %v3864 = vunpack.c.h.b16 %v3795
  %v3865 = vunpack.c.l.b16 %v3796
  %v3866 = vunpack.c.h.b16 %v3796
  %v3867 = vunpack.c.l.b16 %v3797
  %v3868 = vunpack.c.h.b16 %v3797
  %v3869 = vunpack.c.l.b16 %v3798
  %v3870 = vunpack.c.h.b16 %v3798
  %v3871 = vunpack.c.l.b16 %v3799
  %v3872 = vunpack.c.h.b16 %v3799
  %v3873 = vunpack.c.l.b16 %v3800
  %v3874 = vunpack.c.h.b16 %v3800
  %v3875 = vunpack.c.l.b16 %v3801
  %v3876 = vunpack.c.h.b16 %v3801
  %v3877 = vunpack.c.l.b16 %v3802
  %v3878 = vunpack.c.h.b16 %v3802
  %v3879 = vunpack.c.l.b16 %v3803
  %v3880 = vunpack.c.h.b16 %v3803
  %v3881 = vunpack.c.l.b16 %v3804
  %v3882 = vunpack.c.h.b16 %v3804
  %v3883 = vunpack.c.l.b16 %v3805
  %v3884 = vunpack.c.h.b16 %v3805
  %v3885 = vunpack.c.l.b16 %v3806
  %v3886 = vunpack.c.h.b16 %v3806
  %v3887 = vunpack.c.l.b16 %v3807
  %v3888 = vunpack.c.h.b16 %v3807
  %v3889 = vunpack.c.l.b16 %v3808
  %v3890 = vunpack.c.h.b16 %v3808
  %v3891 = vunpack.c.l.b16 %v3809
  %v3892 = vunpack.c.h.b16 %v3809
  %v3893 = vunpack.c.l.b16 %v3810
  %v3894 = vunpack.c.h.b16 %v3810
  %v3895 = vunpack.c.l.b16 %v3811
  %v3896 = vunpack.c.h.b16 %v3811
  %v3897 = vunpack.c.l.b16 %v3812
  %v3898 = vunpack.c.h.b16 %v3812
  %v3899 = vunpack.c.l.b16 %v3813
  %v3900 = vunpack.c.h.b16 %v3813
  %v3901 = vunpack.c.l.b16 %v3814
  %v3902 = vunpack.c.h.b16 %v3814
  %v3903 = vunpack.c.l.b16 %v3815
  %v3904 = vunpack.c.h.b16 %v3815
  %v3905 = vunpack.c.l.b16 %v3816
  %v3906 = vunpack.c.h.b16 %v3816
  %v3907 = vpack.c.b16 %v3849, %v3847
  %v3908 = vpack.c.b16 %v3850, %v3848
  %v3909 = vpack.c.b16 %v3853, %v3851
  %v3910 = vpack.c.b16 %v3854, %v3852
  %v3911 = vpack.c.b16 %v3857, %v3855
  %v3912 = vpack.c.b16 %v3858, %v3856
  %v3913 = vpack.c.b16 %v3861, %v3859
  %v3914 = vpack.c.b16 %v3862, %v3860
  %v3915 = vpack.c.b16 %v3865, %v3863
  %v3916 = vpack.c.b16 %v3866, %v3864
  %v3917 = vpack.c.b16 %v3869, %v3867
  %v3918 = vpack.c.b16 %v3870, %v3868
  %v3919 = vpack.c.b16 %v3873, %v3871
  %v3920 = vpack.c.b16 %v3874, %v3872
  %v3921 = vpack.c.b16 %v3877, %v3875
  %v3922 = vpack.c.b16 %v3878, %v3876
  %v3923 = vpack.c.b16 %v3881, %v3879
  %v3924 = vpack.c.b16 %v3882, %v3880
  %v3925 = vpack.c.b16 %v3885, %v3883
  %v3926 = vpack.c.b16 %v3886, %v3884
  %v3927 = vpack.c.b16 %v3889, %v3887
  %v3928 = vpack.c.b16 %v3890, %v3888
  %v3929 = vpack.c.b16 %v3893, %v3891
  %v3930 = vpack.c.b16 %v3894, %v3892
  %v3931 = vpack.c.b16 %v3897, %v3895
  %v3932 = vpack.c.b16 %v3898, %v3896
  %v3933 = vpack.c.b16 %v3901, %v3899
  %v3934 = vpack.c.b16 %v3902, %v3900
  %v3935 = vpack.c.b16 %v3905, %v3903
  %v3936 = vpack.c.b16 %v3906, %v3904
  %v3968 = vsel %vm3232, %v3771, 0
  %v3971 = vsel %vm3232, %v3773, 0
  %v3974 = vsel %vm3232, %v3775, 0
  %v3977 = vsel %vm3232, %v3777, 0
  %v3980 = vsel %vm3232, %v3779, 0
  %v3983 = vsel %vm3232, %v3781, 0
  %v3986 = vsel %vm3232, %v3783, 0
  %v3989 = vsel %vm3232, %v3785, 0
  %3991 = vmatprep.subr.bf16.mxu0 %v3908
  %3992 = vmatpush1.bf16.msra.mxu0 %v3907
  %3993 = vmatprep.subr.bf16.mxu0 %v3910
  %3994 = vmatpush1.bf16.msra.mxu0 %v3909
  %3995 = vmatprep.subr.bf16.mxu0 %v3912
  %3996 = vmatpush1.bf16.msra.mxu0 %v3911
  %3997 = vmatprep.subr.bf16.mxu0 %v3914
  %3998 = vmatpush1.bf16.msra.mxu0 %v3913
  %3999 = vmatprep.subr.bf16.mxu0 %v3916
  %4000 = vmatpush1.bf16.msra.mxu0 %v3915
  %4001 = vmatprep.subr.bf16.mxu0 %v3918
  %4002 = vmatpush1.bf16.msra.mxu0 %v3917
  %4003 = vmatprep.subr.bf16.mxu0 %v3920
  %4004 = vmatpush1.bf16.msra.mxu0 %v3919
  %4005 = vmatprep.subr.bf16.mxu0 %v3922
  %4006 = vmatpush1.bf16.msra.mxu0 %v3921
  %4007 = vmatprep.subr.bf16.mxu0 %v3924
  %4008 = vmatpush1.bf16.msra.mxu0 %v3923
  %4009 = vmatprep.subr.bf16.mxu0 %v3926
  %4010 = vmatpush1.bf16.msra.mxu0 %v3925
  %4011 = vmatprep.subr.bf16.mxu0 %v3928
  %4012 = vmatpush1.bf16.msra.mxu0 %v3927
  %4013 = vmatprep.subr.bf16.mxu0 %v3930
  %4014 = vmatpush1.bf16.msra.mxu0 %v3929
  %4015 = vmatprep.subr.bf16.mxu0 %v3932
  %4016 = vmatpush1.bf16.msra.mxu0 %v3931
  %4017 = vmatprep.subr.bf16.mxu0 %v3934
  %4018 = vmatpush1.bf16.msra.mxu0 %v3933
  %4019 = vmatprep.subr.bf16.mxu0 %v3936
  %4020 = vmatpush1.bf16.msra.mxu0 %v3935
  %4021 = vmatprep.subr.bf16.mxu0 0
  %4022 = vmatpush1.bf16.msra.mxu0 0
  %4023 = vmatprep.mubr.bf16.mxu0 %v3968
  %4024 = vmatmul.mubr.bf16.gmra.mrb[0].mxu0 %v3770
  %v4025 = vpop.f32.mrb[0].mxu0
  %v4026 = vadd.f32 0.0, %v4025
  %v4027 = vpop.f32.mrb[0].mxu0
  %v4028 = vadd.f32 0.0, %v4027
  %v4029 = vpop.f32.mrb[0].mxu0
  %v4030 = vadd.f32 0.0, %v4029
  %v4031 = vpop.f32.mrb[0].mxu0
  %v4032 = vadd.f32 0.0, %v4031
  %4033 = vmatprep.mubr.bf16.mxu0 %v3971
  %4034 = vmatmul.mubr.bf16.gmra.mrb[0].mxu0 %v3772
  %v4035 = vpop.f32.mrb[0].mxu0
  %v4036 = vadd.f32 0.0, %v4035
  %v4037 = vpop.f32.mrb[0].mxu0
  %v4038 = vadd.f32 0.0, %v4037
  %v4039 = vpop.f32.mrb[0].mxu0
  %v4040 = vadd.f32 0.0, %v4039
  %v4041 = vpop.f32.mrb[0].mxu0
  %v4042 = vadd.f32 0.0, %v4041
  %4043 = vmatprep.mubr.bf16.mxu0 %v3974
  %4044 = vmatmul.mubr.bf16.gmra.mrb[0].mxu0 %v3774
  %v4045 = vpop.f32.mrb[0].mxu0
  %v4046 = vadd.f32 0.0, %v4045
  %v4047 = vpop.f32.mrb[0].mxu0
  %v4048 = vadd.f32 0.0, %v4047
  %v4049 = vpop.f32.mrb[0].mxu0
  %v4050 = vadd.f32 0.0, %v4049
  %v4051 = vpop.f32.mrb[0].mxu0
  %v4052 = vadd.f32 0.0, %v4051
  %4053 = vmatprep.mubr.bf16.mxu0 %v3977
  %4054 = vmatmul.mubr.bf16.gmra.mrb[0].mxu0 %v3776
  %v4055 = vpop.f32.mrb[0].mxu0
  %v4056 = vadd.f32 0.0, %v4055
  %v4057 = vpop.f32.mrb[0].mxu0
  %v4058 = vadd.f32 0.0, %v4057
  %v4059 = vpop.f32.mrb[0].mxu0
  %v4060 = vadd.f32 0.0, %v4059
  %v4061 = vpop.f32.mrb[0].mxu0
  %v4062 = vadd.f32 0.0, %v4061
  %4063 = vmatprep.mubr.bf16.mxu0 %v3980
  %4064 = vmatmul.mubr.bf16.gmra.mrb[0].mxu0 %v3778
  %v4065 = vpop.f32.mrb[0].mxu0
  %v4066 = vadd.f32 0.0, %v4065
  %v4067 = vpop.f32.mrb[0].mxu0
  %v4068 = vadd.f32 0.0, %v4067
  %v4069 = vpop.f32.mrb[0].mxu0
  %v4070 = vadd.f32 0.0, %v4069
  %v4071 = vpop.f32.mrb[0].mxu0
  %v4072 = vadd.f32 0.0, %v4071
  %4073 = vmatprep.mubr.bf16.mxu0 %v3983
  %4074 = vmatmul.mubr.bf16.gmra.mrb[0].mxu0 %v3780
  %v4075 = vpop.f32.mrb[0].mxu0
  %v4076 = vadd.f32 0.0, %v4075
  %v4077 = vpop.f32.mrb[0].mxu0
  %v4078 = vadd.f32 0.0, %v4077
  %v4079 = vpop.f32.mrb[0].mxu0
  %v4080 = vadd.f32 0.0, %v4079
  %v4081 = vpop.f32.mrb[0].mxu0
  %v4082 = vadd.f32 0.0, %v4081
  %4083 = vmatprep.mubr.bf16.mxu0 %v3986
  %4084 = vmatmul.mubr.bf16.gmra.mrb[0].mxu0 %v3782
  %v4085 = vpop.f32.mrb[0].mxu0
  %v4086 = vadd.f32 0.0, %v4085
  %v4087 = vpop.f32.mrb[0].mxu0
  %v4088 = vadd.f32 0.0, %v4087
  %v4089 = vpop.f32.mrb[0].mxu0
  %v4090 = vadd.f32 0.0, %v4089
  %v4091 = vpop.f32.mrb[0].mxu0
  %v4092 = vadd.f32 0.0, %v4091
  %4093 = vmatprep.mubr.bf16.mxu0 %v3989
  %4094 = vmatmul.mubr.bf16.gmra.mrb[0].mxu0 %v3784
  %v4095 = vpop.f32.mrb[0].mxu0
  %v4096 = vadd.f32 0.0, %v4095
  %v4097 = vpop.f32.mrb[0].mxu0
  %v4098 = vadd.f32 0.0, %v4097
  %v4099 = vpop.f32.mrb[0].mxu0
  %v4100 = vadd.f32 0.0, %v4099
  %v4101 = vpop.f32.mrb[0].mxu0
  %v4102 = vadd.f32 0.0, %v4101
  %4103 = vdwg.mxu0
  %v4104 = vadd.f32 %v3579, %v4026
  %v4105 = vadd.f32 %v3581, %v4028
  %v4106 = vadd.f32 %v3583, %v4030
  %v4107 = vadd.f32 %v3585, %v4032
  %v4108 = vadd.f32 %v3589, %v4036
  %v4109 = vadd.f32 %v3591, %v4038
  %v4110 = vadd.f32 %v3593, %v4040
  %v4111 = vadd.f32 %v3595, %v4042
  %v4112 = vadd.f32 %v3599, %v4046
  %v4113 = vadd.f32 %v3601, %v4048
  %v4114 = vadd.f32 %v3603, %v4050
  %v4115 = vadd.f32 %v3605, %v4052
  %v4116 = vadd.f32 %v3609, %v4056
  %v4117 = vadd.f32 %v3611, %v4058
  %v4118 = vadd.f32 %v3613, %v4060
  %v4119 = vadd.f32 %v3615, %v4062
  %v4120 = vadd.f32 %v3619, %v4066
  %v4121 = vadd.f32 %v3621, %v4068
  %v4122 = vadd.f32 %v3623, %v4070
  %v4123 = vadd.f32 %v3625, %v4072
  %v4124 = vadd.f32 %v3629, %v4076
  %v4125 = vadd.f32 %v3631, %v4078
  %v4126 = vadd.f32 %v3633, %v4080
  %v4127 = vadd.f32 %v3635, %v4082
  %v4128 = vadd.f32 %v3639, %v4086
  %v4129 = vadd.f32 %v3641, %v4088
  %v4130 = vadd.f32 %v3643, %v4090
  %v4131 = vadd.f32 %v3645, %v4092
  %v4132 = vadd.f32 %v3649, %v4096
  %v4133 = vadd.f32 %v3651, %v4098
  %v4134 = vadd.f32 %v3653, %v4100
  %v4135 = vadd.f32 %v3655, %v4102
  %vm4136 = vcmask 1041408
  %v4137 = vrot.slane %v2781, 6
  %v4138 = vrot.slane %v2783, 6
  %v4139 = vsel %vm4136, %v4137, %v4138
  %v4140 = vrot.slane %v2782, 6
  %v4141 = vrot.slane %v2784, 6
  %v4142 = vsel %vm4136, %v4140, %v4141
  %v4143 = vrot.slane %v2785, 6
  %v4144 = vsel %vm4136, %v4138, %v4143
  %v4145 = vrot.slane %v2786, 6
  %v4146 = vsel %vm4136, %v4141, %v4145
  %v4147 = vrot.slane %v2787, 6
  %v4148 = vrot.slane %v2789, 6
  %v4149 = vsel %vm4136, %v4147, %v4148
  %v4150 = vrot.slane %v2788, 6
  %v4151 = vrot.slane %v2790, 6
  %v4152 = vsel %vm4136, %v4150, %v4151
  %v4153 = vrot.slane %v2791, 6
  %v4154 = vsel %vm4136, %v4148, %v4153
  %v4155 = vrot.slane %v2792, 6
  %v4156 = vsel %vm4136, %v4151, %v4155
  %v4157 = vrot.slane %v2793, 6
  %v4158 = vrot.slane %v2795, 6
  %v4159 = vsel %vm4136, %v4157, %v4158
  %v4160 = vrot.slane %v2794, 6
  %v4161 = vrot.slane %v2796, 6
  %v4162 = vsel %vm4136, %v4160, %v4161
  %v4163 = vrot.slane %v2797, 6
  %v4164 = vsel %vm4136, %v4158, %v4163
  %v4165 = vrot.slane %v2798, 6
  %v4166 = vsel %vm4136, %v4161, %v4165
  %v4167 = vrot.slane %v2799, 6
  %v4168 = vrot.slane %v2801, 6
  %v4169 = vsel %vm4136, %v4167, %v4168
  %v4170 = vrot.slane %v2800, 6
  %v4171 = vrot.slane %v2802, 6
  %v4172 = vsel %vm4136, %v4170, %v4171
  %v4173 = vrot.slane %v2803, 6
  %v4174 = vsel %vm4136, %v4168, %v4173
  %v4175 = vrot.slane %v2804, 6
  %v4176 = vsel %vm4136, %v4171, %v4175
  %v4177 = vrot.slane %v2805, 6
  %v4178 = vrot.slane %v2807, 6
  %v4179 = vsel %vm4136, %v4177, %v4178
  %v4180 = vrot.slane %v2806, 6
  %v4181 = vrot.slane %v2808, 6
  %v4182 = vsel %vm4136, %v4180, %v4181
  %v4183 = vrot.slane %v2809, 6
  %v4184 = vsel %vm4136, %v4178, %v4183
  %v4185 = vrot.slane %v2810, 6
  %v4186 = vsel %vm4136, %v4181, %v4185
  %v4187 = vrot.slane %v2811, 6
  %v4188 = vrot.slane %v2813, 6
  %v4189 = vsel %vm4136, %v4187, %v4188
  %v4190 = vrot.slane %v2812, 6
  %v4191 = vrot.slane %v2814, 6
  %v4192 = vsel %vm4136, %v4190, %v4191
  %v4193 = vrot.slane %v2815, 6
  %v4194 = vsel %vm4136, %v4188, %v4193
  %v4195 = vrot.slane %v2816, 6
  %v4196 = vsel %vm4136, %v4191, %v4195
  %v4197 = vrot.slane %v2817, 6
  %v4198 = vrot.slane %v2819, 6
  %v4199 = vsel %vm4136, %v4197, %v4198
  %v4200 = vrot.slane %v2818, 6
  %v4201 = vrot.slane %v2820, 6
  %v4202 = vsel %vm4136, %v4200, %v4201
  %v4203 = vrot.slane %v2821, 6
  %v4204 = vsel %vm4136, %v4198, %v4203
  %v4205 = vrot.slane %v2822, 6
  %v4206 = vsel %vm4136, %v4201, %v4205
  %v4207 = vrot.slane %v2823, 6
  %v4208 = vrot.slane %v2825, 6
  %v4209 = vsel %vm4136, %v4207, %v4208
  %v4210 = vrot.slane %v2824, 6
  %v4211 = vrot.slane %v2826, 6
  %v4212 = vsel %vm4136, %v4210, %v4211
  %v4213 = vrot.slane %v2827, 6
  %v4214 = vsel %vm4136, %v4208, %v4213
  %v4215 = vrot.slane %v2828, 6
  %v4216 = vsel %vm4136, %v4211, %v4215
  %v4249 = vpack.c.bf16 %v4144, %v4139
  %v4250 = vpack.c.bf16 %v4146, %v4142
  %v4251 = vpack.c.bf16 %v4154, %v4149
  %v4252 = vpack.c.bf16 %v4156, %v4152
  %v4253 = vpack.c.bf16 %v4164, %v4159
  %v4254 = vpack.c.bf16 %v4166, %v4162
  %v4255 = vpack.c.bf16 %v4174, %v4169
  %v4256 = vpack.c.bf16 %v4176, %v4172
  %v4257 = vpack.c.bf16 %v4184, %v4179
  %v4258 = vpack.c.bf16 %v4186, %v4182
  %v4259 = vpack.c.bf16 %v4194, %v4189
  %v4260 = vpack.c.bf16 %v4196, %v4192
  %v4261 = vpack.c.bf16 %v4204, %v4199
  %v4262 = vpack.c.bf16 %v4206, %v4202
  %v4263 = vpack.c.bf16 %v4214, %v4209
  %v4264 = vpack.c.bf16 %v4216, %v4212
  %s4265 = scalar_lea.vmem %s3, 720
  %v4266 = vld [vmem:[%s4265] sm:$0xff]
  %v4267 = vld [vmem:[%s4265 + $0x8] sm:$0xff]
  %v4268 = vld [vmem:[%s4265 + $0x10] sm:$0xff]
  %v4269 = vld [vmem:[%s4265 + $0x18] sm:$0xff]
  %v4270 = vld [vmem:[%s4265 + $0x20] sm:$0xff]
  %v4271 = vld [vmem:[%s4265 + $0x28] sm:$0xff]
  %v4272 = vld [vmem:[%s4265 + $0x30] sm:$0xff]
  %v4273 = vld [vmem:[%s4265 + $0x38] sm:$0xff]
  %v4274 = vld [vmem:[%s4265 + $0x40] sm:$0xff]
  %v4275 = vld [vmem:[%s4265 + $0x48] sm:$0xff]
  %v4276 = vld [vmem:[%s4265 + $0x50] sm:$0xff]
  %v4277 = vld [vmem:[%s4265 + $0x58] sm:$0xff]
  %v4278 = vld [vmem:[%s4265 + $0x60] sm:$0xff]
  %v4279 = vld [vmem:[%s4265 + $0x68] sm:$0xff]
  %v4280 = vld [vmem:[%s4265 + $0x70] sm:$0xff]
  %v4281 = vld [vmem:[%s4265 + $0x78] sm:$0xff]
  %v4282 = vld [vmem:[%s4265 + $0x80] sm:$0xff]
  %v4283 = vld [vmem:[%s4265 + $0x88] sm:$0xff]
  %v4284 = vld [vmem:[%s4265 + $0x90] sm:$0xff]
  %v4285 = vld [vmem:[%s4265 + $0x98] sm:$0xff]
  %v4286 = vld [vmem:[%s4265 + $0xa0] sm:$0xff]
  %v4287 = vld [vmem:[%s4265 + $0xa8] sm:$0xff]
  %v4288 = vld [vmem:[%s4265 + $0xb0] sm:$0xff]
  %v4289 = vld [vmem:[%s4265 + $0xb8] sm:$0xff]
  %v4290 = vld [vmem:[%s4265 + $0xc0] sm:$0xff]
  %v4291 = vld [vmem:[%s4265 + $0xc8] sm:$0xff]
  %v4292 = vld [vmem:[%s4265 + $0xd0] sm:$0xff]
  %v4293 = vld [vmem:[%s4265 + $0xd8] sm:$0xff]
  %v4294 = vld [vmem:[%s4265 + $0xe0] sm:$0xff]
  %v4295 = vld [vmem:[%s4265 + $0xe8] sm:$0xff]
  %v4326 = vunpack.c.l.b16 %v4266
  %v4327 = vunpack.c.h.b16 %v4266
  %v4328 = vunpack.c.l.b16 %v4267
  %v4329 = vunpack.c.h.b16 %v4267
  %v4330 = vunpack.c.l.b16 %v4268
  %v4331 = vunpack.c.h.b16 %v4268
  %v4332 = vunpack.c.l.b16 %v4269
  %v4333 = vunpack.c.h.b16 %v4269
  %v4334 = vunpack.c.l.b16 %v4270
  %v4335 = vunpack.c.h.b16 %v4270
  %v4336 = vunpack.c.l.b16 %v4271
  %v4337 = vunpack.c.h.b16 %v4271
  %v4338 = vunpack.c.l.b16 %v4272
  %v4339 = vunpack.c.h.b16 %v4272
  %v4340 = vunpack.c.l.b16 %v4273
  %v4341 = vunpack.c.h.b16 %v4273
  %v4342 = vunpack.c.l.b16 %v4274
  %v4343 = vunpack.c.h.b16 %v4274
  %v4344 = vunpack.c.l.b16 %v4275
  %v4345 = vunpack.c.h.b16 %v4275
  %v4346 = vunpack.c.l.b16 %v4276
  %v4347 = vunpack.c.h.b16 %v4276
  %v4348 = vunpack.c.l.b16 %v4277
  %v4349 = vunpack.c.h.b16 %v4277
  %v4350 = vunpack.c.l.b16 %v4278
  %v4351 = vunpack.c.h.b16 %v4278
  %v4352 = vunpack.c.l.b16 %v4279
  %v4353 = vunpack.c.h.b16 %v4279
  %v4354 = vunpack.c.l.b16 %v4280
  %v4355 = vunpack.c.h.b16 %v4280
  %v4356 = vunpack.c.l.b16 %v4281
  %v4357 = vunpack.c.h.b16 %v4281
  %v4358 = vunpack.c.l.b16 %v4282
  %v4359 = vunpack.c.h.b16 %v4282
  %v4360 = vunpack.c.l.b16 %v4283
  %v4361 = vunpack.c.h.b16 %v4283
  %v4362 = vunpack.c.l.b16 %v4284
  %v4363 = vunpack.c.h.b16 %v4284
  %v4364 = vunpack.c.l.b16 %v4285
  %v4365 = vunpack.c.h.b16 %v4285
  %v4366 = vunpack.c.l.b16 %v4286
  %v4367 = vunpack.c.h.b16 %v4286
  %v4368 = vunpack.c.l.b16 %v4287
  %v4369 = vunpack.c.h.b16 %v4287
  %v4370 = vunpack.c.l.b16 %v4288
  %v4371 = vunpack.c.h.b16 %v4288
  %v4372 = vunpack.c.l.b16 %v4289
  %v4373 = vunpack.c.h.b16 %v4289
  %v4374 = vunpack.c.l.b16 %v4290
  %v4375 = vunpack.c.h.b16 %v4290
  %v4376 = vunpack.c.l.b16 %v4291
  %v4377 = vunpack.c.h.b16 %v4291
  %v4378 = vunpack.c.l.b16 %v4292
  %v4379 = vunpack.c.h.b16 %v4292
  %v4380 = vunpack.c.l.b16 %v4293
  %v4381 = vunpack.c.h.b16 %v4293
  %v4382 = vunpack.c.l.b16 %v4294
  %v4383 = vunpack.c.h.b16 %v4294
  %v4384 = vunpack.c.l.b16 %v4295
  %v4385 = vunpack.c.h.b16 %v4295
  %v4386 = vpack.c.b16 %v4328, %v4326
  %v4387 = vpack.c.b16 %v4329, %v4327
  %v4388 = vpack.c.b16 %v4332, %v4330
  %v4389 = vpack.c.b16 %v4333, %v4331
  %v4390 = vpack.c.b16 %v4336, %v4334
  %v4391 = vpack.c.b16 %v4337, %v4335
  %v4392 = vpack.c.b16 %v4340, %v4338
  %v4393 = vpack.c.b16 %v4341, %v4339
  %v4394 = vpack.c.b16 %v4344, %v4342
  %v4395 = vpack.c.b16 %v4345, %v4343
  %v4396 = vpack.c.b16 %v4348, %v4346
  %v4397 = vpack.c.b16 %v4349, %v4347
  %v4398 = vpack.c.b16 %v4352, %v4350
  %v4399 = vpack.c.b16 %v4353, %v4351
  %v4400 = vpack.c.b16 %v4356, %v4354
  %v4401 = vpack.c.b16 %v4357, %v4355
  %v4402 = vpack.c.b16 %v4360, %v4358
  %v4403 = vpack.c.b16 %v4361, %v4359
  %v4404 = vpack.c.b16 %v4364, %v4362
  %v4405 = vpack.c.b16 %v4365, %v4363
  %v4406 = vpack.c.b16 %v4368, %v4366
  %v4407 = vpack.c.b16 %v4369, %v4367
  %v4408 = vpack.c.b16 %v4372, %v4370
  %v4409 = vpack.c.b16 %v4373, %v4371
  %v4410 = vpack.c.b16 %v4376, %v4374
  %v4411 = vpack.c.b16 %v4377, %v4375
  %v4412 = vpack.c.b16 %v4380, %v4378
  %v4413 = vpack.c.b16 %v4381, %v4379
  %v4414 = vpack.c.b16 %v4384, %v4382
  %v4415 = vpack.c.b16 %v4385, %v4383
  %v4447 = vsel %vm3232, %v4250, 0
  %v4450 = vsel %vm3232, %v4252, 0
  %v4453 = vsel %vm3232, %v4254, 0
  %v4456 = vsel %vm3232, %v4256, 0
  %v4459 = vsel %vm3232, %v4258, 0
  %v4462 = vsel %vm3232, %v4260, 0
  %v4465 = vsel %vm3232, %v4262, 0
  %v4468 = vsel %vm3232, %v4264, 0
  %4470 = vmatprep.subr.bf16.mxu0 %v4387
  %4471 = vmatpush1.bf16.msra.mxu0 %v4386
  %4472 = vmatprep.subr.bf16.mxu0 %v4389
  %4473 = vmatpush1.bf16.msra.mxu0 %v4388
  %4474 = vmatprep.subr.bf16.mxu0 %v4391
  %4475 = vmatpush1.bf16.msra.mxu0 %v4390
  %4476 = vmatprep.subr.bf16.mxu0 %v4393
  %4477 = vmatpush1.bf16.msra.mxu0 %v4392
  %4478 = vmatprep.subr.bf16.mxu0 %v4395
  %4479 = vmatpush1.bf16.msra.mxu0 %v4394
  %4480 = vmatprep.subr.bf16.mxu0 %v4397
  %4481 = vmatpush1.bf16.msra.mxu0 %v4396
  %4482 = vmatprep.subr.bf16.mxu0 %v4399
  %4483 = vmatpush1.bf16.msra.mxu0 %v4398
  %4484 = vmatprep.subr.bf16.mxu0 %v4401
  %4485 = vmatpush1.bf16.msra.mxu0 %v4400
  %4486 = vmatprep.subr.bf16.mxu0 %v4403
  %4487 = vmatpush1.bf16.msra.mxu0 %v4402
  %4488 = vmatprep.subr.bf16.mxu0 %v4405
  %4489 = vmatpush1.bf16.msra.mxu0 %v4404
  %4490 = vmatprep.subr.bf16.mxu0 %v4407
  %4491 = vmatpush1.bf16.msra.mxu0 %v4406
  %4492 = vmatprep.subr.bf16.mxu0 %v4409
  %4493 = vmatpush1.bf16.msra.mxu0 %v4408
  %4494 = vmatprep.subr.bf16.mxu0 %v4411
  %4495 = vmatpush1.bf16.msra.mxu0 %v4410
  %4496 = vmatprep.subr.bf16.mxu0 %v4413
  %4497 = vmatpush1.bf16.msra.mxu0 %v4412
  %4498 = vmatprep.subr.bf16.mxu0 %v4415
  %4499 = vmatpush1.bf16.msra.mxu0 %v4414
  %4500 = vmatprep.subr.bf16.mxu0 0
  %4501 = vmatpush1.bf16.msra.mxu0 0
  %4502 = vmatprep.mubr.bf16.mxu0 %v4447
  %4503 = vmatmul.mubr.bf16.gmra.mrb[0].mxu0 %v4249
  %v4504 = vpop.f32.mrb[0].mxu0
  %v4505 = vadd.f32 0.0, %v4504
  %v4506 = vpop.f32.mrb[0].mxu0
  %v4507 = vadd.f32 0.0, %v4506
  %v4508 = vpop.f32.mrb[0].mxu0
  %v4509 = vadd.f32 0.0, %v4508
  %v4510 = vpop.f32.mrb[0].mxu0
  %v4511 = vadd.f32 0.0, %v4510
  %4512 = vmatprep.mubr.bf16.mxu0 %v4450
  %4513 = vmatmul.mubr.bf16.gmra.mrb[0].mxu0 %v4251
  %v4514 = vpop.f32.mrb[0].mxu0
  %v4515 = vadd.f32 0.0, %v4514
  %v4516 = vpop.f32.mrb[0].mxu0
  %v4517 = vadd.f32 0.0, %v4516
  %v4518 = vpop.f32.mrb[0].mxu0
  %v4519 = vadd.f32 0.0, %v4518
  %v4520 = vpop.f32.mrb[0].mxu0
  %v4521 = vadd.f32 0.0, %v4520
  %4522 = vmatprep.mubr.bf16.mxu0 %v4453
  %4523 = vmatmul.mubr.bf16.gmra.mrb[0].mxu0 %v4253
  %v4524 = vpop.f32.mrb[0].mxu0
  %v4525 = vadd.f32 0.0, %v4524
  %v4526 = vpop.f32.mrb[0].mxu0
  %v4527 = vadd.f32 0.0, %v4526
  %v4528 = vpop.f32.mrb[0].mxu0
  %v4529 = vadd.f32 0.0, %v4528
  %v4530 = vpop.f32.mrb[0].mxu0
  %v4531 = vadd.f32 0.0, %v4530
  %4532 = vmatprep.mubr.bf16.mxu0 %v4456
  %4533 = vmatmul.mubr.bf16.gmra.mrb[0].mxu0 %v4255
  %v4534 = vpop.f32.mrb[0].mxu0
  %v4535 = vadd.f32 0.0, %v4534
  %v4536 = vpop.f32.mrb[0].mxu0
  %v4537 = vadd.f32 0.0, %v4536
  %v4538 = vpop.f32.mrb[0].mxu0
  %v4539 = vadd.f32 0.0, %v4538
  %v4540 = vpop.f32.mrb[0].mxu0
  %v4541 = vadd.f32 0.0, %v4540
  %4542 = vmatprep.mubr.bf16.mxu0 %v4459
  %4543 = vmatmul.mubr.bf16.gmra.mrb[0].mxu0 %v4257
  %v4544 = vpop.f32.mrb[0].mxu0
  %v4545 = vadd.f32 0.0, %v4544
  %v4546 = vpop.f32.mrb[0].mxu0
  %v4547 = vadd.f32 0.0, %v4546
  %v4548 = vpop.f32.mrb[0].mxu0
  %v4549 = vadd.f32 0.0, %v4548
  %v4550 = vpop.f32.mrb[0].mxu0
  %v4551 = vadd.f32 0.0, %v4550
  %4552 = vmatprep.mubr.bf16.mxu0 %v4462
  %4553 = vmatmul.mubr.bf16.gmra.mrb[0].mxu0 %v4259
  %v4554 = vpop.f32.mrb[0].mxu0
  %v4555 = vadd.f32 0.0, %v4554
  %v4556 = vpop.f32.mrb[0].mxu0
  %v4557 = vadd.f32 0.0, %v4556
  %v4558 = vpop.f32.mrb[0].mxu0
  %v4559 = vadd.f32 0.0, %v4558
  %v4560 = vpop.f32.mrb[0].mxu0
  %v4561 = vadd.f32 0.0, %v4560
  %4562 = vmatprep.mubr.bf16.mxu0 %v4465
  %4563 = vmatmul.mubr.bf16.gmra.mrb[0].mxu0 %v4261
  %v4564 = vpop.f32.mrb[0].mxu0
  %v4565 = vadd.f32 0.0, %v4564
  %v4566 = vpop.f32.mrb[0].mxu0
  %v4567 = vadd.f32 0.0, %v4566
  %v4568 = vpop.f32.mrb[0].mxu0
  %v4569 = vadd.f32 0.0, %v4568
  %v4570 = vpop.f32.mrb[0].mxu0
  %v4571 = vadd.f32 0.0, %v4570
  %4572 = vmatprep.mubr.bf16.mxu0 %v4468
  %4573 = vmatmul.mubr.bf16.gmra.mrb[0].mxu0 %v4263
  %v4574 = vpop.f32.mrb[0].mxu0
  %v4575 = vadd.f32 0.0, %v4574
  %v4576 = vpop.f32.mrb[0].mxu0
  %v4577 = vadd.f32 0.0, %v4576
  %v4578 = vpop.f32.mrb[0].mxu0
  %v4579 = vadd.f32 0.0, %v4578
  %v4580 = vpop.f32.mrb[0].mxu0
  %v4581 = vadd.f32 0.0, %v4580
  %4582 = vdwg.mxu0
  %v4583 = vadd.f32 %v4104, %v4505
  %v4584 = vadd.f32 %v4105, %v4507
  %v4585 = vadd.f32 %v4106, %v4509
  %v4586 = vadd.f32 %v4107, %v4511
  %v4587 = vadd.f32 %v4108, %v4515
  %v4588 = vadd.f32 %v4109, %v4517
  %v4589 = vadd.f32 %v4110, %v4519
  %v4590 = vadd.f32 %v4111, %v4521
  %v4591 = vadd.f32 %v4112, %v4525
  %v4592 = vadd.f32 %v4113, %v4527
  %v4593 = vadd.f32 %v4114, %v4529
  %v4594 = vadd.f32 %v4115, %v4531
  %v4595 = vadd.f32 %v4116, %v4535
  %v4596 = vadd.f32 %v4117, %v4537
  %v4597 = vadd.f32 %v4118, %v4539
  %v4598 = vadd.f32 %v4119, %v4541
  %v4599 = vadd.f32 %v4120, %v4545
  %v4600 = vadd.f32 %v4121, %v4547
  %v4601 = vadd.f32 %v4122, %v4549
  %v4602 = vadd.f32 %v4123, %v4551
  %v4603 = vadd.f32 %v4124, %v4555
  %v4604 = vadd.f32 %v4125, %v4557
  %v4605 = vadd.f32 %v4126, %v4559
  %v4606 = vadd.f32 %v4127, %v4561
  %v4607 = vadd.f32 %v4128, %v4565
  %v4608 = vadd.f32 %v4129, %v4567
  %v4609 = vadd.f32 %v4130, %v4569
  %v4610 = vadd.f32 %v4131, %v4571
  %v4611 = vadd.f32 %v4132, %v4575
  %v4612 = vadd.f32 %v4133, %v4577
  %v4613 = vadd.f32 %v4134, %v4579
  %v4614 = vadd.f32 %v4135, %v4581
  %v4615 = vpack.c.bf16 %v2785, %v2783
  %v4616 = vpack.c.bf16 %v2786, %v2784
  %v4617 = vpack.c.bf16 %v2791, %v2789
  %v4618 = vpack.c.bf16 %v2792, %v2790
  %v4619 = vpack.c.bf16 %v2797, %v2795
  %v4620 = vpack.c.bf16 %v2798, %v2796
  %v4621 = vpack.c.bf16 %v2803, %v2801
  %v4622 = vpack.c.bf16 %v2804, %v2802
  %v4623 = vpack.c.bf16 %v2809, %v2807
  %v4624 = vpack.c.bf16 %v2810, %v2808
  %v4625 = vpack.c.bf16 %v2815, %v2813
  %v4626 = vpack.c.bf16 %v2816, %v2814
  %v4627 = vpack.c.bf16 %v2821, %v2819
  %v4628 = vpack.c.bf16 %v2822, %v2820
  %v4629 = vpack.c.bf16 %v2827, %v2825
  %v4630 = vpack.c.bf16 %v2828, %v2826
  %s4631 = scalar_lea.vmem %s3, 960
  %v4632 = vld [vmem:[%s4631] sm:$0xff]
  %v4633 = vld [vmem:[%s4631 + $0x8] sm:$0xff]
  %v4634 = vld [vmem:[%s4631 + $0x10] sm:$0xff]
  %v4635 = vld [vmem:[%s4631 + $0x18] sm:$0xff]
  %v4636 = vld [vmem:[%s4631 + $0x20] sm:$0xff]
  %v4637 = vld [vmem:[%s4631 + $0x28] sm:$0xff]
  %v4638 = vld [vmem:[%s4631 + $0x30] sm:$0xff]
  %v4639 = vld [vmem:[%s4631 + $0x38] sm:$0xff]
  %v4640 = vld [vmem:[%s4631 + $0x40] sm:$0xff]
  %v4641 = vld [vmem:[%s4631 + $0x48] sm:$0xff]
  %v4642 = vld [vmem:[%s4631 + $0x50] sm:$0xff]
  %v4643 = vld [vmem:[%s4631 + $0x58] sm:$0xff]
  %v4644 = vld [vmem:[%s4631 + $0x60] sm:$0xff]
  %v4645 = vld [vmem:[%s4631 + $0x68] sm:$0xff]
  %v4646 = vld [vmem:[%s4631 + $0x70] sm:$0xff]
  %v4647 = vld [vmem:[%s4631 + $0x78] sm:$0xff]
  %v4648 = vld [vmem:[%s4631 + $0x80] sm:$0xff]
  %v4649 = vld [vmem:[%s4631 + $0x88] sm:$0xff]
  %v4650 = vld [vmem:[%s4631 + $0x90] sm:$0xff]
  %v4651 = vld [vmem:[%s4631 + $0x98] sm:$0xff]
  %v4652 = vld [vmem:[%s4631 + $0xa0] sm:$0xff]
  %v4653 = vld [vmem:[%s4631 + $0xa8] sm:$0xff]
  %v4654 = vld [vmem:[%s4631 + $0xb0] sm:$0xff]
  %v4655 = vld [vmem:[%s4631 + $0xb8] sm:$0xff]
  %v4656 = vld [vmem:[%s4631 + $0xc0] sm:$0xff]
  %v4657 = vld [vmem:[%s4631 + $0xc8] sm:$0xff]
  %v4658 = vld [vmem:[%s4631 + $0xd0] sm:$0xff]
  %v4659 = vld [vmem:[%s4631 + $0xd8] sm:$0xff]
  %v4660 = vld [vmem:[%s4631 + $0xe0] sm:$0xff]
  %v4661 = vld [vmem:[%s4631 + $0xe8] sm:$0xff]
  %v4692 = vunpack.c.l.b16 %v4632
  %v4693 = vunpack.c.h.b16 %v4632
  %v4694 = vunpack.c.l.b16 %v4633
  %v4695 = vunpack.c.h.b16 %v4633
  %v4696 = vunpack.c.l.b16 %v4634
  %v4697 = vunpack.c.h.b16 %v4634
  %v4698 = vunpack.c.l.b16 %v4635
  %v4699 = vunpack.c.h.b16 %v4635
  %v4700 = vunpack.c.l.b16 %v4636
  %v4701 = vunpack.c.h.b16 %v4636
  %v4702 = vunpack.c.l.b16 %v4637
  %v4703 = vunpack.c.h.b16 %v4637
  %v4704 = vunpack.c.l.b16 %v4638
  %v4705 = vunpack.c.h.b16 %v4638
  %v4706 = vunpack.c.l.b16 %v4639
  %v4707 = vunpack.c.h.b16 %v4639
  %v4708 = vunpack.c.l.b16 %v4640
  %v4709 = vunpack.c.h.b16 %v4640
  %v4710 = vunpack.c.l.b16 %v4641
  %v4711 = vunpack.c.h.b16 %v4641
  %v4712 = vunpack.c.l.b16 %v4642
  %v4713 = vunpack.c.h.b16 %v4642
  %v4714 = vunpack.c.l.b16 %v4643
  %v4715 = vunpack.c.h.b16 %v4643
  %v4716 = vunpack.c.l.b16 %v4644
  %v4717 = vunpack.c.h.b16 %v4644
  %v4718 = vunpack.c.l.b16 %v4645
  %v4719 = vunpack.c.h.b16 %v4645
  %v4720 = vunpack.c.l.b16 %v4646
  %v4721 = vunpack.c.h.b16 %v4646
  %v4722 = vunpack.c.l.b16 %v4647
  %v4723 = vunpack.c.h.b16 %v4647
  %v4724 = vunpack.c.l.b16 %v4648
  %v4725 = vunpack.c.h.b16 %v4648
  %v4726 = vunpack.c.l.b16 %v4649
  %v4727 = vunpack.c.h.b16 %v4649
  %v4728 = vunpack.c.l.b16 %v4650
  %v4729 = vunpack.c.h.b16 %v4650
  %v4730 = vunpack.c.l.b16 %v4651
  %v4731 = vunpack.c.h.b16 %v4651
  %v4732 = vunpack.c.l.b16 %v4652
  %v4733 = vunpack.c.h.b16 %v4652
  %v4734 = vunpack.c.l.b16 %v4653
  %v4735 = vunpack.c.h.b16 %v4653
  %v4736 = vunpack.c.l.b16 %v4654
  %v4737 = vunpack.c.h.b16 %v4654
  %v4738 = vunpack.c.l.b16 %v4655
  %v4739 = vunpack.c.h.b16 %v4655
  %v4740 = vunpack.c.l.b16 %v4656
  %v4741 = vunpack.c.h.b16 %v4656
  %v4742 = vunpack.c.l.b16 %v4657
  %v4743 = vunpack.c.h.b16 %v4657
  %v4744 = vunpack.c.l.b16 %v4658
  %v4745 = vunpack.c.h.b16 %v4658
  %v4746 = vunpack.c.l.b16 %v4659
  %v4747 = vunpack.c.h.b16 %v4659
  %v4748 = vunpack.c.l.b16 %v4660
  %v4749 = vunpack.c.h.b16 %v4660
  %v4750 = vunpack.c.l.b16 %v4661
  %v4751 = vunpack.c.h.b16 %v4661
  %v4752 = vpack.c.b16 %v4694, %v4692
  %v4753 = vpack.c.b16 %v4695, %v4693
  %v4754 = vpack.c.b16 %v4698, %v4696
  %v4755 = vpack.c.b16 %v4699, %v4697
  %v4756 = vpack.c.b16 %v4702, %v4700
  %v4757 = vpack.c.b16 %v4703, %v4701
  %v4758 = vpack.c.b16 %v4706, %v4704
  %v4759 = vpack.c.b16 %v4707, %v4705
  %v4760 = vpack.c.b16 %v4710, %v4708
  %v4761 = vpack.c.b16 %v4711, %v4709
  %v4762 = vpack.c.b16 %v4714, %v4712
  %v4763 = vpack.c.b16 %v4715, %v4713
  %v4764 = vpack.c.b16 %v4718, %v4716
  %v4765 = vpack.c.b16 %v4719, %v4717
  %v4766 = vpack.c.b16 %v4722, %v4720
  %v4767 = vpack.c.b16 %v4723, %v4721
  %v4768 = vpack.c.b16 %v4726, %v4724
  %v4769 = vpack.c.b16 %v4727, %v4725
  %v4770 = vpack.c.b16 %v4730, %v4728
  %v4771 = vpack.c.b16 %v4731, %v4729
  %v4772 = vpack.c.b16 %v4734, %v4732
  %v4773 = vpack.c.b16 %v4735, %v4733
  %v4774 = vpack.c.b16 %v4738, %v4736
  %v4775 = vpack.c.b16 %v4739, %v4737
  %v4776 = vpack.c.b16 %v4742, %v4740
  %v4777 = vpack.c.b16 %v4743, %v4741
  %v4778 = vpack.c.b16 %v4746, %v4744
  %v4779 = vpack.c.b16 %v4747, %v4745
  %v4780 = vpack.c.b16 %v4750, %v4748
  %v4781 = vpack.c.b16 %v4751, %v4749
  %v4813 = vsel %vm3232, %v4616, 0
  %v4816 = vsel %vm3232, %v4618, 0
  %v4819 = vsel %vm3232, %v4620, 0
  %v4822 = vsel %vm3232, %v4622, 0
  %v4825 = vsel %vm3232, %v4624, 0
  %v4828 = vsel %vm3232, %v4626, 0
  %v4831 = vsel %vm3232, %v4628, 0
  %v4834 = vsel %vm3232, %v4630, 0
  %4836 = vmatprep.subr.bf16.mxu0 %v4753
  %4837 = vmatpush1.bf16.msra.mxu0 %v4752
  %4838 = vmatprep.subr.bf16.mxu0 %v4755
  %4839 = vmatpush1.bf16.msra.mxu0 %v4754
  %4840 = vmatprep.subr.bf16.mxu0 %v4757
  %4841 = vmatpush1.bf16.msra.mxu0 %v4756
  %4842 = vmatprep.subr.bf16.mxu0 %v4759
  %4843 = vmatpush1.bf16.msra.mxu0 %v4758
  %4844 = vmatprep.subr.bf16.mxu0 %v4761
  %4845 = vmatpush1.bf16.msra.mxu0 %v4760
  %4846 = vmatprep.subr.bf16.mxu0 %v4763
  %4847 = vmatpush1.bf16.msra.mxu0 %v4762
  %4848 = vmatprep.subr.bf16.mxu0 %v4765
  %4849 = vmatpush1.bf16.msra.mxu0 %v4764
  %4850 = vmatprep.subr.bf16.mxu0 %v4767
  %4851 = vmatpush1.bf16.msra.mxu0 %v4766
  %4852 = vmatprep.subr.bf16.mxu0 %v4769
  %4853 = vmatpush1.bf16.msra.mxu0 %v4768
  %4854 = vmatprep.subr.bf16.mxu0 %v4771
  %4855 = vmatpush1.bf16.msra.mxu0 %v4770
  %4856 = vmatprep.subr.bf16.mxu0 %v4773
  %4857 = vmatpush1.bf16.msra.mxu0 %v4772
  %4858 = vmatprep.subr.bf16.mxu0 %v4775
  %4859 = vmatpush1.bf16.msra.mxu0 %v4774
  %4860 = vmatprep.subr.bf16.mxu0 %v4777
  %4861 = vmatpush1.bf16.msra.mxu0 %v4776
  %4862 = vmatprep.subr.bf16.mxu0 %v4779
  %4863 = vmatpush1.bf16.msra.mxu0 %v4778
  %4864 = vmatprep.subr.bf16.mxu0 %v4781
  %4865 = vmatpush1.bf16.msra.mxu0 %v4780
  %4866 = vmatprep.subr.bf16.mxu0 0
  %4867 = vmatpush1.bf16.msra.mxu0 0
  %4868 = vmatprep.mubr.bf16.mxu0 %v4813
  %4869 = vmatmul.mubr.bf16.gmra.mrb[0].mxu0 %v4615
  %v4870 = vpop.f32.mrb[0].mxu0
  %v4871 = vadd.f32 0.0, %v4870
  %v4872 = vpop.f32.mrb[0].mxu0
  %v4873 = vadd.f32 0.0, %v4872
  %v4874 = vpop.f32.mrb[0].mxu0
  %v4875 = vadd.f32 0.0, %v4874
  %v4876 = vpop.f32.mrb[0].mxu0
  %v4877 = vadd.f32 0.0, %v4876
  %4878 = vmatprep.mubr.bf16.mxu0 %v4816
  %4879 = vmatmul.mubr.bf16.gmra.mrb[0].mxu0 %v4617
  %v4880 = vpop.f32.mrb[0].mxu0
  %v4881 = vadd.f32 0.0, %v4880
  %v4882 = vpop.f32.mrb[0].mxu0
  %v4883 = vadd.f32 0.0, %v4882
  %v4884 = vpop.f32.mrb[0].mxu0
  %v4885 = vadd.f32 0.0, %v4884
  %v4886 = vpop.f32.mrb[0].mxu0
  %v4887 = vadd.f32 0.0, %v4886
  %4888 = vmatprep.mubr.bf16.mxu0 %v4819
  %4889 = vmatmul.mubr.bf16.gmra.mrb[0].mxu0 %v4619
  %v4890 = vpop.f32.mrb[0].mxu0
  %v4891 = vadd.f32 0.0, %v4890
  %v4892 = vpop.f32.mrb[0].mxu0
  %v4893 = vadd.f32 0.0, %v4892
  %v4894 = vpop.f32.mrb[0].mxu0
  %v4895 = vadd.f32 0.0, %v4894
  %v4896 = vpop.f32.mrb[0].mxu0
  %v4897 = vadd.f32 0.0, %v4896
  %4898 = vmatprep.mubr.bf16.mxu0 %v4822
  %4899 = vmatmul.mubr.bf16.gmra.mrb[0].mxu0 %v4621
  %v4900 = vpop.f32.mrb[0].mxu0
  %v4901 = vadd.f32 0.0, %v4900
  %v4902 = vpop.f32.mrb[0].mxu0
  %v4903 = vadd.f32 0.0, %v4902
  %v4904 = vpop.f32.mrb[0].mxu0
  %v4905 = vadd.f32 0.0, %v4904
  %v4906 = vpop.f32.mrb[0].mxu0
  %v4907 = vadd.f32 0.0, %v4906
  %4908 = vmatprep.mubr.bf16.mxu0 %v4825
  %4909 = vmatmul.mubr.bf16.gmra.mrb[0].mxu0 %v4623
  %v4910 = vpop.f32.mrb[0].mxu0
  %v4911 = vadd.f32 0.0, %v4910
  %v4912 = vpop.f32.mrb[0].mxu0
  %v4913 = vadd.f32 0.0, %v4912
  %v4914 = vpop.f32.mrb[0].mxu0
  %v4915 = vadd.f32 0.0, %v4914
  %v4916 = vpop.f32.mrb[0].mxu0
  %v4917 = vadd.f32 0.0, %v4916
  %4918 = vmatprep.mubr.bf16.mxu0 %v4828
  %4919 = vmatmul.mubr.bf16.gmra.mrb[0].mxu0 %v4625
  %v4920 = vpop.f32.mrb[0].mxu0
  %v4921 = vadd.f32 0.0, %v4920
  %v4922 = vpop.f32.mrb[0].mxu0
  %v4923 = vadd.f32 0.0, %v4922
  %v4924 = vpop.f32.mrb[0].mxu0
  %v4925 = vadd.f32 0.0, %v4924
  %v4926 = vpop.f32.mrb[0].mxu0
  %v4927 = vadd.f32 0.0, %v4926
  %4928 = vmatprep.mubr.bf16.mxu0 %v4831
  %4929 = vmatmul.mubr.bf16.gmra.mrb[0].mxu0 %v4627
  %v4930 = vpop.f32.mrb[0].mxu0
  %v4931 = vadd.f32 0.0, %v4930
  %v4932 = vpop.f32.mrb[0].mxu0
  %v4933 = vadd.f32 0.0, %v4932
  %v4934 = vpop.f32.mrb[0].mxu0
  %v4935 = vadd.f32 0.0, %v4934
  %v4936 = vpop.f32.mrb[0].mxu0
  %v4937 = vadd.f32 0.0, %v4936
  %4938 = vmatprep.mubr.bf16.mxu0 %v4834
  %4939 = vmatmul.mubr.bf16.gmra.mrb[0].mxu0 %v4629
  %v4940 = vpop.f32.mrb[0].mxu0
  %v4941 = vadd.f32 0.0, %v4940
  %v4942 = vpop.f32.mrb[0].mxu0
  %v4943 = vadd.f32 0.0, %v4942
  %v4944 = vpop.f32.mrb[0].mxu0
  %v4945 = vadd.f32 0.0, %v4944
  %v4946 = vpop.f32.mrb[0].mxu0
  %v4947 = vadd.f32 0.0, %v4946
  %4948 = vdwg.mxu0
  %v4949 = vadd.f32 %v4583, %v4871
  %v4950 = vadd.f32 %v4584, %v4873
  %v4951 = vadd.f32 %v4585, %v4875
  %v4952 = vadd.f32 %v4586, %v4877
  %v4953 = vadd.f32 %v4587, %v4881
  %v4954 = vadd.f32 %v4588, %v4883
  %v4955 = vadd.f32 %v4589, %v4885
  %v4956 = vadd.f32 %v4590, %v4887
  %v4957 = vadd.f32 %v4591, %v4891
  %v4958 = vadd.f32 %v4592, %v4893
  %v4959 = vadd.f32 %v4593, %v4895
  %v4960 = vadd.f32 %v4594, %v4897
  %v4961 = vadd.f32 %v4595, %v4901
  %v4962 = vadd.f32 %v4596, %v4903
  %v4963 = vadd.f32 %v4597, %v4905
  %v4964 = vadd.f32 %v4598, %v4907
  %v4965 = vadd.f32 %v4599, %v4911
  %v4966 = vadd.f32 %v4600, %v4913
  %v4967 = vadd.f32 %v4601, %v4915
  %v4968 = vadd.f32 %v4602, %v4917
  %v4969 = vadd.f32 %v4603, %v4921
  %v4970 = vadd.f32 %v4604, %v4923
  %v4971 = vadd.f32 %v4605, %v4925
  %v4972 = vadd.f32 %v4606, %v4927
  %v4973 = vadd.f32 %v4607, %v4931
  %v4974 = vadd.f32 %v4608, %v4933
  %v4975 = vadd.f32 %v4609, %v4935
  %v4976 = vadd.f32 %v4610, %v4937
  %v4977 = vadd.f32 %v4611, %v4941
  %v4978 = vadd.f32 %v4612, %v4943
  %v4979 = vadd.f32 %v4613, %v4945
  %v4980 = vadd.f32 %v4614, %v4947
  %v4981 = vld [vmem:[%s4] sm:$0x3]
  %v4983 = vlaneseq
  %v4984 = vshrl.u32 %v4983, 7
  %v4985 = vsub.s32 0, %v4984
  %v4986 = vrot.slane %v4981, %v4985
  %v4987 = vlaneseq
  %v4988 = vshrl.u32 %v4987, 7
  %v4989 = vsub.s32 1, %v4988
  %v4990 = vrot.slane %v4981, %v4989
  %v4993 = vadd.f32 %v4949, %v4986
  %v4994 = vadd.f32 %v4950, %v4990
  %v4995 = vadd.f32 %v4951, %v4986
  %v4996 = vadd.f32 %v4952, %v4990
  %v4997 = vadd.f32 %v4953, %v4986
  %v4998 = vadd.f32 %v4954, %v4990
  %v4999 = vadd.f32 %v4955, %v4986
  %v5000 = vadd.f32 %v4956, %v4990
  %v5001 = vadd.f32 %v4957, %v4986
  %v5002 = vadd.f32 %v4958, %v4990
  %v5003 = vadd.f32 %v4959, %v4986
  %v5004 = vadd.f32 %v4960, %v4990
  %v5005 = vadd.f32 %v4961, %v4986
  %v5006 = vadd.f32 %v4962, %v4990
  %v5007 = vadd.f32 %v4963, %v4986
  %v5008 = vadd.f32 %v4964, %v4990
  %v5009 = vadd.f32 %v4965, %v4986
  %v5010 = vadd.f32 %v4966, %v4990
  %v5011 = vadd.f32 %v4967, %v4986
  %v5012 = vadd.f32 %v4968, %v4990
  %v5013 = vadd.f32 %v4969, %v4986
  %v5014 = vadd.f32 %v4970, %v4990
  %v5015 = vadd.f32 %v4971, %v4986
  %v5016 = vadd.f32 %v4972, %v4990
  %v5017 = vadd.f32 %v4973, %v4986
  %v5018 = vadd.f32 %v4974, %v4990
  %v5019 = vadd.f32 %v4975, %v4986
  %v5020 = vadd.f32 %v4976, %v4990
  %v5021 = vadd.f32 %v4977, %v4986
  %v5022 = vadd.f32 %v4978, %v4990
  %v5023 = vadd.f32 %v4979, %v4986
  %v5024 = vadd.f32 %v4980, %v4990
  %5057 = vrot.lane.b32.xlu0 %v4993, 127
  %v5058 = vpop.permute.xlu0 %5057
  %5059 = vrot.lane.b32.xlu0 %v4994, 127
  %v5060 = vpop.permute.xlu0 %5059
  %5061 = vrot.lane.b32.xlu0 %v4995, 127
  %v5062 = vpop.permute.xlu0 %5061
  %5063 = vrot.lane.b32.xlu0 %v4996, 127
  %v5064 = vpop.permute.xlu0 %5063
  %5065 = vrot.lane.b32.xlu0 %v4997, 127
  %v5066 = vpop.permute.xlu0 %5065
  %5067 = vrot.lane.b32.xlu0 %v4998, 127
  %v5068 = vpop.permute.xlu0 %5067
  %5069 = vrot.lane.b32.xlu0 %v4999, 127
  %v5070 = vpop.permute.xlu0 %5069
  %5071 = vrot.lane.b32.xlu0 %v5000, 127
  %v5072 = vpop.permute.xlu0 %5071
  %5073 = vrot.lane.b32.xlu0 %v5001, 127
  %v5074 = vpop.permute.xlu0 %5073
  %5075 = vrot.lane.b32.xlu0 %v5002, 127
  %v5076 = vpop.permute.xlu0 %5075
  %5077 = vrot.lane.b32.xlu0 %v5003, 127
  %v5078 = vpop.permute.xlu0 %5077
  %5079 = vrot.lane.b32.xlu0 %v5004, 127
  %v5080 = vpop.permute.xlu0 %5079
  %5081 = vrot.lane.b32.xlu0 %v5005, 127
  %v5082 = vpop.permute.xlu0 %5081
  %5083 = vrot.lane.b32.xlu0 %v5006, 127
  %v5084 = vpop.permute.xlu0 %5083
  %5085 = vrot.lane.b32.xlu0 %v5007, 127
  %v5086 = vpop.permute.xlu0 %5085
  %5087 = vrot.lane.b32.xlu0 %v5008, 127
  %v5088 = vpop.permute.xlu0 %5087
  %5089 = vrot.lane.b32.xlu0 %v5009, 127
  %v5090 = vpop.permute.xlu0 %5089
  %5091 = vrot.lane.b32.xlu0 %v5010, 127
  %v5092 = vpop.permute.xlu0 %5091
  %5093 = vrot.lane.b32.xlu0 %v5011, 127
  %v5094 = vpop.permute.xlu0 %5093
  %5095 = vrot.lane.b32.xlu0 %v5012, 127
  %v5096 = vpop.permute.xlu0 %5095
  %5097 = vrot.lane.b32.xlu0 %v5013, 127
  %v5098 = vpop.permute.xlu0 %5097
  %5099 = vrot.lane.b32.xlu0 %v5014, 127
  %v5100 = vpop.permute.xlu0 %5099
  %5101 = vrot.lane.b32.xlu0 %v5015, 127
  %v5102 = vpop.permute.xlu0 %5101
  %5103 = vrot.lane.b32.xlu0 %v5016, 127
  %v5104 = vpop.permute.xlu0 %5103
  %5105 = vrot.lane.b32.xlu0 %v5017, 127
  %v5106 = vpop.permute.xlu0 %5105
  %5107 = vrot.lane.b32.xlu0 %v5018, 127
  %v5108 = vpop.permute.xlu0 %5107
  %5109 = vrot.lane.b32.xlu0 %v5019, 127
  %v5110 = vpop.permute.xlu0 %5109
  %5111 = vrot.lane.b32.xlu0 %v5020, 127
  %v5112 = vpop.permute.xlu0 %5111
  %5113 = vrot.lane.b32.xlu0 %v5021, 127
  %v5114 = vpop.permute.xlu0 %5113
  %5115 = vrot.lane.b32.xlu0 %v5022, 127
  %v5116 = vpop.permute.xlu0 %5115
  %5117 = vrot.lane.b32.xlu0 %v5023, 127
  %v5118 = vpop.permute.xlu0 %5117
  %5119 = vrot.lane.b32.xlu0 %v5024, 127
  %v5120 = vpop.permute.xlu0 %5119
  %v5121 = vsel %vm2320, %v5058, %v5060
  %v5122 = vsel %vm2320, %v5062, %v5064
  %v5123 = vsel %vm2320, %v5066, %v5068
  %v5124 = vsel %vm2320, %v5070, %v5072
  %v5125 = vsel %vm2320, %v5074, %v5076
  %v5126 = vsel %vm2320, %v5078, %v5080
  %v5127 = vsel %vm2320, %v5082, %v5084
  %v5128 = vsel %vm2320, %v5086, %v5088
  %v5129 = vsel %vm2320, %v5090, %v5092
  %v5130 = vsel %vm2320, %v5094, %v5096
  %v5131 = vsel %vm2320, %v5098, %v5100
  %v5132 = vsel %vm2320, %v5102, %v5104
  %v5133 = vsel %vm2320, %v5106, %v5108
  %v5134 = vsel %vm2320, %v5110, %v5112
  %v5135 = vsel %vm2320, %v5114, %v5116
  %v5136 = vsel %vm2320, %v5118, %v5120
  %5169 = vrot.lane.b32.xlu0 %v4993, 31
  %v5170 = vpop.permute.xlu0 %5169
  %5171 = vrot.lane.b32.xlu0 %v4995, 31
  %v5172 = vpop.permute.xlu0 %5171
  %5173 = vrot.lane.b32.xlu0 %v4997, 31
  %v5174 = vpop.permute.xlu0 %5173
  %5175 = vrot.lane.b32.xlu0 %v4999, 31
  %v5176 = vpop.permute.xlu0 %5175
  %5177 = vrot.lane.b32.xlu0 %v5001, 31
  %v5178 = vpop.permute.xlu0 %5177
  %5179 = vrot.lane.b32.xlu0 %v5003, 31
  %v5180 = vpop.permute.xlu0 %5179
  %5181 = vrot.lane.b32.xlu0 %v5005, 31
  %v5182 = vpop.permute.xlu0 %5181
  %5183 = vrot.lane.b32.xlu0 %v5007, 31
  %v5184 = vpop.permute.xlu0 %5183
  %5185 = vrot.lane.b32.xlu0 %v5009, 31
  %v5186 = vpop.permute.xlu0 %5185
  %5187 = vrot.lane.b32.xlu0 %v5011, 31
  %v5188 = vpop.permute.xlu0 %5187
  %5189 = vrot.lane.b32.xlu0 %v5013, 31
  %v5190 = vpop.permute.xlu0 %5189
  %5191 = vrot.lane.b32.xlu0 %v5015, 31
  %v5192 = vpop.permute.xlu0 %5191
  %5193 = vrot.lane.b32.xlu0 %v5017, 31
  %v5194 = vpop.permute.xlu0 %5193
  %5195 = vrot.lane.b32.xlu0 %v5019, 31
  %v5196 = vpop.permute.xlu0 %5195
  %5197 = vrot.lane.b32.xlu0 %v5021, 31
  %v5198 = vpop.permute.xlu0 %5197
  %5199 = vrot.lane.b32.xlu0 %v5023, 31
  %v5200 = vpop.permute.xlu0 %5199
  %vm5217 = vcmask 252928
  %v5218 = vsel %vm5217, %v5060, %v5170
  %v5219 = vsel %vm5217, %v5064, %v5172
  %v5220 = vsel %vm5217, %v5068, %v5174
  %v5221 = vsel %vm5217, %v5072, %v5176
  %v5222 = vsel %vm5217, %v5076, %v5178
  %v5223 = vsel %vm5217, %v5080, %v5180
  %v5224 = vsel %vm5217, %v5084, %v5182
  %v5225 = vsel %vm5217, %v5088, %v5184
  %v5226 = vsel %vm5217, %v5092, %v5186
  %v5227 = vsel %vm5217, %v5096, %v5188
  %v5228 = vsel %vm5217, %v5100, %v5190
  %v5229 = vsel %vm5217, %v5104, %v5192
  %v5230 = vsel %vm5217, %v5108, %v5194
  %v5231 = vsel %vm5217, %v5112, %v5196
  %v5232 = vsel %vm5217, %v5116, %v5198
  %v5233 = vsel %vm5217, %v5120, %v5200
  %v5234 = vmax.f32 %v4993, %v5121
  %v5235 = vmax.f32 %v4994, %v5218
  %v5236 = vmax.f32 %v4995, %v5122
  %v5237 = vmax.f32 %v4996, %v5219
  %v5238 = vmax.f32 %v4997, %v5123
  %v5239 = vmax.f32 %v4998, %v5220
  %v5240 = vmax.f32 %v4999, %v5124
  %v5241 = vmax.f32 %v5000, %v5221
  %v5242 = vmax.f32 %v5001, %v5125
  %v5243 = vmax.f32 %v5002, %v5222
  %v5244 = vmax.f32 %v5003, %v5126
  %v5245 = vmax.f32 %v5004, %v5223
  %v5246 = vmax.f32 %v5005, %v5127
  %v5247 = vmax.f32 %v5006, %v5224
  %v5248 = vmax.f32 %v5007, %v5128
  %v5249 = vmax.f32 %v5008, %v5225
  %v5250 = vmax.f32 %v5009, %v5129
  %v5251 = vmax.f32 %v5010, %v5226
  %v5252 = vmax.f32 %v5011, %v5130
  %v5253 = vmax.f32 %v5012, %v5227
  %v5254 = vmax.f32 %v5013, %v5131
  %v5255 = vmax.f32 %v5014, %v5228
  %v5256 = vmax.f32 %v5015, %v5132
  %v5257 = vmax.f32 %v5016, %v5229
  %v5258 = vmax.f32 %v5017, %v5133
  %v5259 = vmax.f32 %v5018, %v5230
  %v5260 = vmax.f32 %v5019, %v5134
  %v5261 = vmax.f32 %v5020, %v5231
  %v5262 = vmax.f32 %v5021, %v5135
  %v5263 = vmax.f32 %v5022, %v5232
  %v5264 = vmax.f32 %v5023, %v5136
  %v5265 = vmax.f32 %v5024, %v5233
  %v5266 = vmax.f32 %v5234, 0.0
  %v5267 = vmax.f32 %v5235, 0.0
  %v5268 = vmax.f32 %v5236, 0.0
  %v5269 = vmax.f32 %v5237, 0.0
  %v5270 = vmax.f32 %v5238, 0.0
  %v5271 = vmax.f32 %v5239, 0.0
  %v5272 = vmax.f32 %v5240, 0.0
  %v5273 = vmax.f32 %v5241, 0.0
  %v5274 = vmax.f32 %v5242, 0.0
  %v5275 = vmax.f32 %v5243, 0.0
  %v5276 = vmax.f32 %v5244, 0.0
  %v5277 = vmax.f32 %v5245, 0.0
  %v5278 = vmax.f32 %v5246, 0.0
  %v5279 = vmax.f32 %v5247, 0.0
  %v5280 = vmax.f32 %v5248, 0.0
  %v5281 = vmax.f32 %v5249, 0.0
  %v5282 = vmax.f32 %v5250, 0.0
  %v5283 = vmax.f32 %v5251, 0.0
  %v5284 = vmax.f32 %v5252, 0.0
  %v5285 = vmax.f32 %v5253, 0.0
  %v5286 = vmax.f32 %v5254, 0.0
  %v5287 = vmax.f32 %v5255, 0.0
  %v5288 = vmax.f32 %v5256, 0.0
  %v5289 = vmax.f32 %v5257, 0.0
  %v5290 = vmax.f32 %v5258, 0.0
  %v5291 = vmax.f32 %v5259, 0.0
  %v5292 = vmax.f32 %v5260, 0.0
  %v5293 = vmax.f32 %v5261, 0.0
  %v5294 = vmax.f32 %v5262, 0.0
  %v5295 = vmax.f32 %v5263, 0.0
  %v5296 = vmax.f32 %v5264, 0.0
  %v5297 = vmax.f32 %v5265, 0.0
  %v5330 = vrot.slane %v5266, 2
  %v5331 = vrot.slane %v5268, 2
  %v5332 = vsel %vm440, %v5330, %v5331
  %v5333 = vrot.slane %v5267, 2
  %v5334 = vrot.slane %v5269, 2
  %v5335 = vsel %vm440, %v5333, %v5334
  %v5336 = vrot.slane %v5270, 2
  %v5337 = vsel %vm440, %v5331, %v5336
  %v5338 = vrot.slane %v5271, 2
  %v5339 = vsel %vm440, %v5334, %v5338
  %v5340 = vrot.slane %v5272, 2
  %v5341 = vsel %vm440, %v5336, %v5340
  %v5342 = vrot.slane %v5273, 2
  %v5343 = vsel %vm440, %v5338, %v5342
  %v5344 = vrot.slane %v5274, 2
  %v5345 = vsel %vm440, %v5340, %v5344
  %v5346 = vrot.slane %v5275, 2
  %v5347 = vsel %vm440, %v5342, %v5346
  %v5348 = vrot.slane %v5276, 2
  %v5349 = vsel %vm440, %v5344, %v5348
  %v5350 = vrot.slane %v5277, 2
  %v5351 = vsel %vm440, %v5346, %v5350
  %v5352 = vrot.slane %v5278, 2
  %v5353 = vsel %vm440, %v5348, %v5352
  %v5354 = vrot.slane %v5279, 2
  %v5355 = vsel %vm440, %v5350, %v5354
  %v5356 = vrot.slane %v5280, 2
  %v5357 = vsel %vm440, %v5352, %v5356
  %v5358 = vrot.slane %v5281, 2
  %v5359 = vsel %vm440, %v5354, %v5358
  %v5360 = vrot.slane %v5282, 2
  %v5361 = vsel %vm440, %v5356, %v5360
  %v5362 = vrot.slane %v5283, 2
  %v5363 = vsel %vm440, %v5358, %v5362
  %v5364 = vrot.slane %v5284, 2
  %v5365 = vsel %vm440, %v5360, %v5364
  %v5366 = vrot.slane %v5285, 2
  %v5367 = vsel %vm440, %v5362, %v5366
  %v5368 = vrot.slane %v5286, 2
  %v5369 = vsel %vm440, %v5364, %v5368
  %v5370 = vrot.slane %v5287, 2
  %v5371 = vsel %vm440, %v5366, %v5370
  %v5372 = vrot.slane %v5288, 2
  %v5373 = vsel %vm440, %v5368, %v5372
  %v5374 = vrot.slane %v5289, 2
  %v5375 = vsel %vm440, %v5370, %v5374
  %v5376 = vrot.slane %v5290, 2
  %v5377 = vsel %vm440, %v5372, %v5376
  %v5378 = vrot.slane %v5291, 2
  %v5379 = vsel %vm440, %v5374, %v5378
  %v5380 = vrot.slane %v5292, 2
  %v5381 = vsel %vm440, %v5376, %v5380
  %v5382 = vrot.slane %v5293, 2
  %v5383 = vsel %vm440, %v5378, %v5382
  %v5384 = vrot.slane %v5294, 2
  %v5385 = vsel %vm440, %v5380, %v5384
  %v5386 = vrot.slane %v5295, 2
  %v5387 = vsel %vm440, %v5382, %v5386
  %v5388 = vrot.slane %v5296, 2
  %v5389 = vsel %vm440, %v5384, %v5388
  %v5390 = vrot.slane %v5297, 2
  %v5391 = vsel %vm440, %v5386, %v5390
  %v5426 = vsel %vm440, %v5388, %v5330
  %v5427 = vsel %vm440, %v5390, %v5333
  %v5428 = vmax.f32 %v5266, %v5332
  %v5429 = vmax.f32 %v5267, %v5335
  %v5430 = vmax.f32 %v5268, %v5337
  %v5431 = vmax.f32 %v5269, %v5339
  %v5432 = vmax.f32 %v5270, %v5341
  %v5433 = vmax.f32 %v5271, %v5343
  %v5434 = vmax.f32 %v5272, %v5345
  %v5435 = vmax.f32 %v5273, %v5347
  %v5436 = vmax.f32 %v5274, %v5349
  %v5437 = vmax.f32 %v5275, %v5351
  %v5438 = vmax.f32 %v5276, %v5353
  %v5439 = vmax.f32 %v5277, %v5355
  %v5440 = vmax.f32 %v5278, %v5357
  %v5441 = vmax.f32 %v5279, %v5359
  %v5442 = vmax.f32 %v5280, %v5361
  %v5443 = vmax.f32 %v5281, %v5363
  %v5444 = vmax.f32 %v5282, %v5365
  %v5445 = vmax.f32 %v5283, %v5367
  %v5446 = vmax.f32 %v5284, %v5369
  %v5447 = vmax.f32 %v5285, %v5371
  %v5448 = vmax.f32 %v5286, %v5373
  %v5449 = vmax.f32 %v5287, %v5375
  %v5450 = vmax.f32 %v5288, %v5377
  %v5451 = vmax.f32 %v5289, %v5379
  %v5452 = vmax.f32 %v5290, %v5381
  %v5453 = vmax.f32 %v5291, %v5383
  %v5454 = vmax.f32 %v5292, %v5385
  %v5455 = vmax.f32 %v5293, %v5387
  %v5456 = vmax.f32 %v5294, %v5389
  %v5457 = vmax.f32 %v5295, %v5391
  %v5458 = vmax.f32 %v5296, %v5426
  %v5459 = vmax.f32 %v5297, %v5427
  %v5476 = vrot.slane %v5432, 7
  %vm5477 = vcmask 1041409
  %v5478 = vsel %vm5477, %v5476, %v5428
  %v5479 = vrot.slane %v5436, 6
  %vm5480 = vcmask 1042434
  %v5481 = vsel %vm5480, %v5479, %v5478
  %v5482 = vrot.slane %v5440, 5
  %vm5483 = vcmask 1043459
  %v5484 = vsel %vm5483, %v5482, %v5481
  %v5485 = vrot.slane %v5444, 4
  %vm5486 = vcmask 1044484
  %v5487 = vsel %vm5486, %v5485, %v5484
  %v5488 = vrot.slane %v5448, 3
  %vm5489 = vcmask 1045509
  %v5490 = vsel %vm5489, %v5488, %v5487
  %v5491 = vrot.slane %v5452, 2
  %vm5492 = vcmask 1046534
  %v5493 = vsel %vm5492, %v5491, %v5490
  %v5494 = vrot.slane %v5456, 1
  %vm5495 = vcmask 1047559
  %v5496 = vsel %vm5495, %v5494, %v5493
  %v5497 = vrot.slane %v5433, 7
  %v5498 = vsel %vm5477, %v5497, %v5429
  %v5499 = vrot.slane %v5437, 6
  %v5500 = vsel %vm5480, %v5499, %v5498
  %v5501 = vrot.slane %v5441, 5
  %v5502 = vsel %vm5483, %v5501, %v5500
  %v5503 = vrot.slane %v5445, 4
  %v5504 = vsel %vm5486, %v5503, %v5502
  %v5505 = vrot.slane %v5449, 3
  %v5506 = vsel %vm5489, %v5505, %v5504
  %v5507 = vrot.slane %v5453, 2
  %v5508 = vsel %vm5492, %v5507, %v5506
  %v5509 = vrot.slane %v5457, 1
  %v5510 = vsel %vm5495, %v5509, %v5508
  %v5513 = vrot.slane %v5428, 4
  %v5514 = vrot.slane %v5432, 3
  %v5515 = vsel %vm5477, %v5514, %v5513
  %v5516 = vrot.slane %v5436, 2
  %v5517 = vsel %vm5480, %v5516, %v5515
  %v5518 = vrot.slane %v5440, 1
  %v5519 = vsel %vm5483, %v5518, %v5517
  %v5520 = vsel %vm5486, %v5444, %v5519
  %v5521 = vrot.slane %v5448, 7
  %v5522 = vsel %vm5489, %v5521, %v5520
  %v5523 = vrot.slane %v5452, 6
  %v5524 = vsel %vm5492, %v5523, %v5522
  %v5525 = vrot.slane %v5456, 5
  %v5526 = vsel %vm5495, %v5525, %v5524
  %v5527 = vrot.slane %v5429, 4
  %v5528 = vrot.slane %v5433, 3
  %v5529 = vsel %vm5477, %v5528, %v5527
  %v5530 = vrot.slane %v5437, 2
  %v5531 = vsel %vm5480, %v5530, %v5529
  %v5532 = vrot.slane %v5441, 1
  %v5533 = vsel %vm5483, %v5532, %v5531
  %v5534 = vsel %vm5486, %v5445, %v5533
  %v5535 = vrot.slane %v5449, 7
  %v5536 = vsel %vm5489, %v5535, %v5534
  %v5537 = vrot.slane %v5453, 6
  %v5538 = vsel %vm5492, %v5537, %v5536
  %v5539 = vrot.slane %v5457, 5
  %v5540 = vsel %vm5495, %v5539, %v5538
  %5541 = vrot.lane.b32.xlu0 %v5526, 32
  %v5542 = vpop.permute.xlu0 %5541
  %5543 = vrot.lane.b32.xlu0 %v5540, 32
  %v5544 = vpop.permute.xlu0 %5543
  %vm5545 = vcmask 261120
  %v5546 = vsel %vm5545, %v5542, %v5544
  %v5565 = vrot.slane %v5434, 7
  %v5566 = vsel %vm5477, %v5565, %v5430
  %v5567 = vrot.slane %v5438, 6
  %v5568 = vsel %vm5480, %v5567, %v5566
  %v5569 = vrot.slane %v5442, 5
  %v5570 = vsel %vm5483, %v5569, %v5568
  %v5571 = vrot.slane %v5446, 4
  %v5572 = vsel %vm5486, %v5571, %v5570
  %v5573 = vrot.slane %v5450, 3
  %v5574 = vsel %vm5489, %v5573, %v5572
  %v5575 = vrot.slane %v5454, 2
  %v5576 = vsel %vm5492, %v5575, %v5574
  %v5577 = vrot.slane %v5458, 1
  %v5578 = vsel %vm5495, %v5577, %v5576
  %v5579 = vrot.slane %v5435, 7
  %v5580 = vsel %vm5477, %v5579, %v5431
  %v5581 = vrot.slane %v5439, 6
  %v5582 = vsel %vm5480, %v5581, %v5580
  %v5583 = vrot.slane %v5443, 5
  %v5584 = vsel %vm5483, %v5583, %v5582
  %v5585 = vrot.slane %v5447, 4
  %v5586 = vsel %vm5486, %v5585, %v5584
  %v5587 = vrot.slane %v5451, 3
  %v5588 = vsel %vm5489, %v5587, %v5586
  %v5589 = vrot.slane %v5455, 2
  %v5590 = vsel %vm5492, %v5589, %v5588
  %v5591 = vrot.slane %v5459, 1
  %v5592 = vsel %vm5495, %v5591, %v5590
  %5593 = vrot.lane.b32.xlu0 %v5578, 64
  %v5594 = vpop.permute.xlu0 %5593
  %5595 = vrot.lane.b32.xlu0 %v5592, 64
  %v5596 = vpop.permute.xlu0 %5595
  %vm5597 = vcmask 523264
  %v5598 = vsel %vm5597, %v5594, %v5596
  %v5601 = vrot.slane %v5430, 4
  %v5602 = vrot.slane %v5434, 3
  %v5603 = vsel %vm5477, %v5602, %v5601
  %v5604 = vrot.slane %v5438, 2
  %v5605 = vsel %vm5480, %v5604, %v5603
  %v5606 = vrot.slane %v5442, 1
  %v5607 = vsel %vm5483, %v5606, %v5605
  %v5608 = vsel %vm5486, %v5446, %v5607
  %v5609 = vrot.slane %v5450, 7
  %v5610 = vsel %vm5489, %v5609, %v5608
  %v5611 = vrot.slane %v5454, 6
  %v5612 = vsel %vm5492, %v5611, %v5610
  %v5613 = vrot.slane %v5458, 5
  %v5614 = vsel %vm5495, %v5613, %v5612
  %v5615 = vrot.slane %v5431, 4
  %v5616 = vrot.slane %v5435, 3
  %v5617 = vsel %vm5477, %v5616, %v5615
  %v5618 = vrot.slane %v5439, 2
  %v5619 = vsel %vm5480, %v5618, %v5617
  %v5620 = vrot.slane %v5443, 1
  %v5621 = vsel %vm5483, %v5620, %v5619
  %v5622 = vsel %vm5486, %v5447, %v5621
  %v5623 = vrot.slane %v5451, 7
  %v5624 = vsel %vm5489, %v5623, %v5622
  %v5625 = vrot.slane %v5455, 6
  %v5626 = vsel %vm5492, %v5625, %v5624
  %v5627 = vrot.slane %v5459, 5
  %v5628 = vsel %vm5495, %v5627, %v5626
  %5629 = vrot.lane.b32.xlu0 %v5614, 96
  %v5630 = vpop.permute.xlu0 %5629
  %5631 = vrot.lane.b32.xlu0 %v5628, 96
  %v5632 = vpop.permute.xlu0 %5631
  %vm5633 = vcmask 785408
  %v5634 = vsel %vm5633, %v5630, %v5632
  %v5637 = vsel %vm5545, %v5510, %v5542
  %v5638 = vsel %vm5597, %v5546, %v5594
  %v5639 = vsel %vm5633, %v5598, %v5630
  %v5640 = vpack.c.bf16 %v5496, %v5496
  %v5641 = vpack.c.bf16 %v5637, %v5637
  %v5642 = vpack.c.bf16 %v5638, %v5638
  %v5643 = vpack.c.bf16 %v5639, %v5639
  %v5644 = vpack.c.bf16 %v5634, %v5634
  %v5645 = vld [vmem:[%s5] sm:$0xf]
  %v5646 = vld [vmem:[%s5 + $0x4] sm:$0xf]
  %v5647 = vld [vmem:[%s5 + $0x8] sm:$0xf]
  %v5648 = vld [vmem:[%s5 + $0xc] sm:$0xf]
  %v5649 = vld [vmem:[%s5 + $0x10] sm:$0xf]
  %v5650 = vld [vmem:[%s5 + $0x14] sm:$0xf]
  %v5651 = vld [vmem:[%s5 + $0x18] sm:$0xf]
  %v5652 = vld [vmem:[%s5 + $0x1c] sm:$0xf]
  %v5653 = vld [vmem:[%s5 + $0x20] sm:$0xf]
  %v5654 = vld [vmem:[%s5 + $0x24] sm:$0xf]
  %v5655 = vld [vmem:[%s5 + $0x28] sm:$0xf]
  %v5656 = vld [vmem:[%s5 + $0x2c] sm:$0xf]
  %v5657 = vld [vmem:[%s5 + $0x30] sm:$0xf]
  %v5658 = vld [vmem:[%s5 + $0x34] sm:$0xf]
  %v5659 = vld [vmem:[%s5 + $0x38] sm:$0xf]
  %v5660 = vld [vmem:[%s5 + $0x3c] sm:$0xf]
  %v5661 = vld [vmem:[%s5 + $0x40] sm:$0xf]
  %v5662 = vld [vmem:[%s5 + $0x44] sm:$0xf]
  %v5663 = vld [vmem:[%s5 + $0x48] sm:$0xf]
  %v5664 = vld [vmem:[%s5 + $0x4c] sm:$0xf]
  %v5665 = vld [vmem:[%s5 + $0x50] sm:$0xf]
  %v5666 = vld [vmem:[%s5 + $0x54] sm:$0xf]
  %v5667 = vld [vmem:[%s5 + $0x58] sm:$0xf]
  %v5668 = vld [vmem:[%s5 + $0x5c] sm:$0xf]
  %v5669 = vld [vmem:[%s5 + $0x60] sm:$0xf]
  %v5670 = vld [vmem:[%s5 + $0x64] sm:$0xf]
  %v5671 = vld [vmem:[%s5 + $0x68] sm:$0xf]
  %v5672 = vld [vmem:[%s5 + $0x6c] sm:$0xf]
  %v5673 = vld [vmem:[%s5 + $0x70] sm:$0xf]
  %v5674 = vld [vmem:[%s5 + $0x74] sm:$0xf]
  %v5675 = vld [vmem:[%s5 + $0x78] sm:$0xf]
  %v5676 = vld [vmem:[%s5 + $0x7c] sm:$0xf]
  %v5677 = vld [vmem:[%s5 + $0x80] sm:$0xf]
  %v5678 = vld [vmem:[%s5 + $0x84] sm:$0xf]
  %v5679 = vld [vmem:[%s5 + $0x88] sm:$0xf]
  %v5680 = vld [vmem:[%s5 + $0x8c] sm:$0xf]
  %v5681 = vld [vmem:[%s5 + $0x90] sm:$0xf]
  %v5682 = vld [vmem:[%s5 + $0x94] sm:$0xf]
  %v5683 = vld [vmem:[%s5 + $0x98] sm:$0xf]
  %v5684 = vld [vmem:[%s5 + $0x9c] sm:$0xf]
  %v5685 = vld [vmem:[%s5 + $0xa0] sm:$0xf]
  %v5686 = vld [vmem:[%s5 + $0xa4] sm:$0xf]
  %v5687 = vld [vmem:[%s5 + $0xa8] sm:$0xf]
  %v5688 = vld [vmem:[%s5 + $0xac] sm:$0xf]
  %v5689 = vld [vmem:[%s5 + $0xb0] sm:$0xf]
  %v5690 = vld [vmem:[%s5 + $0xb4] sm:$0xf]
  %v5691 = vld [vmem:[%s5 + $0xb8] sm:$0xf]
  %v5692 = vld [vmem:[%s5 + $0xbc] sm:$0xf]
  %v5693 = vld [vmem:[%s5 + $0xc0] sm:$0xf]
  %v5694 = vld [vmem:[%s5 + $0xc4] sm:$0xf]
  %v5695 = vld [vmem:[%s5 + $0xc8] sm:$0xf]
  %v5696 = vld [vmem:[%s5 + $0xcc] sm:$0xf]
  %v5697 = vld [vmem:[%s5 + $0xd0] sm:$0xf]
  %v5698 = vld [vmem:[%s5 + $0xd4] sm:$0xf]
  %v5699 = vld [vmem:[%s5 + $0xd8] sm:$0xf]
  %v5700 = vld [vmem:[%s5 + $0xdc] sm:$0xf]
  %v5701 = vld [vmem:[%s5 + $0xe0] sm:$0xf]
  %v5702 = vld [vmem:[%s5 + $0xe4] sm:$0xf]
  %v5703 = vld [vmem:[%s5 + $0xe8] sm:$0xf]
  %v5704 = vld [vmem:[%s5 + $0xec] sm:$0xf]
  %v5705 = vld [vmem:[%s5 + $0xf0] sm:$0xf]
  %v5706 = vld [vmem:[%s5 + $0xf4] sm:$0xf]
  %v5707 = vld [vmem:[%s5 + $0xf8] sm:$0xf]
  %v5708 = vld [vmem:[%s5 + $0xfc] sm:$0xf]
  %v5709 = vld [vmem:[%s5 + $0x100] sm:$0xf]
  %v5710 = vld [vmem:[%s5 + $0x104] sm:$0xf]
  %v5711 = vld [vmem:[%s5 + $0x108] sm:$0xf]
  %v5712 = vld [vmem:[%s5 + $0x10c] sm:$0xf]
  %v5713 = vld [vmem:[%s5 + $0x110] sm:$0xf]
  %v5714 = vld [vmem:[%s5 + $0x114] sm:$0xf]
  %v5715 = vld [vmem:[%s5 + $0x118] sm:$0xf]
  %v5716 = vld [vmem:[%s5 + $0x11c] sm:$0xf]
  %v5717 = vld [vmem:[%s5 + $0x120] sm:$0xf]
  %v5718 = vld [vmem:[%s5 + $0x124] sm:$0xf]
  %v5719 = vld [vmem:[%s5 + $0x128] sm:$0xf]
  %v5720 = vld [vmem:[%s5 + $0x12c] sm:$0xf]
  %v5721 = vld [vmem:[%s5 + $0x130] sm:$0xf]
  %v5722 = vld [vmem:[%s5 + $0x134] sm:$0xf]
  %v5723 = vld [vmem:[%s5 + $0x138] sm:$0xf]
  %v5724 = vld [vmem:[%s5 + $0x13c] sm:$0xf]
  %v5725 = vld [vmem:[%s6] sm:$0x1]
  %v5727 = vlaneseq
  %v5728 = vshrl.u32 %v5727, 7
  %v5729 = vsub.s32 0, %v5728
  %v5730 = vrot.slane %v5725, %v5729
  %v5812 = vunpack.c.l.b16 %v5645
  %v5813 = vunpack.c.l.b16 %v5646
  %v5814 = vunpack.c.l.b16 %v5647
  %v5815 = vunpack.c.l.b16 %v5648
  %v5816 = vunpack.c.l.b16 %v5649
  %v5817 = vunpack.c.l.b16 %v5650
  %v5818 = vunpack.c.l.b16 %v5651
  %v5819 = vunpack.c.l.b16 %v5652
  %v5820 = vunpack.c.l.b16 %v5653
  %v5821 = vunpack.c.l.b16 %v5654
  %v5822 = vunpack.c.l.b16 %v5655
  %v5823 = vunpack.c.l.b16 %v5656
  %v5824 = vunpack.c.l.b16 %v5657
  %v5825 = vunpack.c.l.b16 %v5658
  %v5826 = vunpack.c.l.b16 %v5659
  %v5827 = vunpack.c.l.b16 %v5660
  %v5828 = vunpack.c.l.b16 %v5661
  %v5829 = vunpack.c.l.b16 %v5662
  %v5830 = vunpack.c.l.b16 %v5663
  %v5831 = vunpack.c.l.b16 %v5664
  %v5832 = vunpack.c.l.b16 %v5665
  %v5833 = vunpack.c.l.b16 %v5666
  %v5834 = vunpack.c.l.b16 %v5667
  %v5835 = vunpack.c.l.b16 %v5668
  %v5836 = vunpack.c.l.b16 %v5669
  %v5837 = vunpack.c.l.b16 %v5670
  %v5838 = vunpack.c.l.b16 %v5671
  %v5839 = vunpack.c.l.b16 %v5672
  %v5840 = vunpack.c.l.b16 %v5673
  %v5841 = vunpack.c.l.b16 %v5674
  %v5842 = vunpack.c.l.b16 %v5675
  %v5843 = vunpack.c.l.b16 %v5676
  %v5844 = vunpack.c.l.b16 %v5677
  %v5845 = vunpack.c.l.b16 %v5678
  %v5846 = vunpack.c.l.b16 %v5679
  %v5847 = vunpack.c.l.b16 %v5680
  %v5848 = vunpack.c.l.b16 %v5681
  %v5849 = vunpack.c.l.b16 %v5682
  %v5850 = vunpack.c.l.b16 %v5683
  %v5851 = vunpack.c.l.b16 %v5684
  %v5852 = vunpack.c.l.b16 %v5685
  %v5853 = vunpack.c.l.b16 %v5686
  %v5854 = vunpack.c.l.b16 %v5687
  %v5855 = vunpack.c.l.b16 %v5688
  %v5856 = vunpack.c.l.b16 %v5689
  %v5857 = vunpack.c.l.b16 %v5690
  %v5858 = vunpack.c.l.b16 %v5691
  %v5859 = vunpack.c.l.b16 %v5692
  %v5860 = vunpack.c.l.b16 %v5693
  %v5861 = vunpack.c.l.b16 %v5694
  %v5862 = vunpack.c.l.b16 %v5695
  %v5863 = vunpack.c.l.b16 %v5696
  %v5864 = vunpack.c.l.b16 %v5697
  %v5865 = vunpack.c.l.b16 %v5698
  %v5866 = vunpack.c.l.b16 %v5699
  %v5867 = vunpack.c.l.b16 %v5700
  %v5868 = vunpack.c.l.b16 %v5701
  %v5869 = vunpack.c.l.b16 %v5702
  %v5870 = vunpack.c.l.b16 %v5703
  %v5871 = vunpack.c.l.b16 %v5704
  %v5872 = vunpack.c.l.b16 %v5705
  %v5873 = vunpack.c.l.b16 %v5706
  %v5874 = vunpack.c.l.b16 %v5707
  %v5875 = vunpack.c.l.b16 %v5708
  %v5876 = vunpack.c.l.b16 %v5709
  %v5877 = vunpack.c.l.b16 %v5710
  %v5878 = vunpack.c.l.b16 %v5711
  %v5879 = vunpack.c.l.b16 %v5712
  %v5880 = vunpack.c.l.b16 %v5713
  %v5881 = vunpack.c.l.b16 %v5714
  %v5882 = vunpack.c.l.b16 %v5715
  %v5883 = vunpack.c.l.b16 %v5716
  %v5884 = vunpack.c.l.b16 %v5717
  %v5885 = vunpack.c.l.b16 %v5718
  %v5886 = vunpack.c.l.b16 %v5719
  %v5887 = vunpack.c.l.b16 %v5720
  %v5888 = vunpack.c.l.b16 %v5721
  %v5889 = vunpack.c.l.b16 %v5722
  %v5890 = vunpack.c.l.b16 %v5723
  %v5891 = vunpack.c.l.b16 %v5724
  %v5892 = vpack.c.b16 %v5813, %v5812
  %v5893 = vpack.c.b16 %v5815, %v5814
  %v5894 = vpack.c.b16 %v5817, %v5816
  %v5895 = vpack.c.b16 %v5819, %v5818
  %v5896 = vpack.c.b16 %v5821, %v5820
  %v5897 = vpack.c.b16 %v5823, %v5822
  %v5898 = vpack.c.b16 %v5825, %v5824
  %v5899 = vpack.c.b16 %v5827, %v5826
  %v5900 = vpack.c.b16 %v5829, %v5828
  %v5901 = vpack.c.b16 %v5831, %v5830
  %v5902 = vpack.c.b16 %v5833, %v5832
  %v5903 = vpack.c.b16 %v5835, %v5834
  %v5904 = vpack.c.b16 %v5837, %v5836
  %v5905 = vpack.c.b16 %v5839, %v5838
  %v5906 = vpack.c.b16 %v5841, %v5840
  %v5907 = vpack.c.b16 %v5843, %v5842
  %v5908 = vpack.c.b16 %v5845, %v5844
  %v5909 = vpack.c.b16 %v5847, %v5846
  %v5910 = vpack.c.b16 %v5849, %v5848
  %v5911 = vpack.c.b16 %v5851, %v5850
  %v5912 = vpack.c.b16 %v5853, %v5852
  %v5913 = vpack.c.b16 %v5855, %v5854
  %v5914 = vpack.c.b16 %v5857, %v5856
  %v5915 = vpack.c.b16 %v5859, %v5858
  %v5916 = vpack.c.b16 %v5861, %v5860
  %v5917 = vpack.c.b16 %v5863, %v5862
  %v5918 = vpack.c.b16 %v5865, %v5864
  %v5919 = vpack.c.b16 %v5867, %v5866
  %v5920 = vpack.c.b16 %v5869, %v5868
  %v5921 = vpack.c.b16 %v5871, %v5870
  %v5922 = vpack.c.b16 %v5873, %v5872
  %v5923 = vpack.c.b16 %v5875, %v5874
  %v5924 = vpack.c.b16 %v5877, %v5876
  %v5925 = vpack.c.b16 %v5879, %v5878
  %v5926 = vpack.c.b16 %v5881, %v5880
  %v5927 = vpack.c.b16 %v5883, %v5882
  %v5928 = vpack.c.b16 %v5885, %v5884
  %v5929 = vpack.c.b16 %v5887, %v5886
  %v5930 = vpack.c.b16 %v5889, %v5888
  %v5931 = vpack.c.b16 %v5891, %v5890
  %5972 = vmatprep.subr.bf16.mxu0 0
  %5973 = vmatpush1.bf16.msra.mxu0 %v5892
  %5974 = vmatprep.subr.bf16.mxu0 0
  %5975 = vmatpush1.bf16.msra.mxu0 %v5893
  %5976 = vmatprep.subr.bf16.mxu0 0
  %5977 = vmatpush1.bf16.msra.mxu0 %v5894
  %5978 = vmatprep.subr.bf16.mxu0 0
  %5979 = vmatpush1.bf16.msra.mxu0 %v5895
  %5980 = vmatprep.subr.bf16.mxu0 0
  %5981 = vmatpush1.bf16.msra.mxu0 %v5896
  %5982 = vmatprep.subr.bf16.mxu0 0
  %5983 = vmatpush1.bf16.msra.mxu0 %v5897
  %5984 = vmatprep.subr.bf16.mxu0 0
  %5985 = vmatpush1.bf16.msra.mxu0 %v5898
  %5986 = vmatprep.subr.bf16.mxu0 0
  %5987 = vmatpush1.bf16.msra.mxu0 %v5899
  %5988 = vmatprep.subr.bf16.mxu0 0
  %5989 = vmatpush1.bf16.msra.mxu0 %v5900
  %5990 = vmatprep.subr.bf16.mxu0 0
  %5991 = vmatpush1.bf16.msra.mxu0 %v5901
  %5992 = vmatprep.subr.bf16.mxu0 0
  %5993 = vmatpush1.bf16.msra.mxu0 %v5902
  %5994 = vmatprep.subr.bf16.mxu0 0
  %5995 = vmatpush1.bf16.msra.mxu0 %v5903
  %5996 = vmatprep.subr.bf16.mxu0 0
  %5997 = vmatpush1.bf16.msra.mxu0 %v5904
  %5998 = vmatprep.subr.bf16.mxu0 0
  %5999 = vmatpush1.bf16.msra.mxu0 %v5905
  %6000 = vmatprep.subr.bf16.mxu0 0
  %6001 = vmatpush1.bf16.msra.mxu0 %v5906
  %6002 = vmatprep.subr.bf16.mxu0 0
  %6003 = vmatpush1.bf16.msra.mxu0 %v5907
  %6004 = vmatprep.mubr.bf16.mxu0 %v5641
  %6005 = vmatmul.mubr.bf16.gmra.mrb[0].mxu0 %v5640
  %v6006 = vpop.f32.mrb[0].mxu0
  %v6007 = vadd.f32 %v5730, %v6006
  %v6008 = vpop.f32.mrb[0].mxu0
  %v6009 = vpop.f32.mrb[0].mxu0
  %v6010 = vpop.f32.mrb[0].mxu0
  %6011 = vdwg.mxu0
  %6012 = vmatprep.subr.bf16.mxu0 0
  %6013 = vmatpush1.bf16.msra.mxu0 %v5908
  %6014 = vmatprep.subr.bf16.mxu0 0
  %6015 = vmatpush1.bf16.msra.mxu0 %v5909
  %6016 = vmatprep.subr.bf16.mxu0 0
  %6017 = vmatpush1.bf16.msra.mxu0 %v5910
  %6018 = vmatprep.subr.bf16.mxu0 0
  %6019 = vmatpush1.bf16.msra.mxu0 %v5911
  %6020 = vmatprep.subr.bf16.mxu0 0
  %6021 = vmatpush1.bf16.msra.mxu0 %v5912
  %6022 = vmatprep.subr.bf16.mxu0 0
  %6023 = vmatpush1.bf16.msra.mxu0 %v5913
  %6024 = vmatprep.subr.bf16.mxu0 0
  %6025 = vmatpush1.bf16.msra.mxu0 %v5914
  %6026 = vmatprep.subr.bf16.mxu0 0
  %6027 = vmatpush1.bf16.msra.mxu0 %v5915
  %6028 = vmatprep.subr.bf16.mxu0 0
  %6029 = vmatpush1.bf16.msra.mxu0 %v5916
  %6030 = vmatprep.subr.bf16.mxu0 0
  %6031 = vmatpush1.bf16.msra.mxu0 %v5917
  %6032 = vmatprep.subr.bf16.mxu0 0
  %6033 = vmatpush1.bf16.msra.mxu0 %v5918
  %6034 = vmatprep.subr.bf16.mxu0 0
  %6035 = vmatpush1.bf16.msra.mxu0 %v5919
  %6036 = vmatprep.subr.bf16.mxu0 0
  %6037 = vmatpush1.bf16.msra.mxu0 %v5920
  %6038 = vmatprep.subr.bf16.mxu0 0
  %6039 = vmatpush1.bf16.msra.mxu0 %v5921
  %6040 = vmatprep.subr.bf16.mxu0 0
  %6041 = vmatpush1.bf16.msra.mxu0 %v5922
  %6042 = vmatprep.subr.bf16.mxu0 0
  %6043 = vmatpush1.bf16.msra.mxu0 %v5923
  %6044 = vmatprep.mubr.bf16.mxu0 %v5643
  %6045 = vmatmul.mubr.bf16.gmra.mrb[0].mxu0 %v5642
  %v6046 = vpop.f32.mrb[0].mxu0
  %v6047 = vadd.f32 %v6007, %v6046
  %v6048 = vpop.f32.mrb[0].mxu0
  %v6049 = vpop.f32.mrb[0].mxu0
  %v6050 = vpop.f32.mrb[0].mxu0
  %6051 = vdwg.mxu0
  %6052 = vmatprep.subr.bf16.mxu0 0
  %6053 = vmatpush1.bf16.msra.mxu0 %v5924
  %6054 = vmatprep.subr.bf16.mxu0 0
  %6055 = vmatpush1.bf16.msra.mxu0 %v5925
  %6056 = vmatprep.subr.bf16.mxu0 0
  %6057 = vmatpush1.bf16.msra.mxu0 %v5926
  %6058 = vmatprep.subr.bf16.mxu0 0
  %6059 = vmatpush1.bf16.msra.mxu0 %v5927
  %6060 = vmatprep.subr.bf16.mxu0 0
  %6061 = vmatpush1.bf16.msra.mxu0 %v5928
  %6062 = vmatprep.subr.bf16.mxu0 0
  %6063 = vmatpush1.bf16.msra.mxu0 %v5929
  %6064 = vmatprep.subr.bf16.mxu0 0
  %6065 = vmatpush1.bf16.msra.mxu0 %v5930
  %6066 = vmatprep.subr.bf16.mxu0 0
  %6067 = vmatpush1.bf16.msra.mxu0 %v5931
  %6068 = vmatprep.subr.bf16.mxu0 0
  %6069 = vmatpush1.bf16.msra.mxu0 0
  %6070 = vmatprep.subr.bf16.mxu0 0
  %6071 = vmatpush1.bf16.msra.mxu0 0
  %6072 = vmatprep.subr.bf16.mxu0 0
  %6073 = vmatpush1.bf16.msra.mxu0 0
  %6074 = vmatprep.subr.bf16.mxu0 0
  %6075 = vmatpush1.bf16.msra.mxu0 0
  %6076 = vmatprep.subr.bf16.mxu0 0
  %6077 = vmatpush1.bf16.msra.mxu0 0
  %6078 = vmatprep.subr.bf16.mxu0 0
  %6079 = vmatpush1.bf16.msra.mxu0 0
  %6080 = vmatprep.subr.bf16.mxu0 0
  %6081 = vmatpush1.bf16.msra.mxu0 0
  %6082 = vmatprep.subr.bf16.mxu0 0
  %6083 = vmatpush1.bf16.msra.mxu0 0
  %6084 = vmatprep.mubr.bf16.mxu0 0
  %6085 = vmatmul.mubr.bf16.gmra.mrb[0].mxu0 %v5644
  %v6086 = vpop.f32.mrb[0].mxu0
  %v6087 = vadd.f32 %v6047, %v6086
  %v6088 = vpop.f32.mrb[0].mxu0
  %v6089 = vpop.f32.mrb[0].mxu0
  %v6090 = vpop.f32.mrb[0].mxu0
  %6091 = vdwg.mxu0
  %v6092 = vmax.f32 %v6087, 0.0
  %v6093 = vpack.c.bf16 %v6092, %v6092
  %v6094 = vld [vmem:[%s7] sm:$0xf]
  %v6095 = vld [vmem:[%s7 + $0x4] sm:$0xf]
  %v6096 = vld [vmem:[%s7 + $0x8] sm:$0xf]
  %v6097 = vld [vmem:[%s7 + $0xc] sm:$0xf]
  %v6098 = vld [vmem:[%s7 + $0x10] sm:$0xf]
  %v6099 = vld [vmem:[%s7 + $0x14] sm:$0xf]
  %v6100 = vld [vmem:[%s7 + $0x18] sm:$0x1]
  %v6101 = vld [vmem:[%s8] sm:$0x1]
  %v6103 = vlaneseq
  %v6104 = vshrl.u32 %v6103, 7
  %v6105 = vsub.s32 0, %v6104
  %v6106 = vrot.slane %v6101, %v6105
  %v6115 = vunpack.c.l.b16 %v6094
  %v6116 = vunpack.c.l.b16 %v6095
  %v6117 = vunpack.c.l.b16 %v6096
  %v6118 = vunpack.c.l.b16 %v6097
  %v6119 = vunpack.c.l.b16 %v6098
  %v6120 = vunpack.c.l.b16 %v6099
  %v6121 = vunpack.c.l.b16 %v6100
  %v6122 = vpack.c.b16 %v6116, %v6115
  %v6123 = vpack.c.b16 %v6118, %v6117
  %v6124 = vpack.c.b16 %v6120, %v6119
  %v6125 = vpack.c.b16 %v6121, %v6121
  %vm6129 = vcmask 408576
  %v6131 = vsel %vm6129, %v6093, 0
  %vm6133 = vcmask 1040384
  %v6135 = vsel %vm6133, %v6125, 0
  %6137 = vmatprep.subr.bf16.mxu0 0
  %6138 = vmatpush1.bf16.msra.mxu0 %v6122
  %6139 = vmatprep.subr.bf16.mxu0 0
  %6140 = vmatpush1.bf16.msra.mxu0 %v6123
  %6141 = vmatprep.subr.bf16.mxu0 0
  %6142 = vmatpush1.bf16.msra.mxu0 %v6124
  %6143 = vmatprep.subr.bf16.mxu0 0
  %6144 = vmatpush1.bf16.msra.mxu0 %v6135
  %6145 = vmatprep.subr.bf16.mxu0 0
  %6146 = vmatpush1.bf16.msra.mxu0 0
  %6147 = vmatprep.subr.bf16.mxu0 0
  %6148 = vmatpush1.bf16.msra.mxu0 0
  %6149 = vmatprep.subr.bf16.mxu0 0
  %6150 = vmatpush1.bf16.msra.mxu0 0
  %6151 = vmatprep.subr.bf16.mxu0 0
  %6152 = vmatpush1.bf16.msra.mxu0 0
  %6153 = vmatprep.subr.bf16.mxu0 0
  %6154 = vmatpush1.bf16.msra.mxu0 0
  %6155 = vmatprep.subr.bf16.mxu0 0
  %6156 = vmatpush1.bf16.msra.mxu0 0
  %6157 = vmatprep.subr.bf16.mxu0 0
  %6158 = vmatpush1.bf16.msra.mxu0 0
  %6159 = vmatprep.subr.bf16.mxu0 0
  %6160 = vmatpush1.bf16.msra.mxu0 0
  %6161 = vmatprep.subr.bf16.mxu0 0
  %6162 = vmatpush1.bf16.msra.mxu0 0
  %6163 = vmatprep.subr.bf16.mxu0 0
  %6164 = vmatpush1.bf16.msra.mxu0 0
  %6165 = vmatprep.subr.bf16.mxu0 0
  %6166 = vmatpush1.bf16.msra.mxu0 0
  %6167 = vmatprep.subr.bf16.mxu0 0
  %6168 = vmatpush1.bf16.msra.mxu0 0
  %6169 = vmatprep.mubr.bf16.mxu0 0
  %6170 = vmatmul.mubr.bf16.gmra.mrb[0].mxu0 %v6131
  %v6171 = vpop.f32.mrb[0].mxu0
  %v6172 = vadd.f32 %v6106, %v6171
  %v6173 = vpop.f32.mrb[0].mxu0
  %v6174 = vpop.f32.mrb[0].mxu0
  %v6175 = vpop.f32.mrb[0].mxu0
  %6176 = vdwg.mxu0
  %vm6177 = vcmask 80896
  %v6178 = vsel %vm6177, %v6172, -inf
  %6179 = vmax.xlane.f32.xlu0 %v6178
  %v6180 = vpop.xlane.xlu0 %6179
  %v6181 = vsub.f32 %v6172, %v6180
  %v6182 = vmul.f32 %v6181, 1.442695
  %v6183 = vpow.pop %v6182
  %v6184 = vsel %vm6177, %v6183, 0.0
  %6185 = vadd.xlane.f32.xlu0 %v6184
  %v6186 = vpop.xlane.xlu0 %6185
  %v6187 = vlog2.pop %v6186
  %v6188 = vmul.f32 %v6187, 0.6931472
  %v6189 = vsub.f32 %v6181, %v6188
  %6190 = vst.msk [vmem:[%s9] sm:$0xff] %vm6177, %v6189
  // Predicated region
  $region38: #{_net_forward.1} parent=0 // pred_check
    _
  $region39: #{_net_forward.1} parent=0 // pred_check_branch
    %6192 = sbr.rel (0) target = $region41
  $region40: #{_net_forward.1} parent=0 // pred_region
    _
  $region41: #{_net_forward.1} parent=0 // pred_fallthru
    _
  // Predicated region
  $region42: #{_net_forward.1} parent=0 // pred_check
    _
  $region43: #{_net_forward.1} parent=0 // pred_check_branch
    %6194 = sbr.rel (0) target = $region45
  $region44: #{_net_forward.1} parent=0 // pred_region
    _
  $region45: #{_net_forward.1} parent=0 // pred_fallthru
    _

</llo_original>
